<compile_context>
chip_gen: v6e
topology: v6e:2x2x1
jax: 0.10.0
libtpu: 0.0.40
codegen_flags: <defaults>
</compile_context>

<pallas_src>
import jax
import jax.numpy as jnp
from jax.experimental import pallas as pl
from jax.experimental.pallas import tpu as pltpu

K = 5                 # kernel_size
PAD = (K - 1) // 2
EPS = 1e-5


def _make_resblock_kernel(N, H, W, C):
    """Build the kernel body for static dims (N, H, W, C)."""
    L = W * C                 # fused lane width (w-major, channel-minor)
    NH = N * H
    CNT = float(N * H * W)    # BatchNorm count (per channel)

    def kernel(x_ref, wt1_ref, b1_ref, g1_ref, be1_ref,
               wt2_ref, g2_ref, be2_ref, pool_ref, out_ref, hpad_ref):
        # ---- zero ONLY the H-halo rows of the shared padded scratch (once) ----
        zhalo = jnp.zeros((N, PAD, L), jnp.float32)
        hpad_ref[:, :PAD, :] = zhalo
        hpad_ref[:, PAD + H:, :] = zhalo

        x = x_ref[...]                       # (N, H, W*C) f32, also the residual
        pool = pool_ref[...]                 # (L, L) 0/1 channel-pooling matrix

        def conv(h3, wt_ref):
            """5x5 'same' conv as K banded (Toeplitz) matmuls on the MXU.

            W-direction padding is folded into the banded weights; only the
            H halo is materialized.  bf16 MXU operands, f32 accumulation.
            """
            hpad_ref[:, PAD:PAD + H, :] = h3          # interior only; halo stays 0
            hp = hpad_ref[...]                        # (N, H+2*PAD, L)
            acc = jnp.zeros((NH, L), jnp.float32)
            for kh in range(K):                       # K dense matmuls, depth L
                lhs = hp[:, kh:kh + H, :].reshape(NH, L).astype(jnp.bfloat16)
                acc = acc + jnp.dot(lhs, wt_ref[kh],
                                    preferred_element_type=jnp.float32)
            return acc                                # (N*H, W*Cout)

        def batchnorm(a, g_row, be_row):
            """Training-mode BN (biased variance).  Per-channel stats via a
            0/1 channel-pooling matmul so the math stays lane-dense; the tiny
            pooling dots are kept in f32 (HIGHEST) while the conv MXU path is
            bf16."""
            pooled = jnp.dot(a, pool, preferred_element_type=jnp.float32,
                             precision=jax.lax.Precision.HIGHEST)
            mean = jnp.sum(pooled, axis=0, keepdims=True) * (1.0 / CNT)   # (1, L)
            cen = a - mean
            pooled_sq = jnp.dot(cen * cen, pool,
                                preferred_element_type=jnp.float32,
                                precision=jax.lax.Precision.HIGHEST)
            var = jnp.sum(pooled_sq, axis=0, keepdims=True) * (1.0 / CNT)
            return cen * jax.lax.rsqrt(var + EPS) * g_row + be_row

        # ---- conv1 -> ReLU -> bn1  (ReLU before bn1, as in the PyTorch forward) ----
        a1 = conv(x, wt1_ref) + b1_ref[...]
        a1 = jnp.maximum(a1, 0.0)
        h1 = batchnorm(a1, g1_ref[...], be1_ref[...])

        # ---- conv2 -> bn2 (conv2 bias omitted: exactly cancelled by bn2's mean) ----
        a2 = conv(h1.reshape(N, H, L), wt2_ref)
        h2 = batchnorm(a2, g2_ref[...], be2_ref[...])

        # ---- residual add + final ReLU ----
        out = jnp.maximum(h2 + x.reshape(NH, L), 0.0)
        out_ref[...] = out.reshape(N, H, L)

    return kernel


def _banded_weights(w, W):
    """(K, K, Cin, Cout) HWIO weights -> (K, W*Cin, W*Cout) banded matrices.

    Row index = wi*Cin + ci, col index = wo*Cout + co, entry = w[kh, wi-wo+PAD]
    when that kw tap exists, else 0.  This folds the kw taps and the W-boundary
    zero padding of a 'same' conv into one dense matmul per kh.
    """
    Kh, Kw, Cin, Cout = w.shape
    wi = jnp.arange(W)[:, None]
    wo = jnp.arange(W)[None, :]
    kw = wi - wo + PAD                                   # (W, W)
    valid = (kw >= 0) & (kw < Kw)
    g = w[:, jnp.clip(kw, 0, Kw - 1)]                    # (K, W, W, Cin, Cout)
    g = jnp.where(valid[None, :, :, None, None], g, 0.0)
    t = jnp.transpose(g, (0, 1, 3, 2, 4)).reshape(Kh, W * Cin, W * Cout)
    return t.astype(jnp.bfloat16)                        # bf16 MXU operands


def _tile_row(p, W):
    """(1, C) per-channel parameter -> (1, W*C) row matching lane index w*C+c."""
    return jnp.tile(p.reshape(1, -1), (1, W)).astype(jnp.float32)


@jax.jit
def residual_block(x_nchw, params):
    """x_nchw: (N, C, H, W) float32; params: dict of kernel parameters."""
    N, C, H, W = x_nchw.shape
    Cout = params['w1'].shape[-1]
    assert Cout == C, "residual add requires in_channels == out_channels"
    L = W * C

    # NCHW -> NHWC -> fused (N, H, W*C): channels ride the 128-lane axis.
    x_f = jnp.transpose(x_nchw, (0, 2, 3, 1)).reshape(N, H, L)

    wt1 = _banded_weights(params['w1'], W)               # (K, W*C, W*C) bf16
    wt2 = _banded_weights(params['w2'], W)
    b1_row = _tile_row(params['b1'], W)
    g1_row = _tile_row(params['g1'], W)
    be1_row = _tile_row(params['be1'], W)
    g2_row = _tile_row(params['g2'], W)
    be2_row = _tile_row(params['be2'], W)

    lane = jnp.arange(L)
    pool = (lane[:, None] % C == lane[None, :] % C).astype(jnp.float32)  # (L, L)

    # TODO(synk): for large N/H/W/C this single-invocation kernel should be
    # tiled over a grid (N/H axes, BlockSpec pipelining) with cross-tile
    # sum/sum-of-squares BN accumulation; at these toy shapes everything
    # (a few hundred KiB) fits comfortably in VMEM on v5e/v6e/v7x.
    vmem = pl.BlockSpec(memory_space=pltpu.MemorySpace.VMEM)
    out = pl.pallas_call(
        _make_resblock_kernel(N, H, W, C),
        out_shape=jax.ShapeDtypeStruct((N, H, L), jnp.float32),
        in_specs=[vmem] * 9,
        out_specs=vmem,
        scratch_shapes=[pltpu.VMEM((N, H + 2 * PAD, L), jnp.float32)],
        compiler_params=pltpu.CompilerParams(vmem_limit_bytes=32 * 1024 * 1024),
    )(x_f, wt1, b1_row, g1_row, be1_row, wt2, g2_row, be2_row, pool)

    # fused (N, H, W*C) -> NHWC -> NCHW
    return jnp.transpose(out.reshape(N, H, W, C), (0, 3, 1, 2))


def make_params(key, c_in, c_out):
    ks = jax.random.split(key, 8)
    # Conv weights stored HWIO for the NHWC/fused kernel.
    w1 = 0.1 * jax.random.normal(ks[0], (K, K, c_in, c_out), jnp.float32)
    b1 = 0.1 * jax.random.normal(ks[1], (1, c_out), jnp.float32)
    w2 = 0.1 * jax.random.normal(ks[2], (K, K, c_out, c_out), jnp.float32)
    b2 = 0.1 * jax.random.normal(ks[3], (1, c_out), jnp.float32)
    g1 = 1.0 + 0.1 * jax.random.normal(ks[4], (1, c_out), jnp.float32)
    be1 = 0.05 * jax.random.normal(ks[5], (1, c_out), jnp.float32)
    g2 = 1.0 + 0.1 * jax.random.normal(ks[6], (1, c_out), jnp.float32)
    be2 = 0.05 * jax.random.normal(ks[7], (1, c_out), jnp.float32)
    return dict(w1=w1, b1=b1, g1=g1, be1=be1, w2=w2, b2=b2, g2=g2, be2=be2)


def reference_forward(x_nchw, params):
    """Plain-JAX reference mirroring the PyTorch forward (training-mode BN).

    Conv operands are cast to bf16 with f32 accumulation to match the
    kernel's MXU precision (per the review's correctness note); b2 is kept
    here for faithfulness (it is mathematically cancelled by bn2).
    """
    x = jnp.transpose(x_nchw, (0, 2, 3, 1))  # NHWC
    dn = ('NHWC', 'HWIO', 'NHWC')

    def conv(h, w, b):
        y = jax.lax.conv_general_dilated(
            h.astype(jnp.bfloat16), w.astype(jnp.bfloat16),
            window_strides=(1, 1), padding='SAME', dimension_numbers=dn,
            preferred_element_type=jnp.float32)
        return y + b.reshape(1, 1, 1, -1)

    def bn(h, g, be):
        m = jnp.mean(h, axis=(0, 1, 2), keepdims=True)
        v = jnp.mean((h - m) ** 2, axis=(0, 1, 2), keepdims=True)
        return (h - m) * jax.lax.rsqrt(v + EPS) * g.reshape(1, 1, 1, -1) \
               + be.reshape(1, 1, 1, -1)

    out = conv(x, params['w1'], params['b1'])
    out = jnp.maximum(out, 0.0)
    out = bn(out, params['g1'], params['be1'])
    out = conv(out, params['w2'], params['b2'])
    out = bn(out, params['g2'], params['be2'])
    out = jnp.maximum(out + x, 0.0)
    return jnp.transpose(out, (0, 3, 1, 2))


if __name__ == "__main__":
    key = jax.random.PRNGKey(0)
    k_x, k_p = jax.random.split(key)

    N, C, H, W = 2, 4, 16, 16     # residual add requires in_channels == out_channels
    x = jax.random.normal(k_x, (N, C, H, W), jnp.float32)
    params = make_params(k_p, C, C)

    y = residual_block(x, params)
    y = jax.block_until_ready(y)

    y_ref = reference_forward(x, params)
    assert y.shape == (N, C, H, W)
    # Tolerance reflects bf16 MXU operands (both kernel and reference) plus
    # accumulation-order differences; observed error is far below this.
    assert jnp.allclose(y, y_ref, atol=1e-2, rtol=1e-2), \
        f"max abs err {jnp.max(jnp.abs(y - y_ref))}"

    print("KERNEL_OK")
</pallas_src>

<mosaic_0001>
module attributes {stable_mosaic.version = 11 : i64} {
  func.func @kernel(%arg0: memref<2x16x64xf32, #tpu.memory_space<vmem>>, %arg1: memref<5x64x64xbf16, #tpu.memory_space<vmem>>, %arg2: memref<1x64xf32, #tpu.memory_space<vmem>>, %arg3: memref<1x64xf32, #tpu.memory_space<vmem>>, %arg4: memref<1x64xf32, #tpu.memory_space<vmem>>, %arg5: memref<5x64x64xbf16, #tpu.memory_space<vmem>>, %arg6: memref<1x64xf32, #tpu.memory_space<vmem>>, %arg7: memref<1x64xf32, #tpu.memory_space<vmem>>, %arg8: memref<64x64xf32, #tpu.memory_space<vmem>>, %arg9: memref<2x16x64xf32, #tpu.memory_space<vmem>>, %arg10: memref<2x20x64xf32, #tpu.memory_space<vmem>>) attributes {dimension_semantics = [], scalar_prefetch = 0 : i64, scratch_operands = 1 : i64, tpu.core_type = #tpu.core_type<tc>} {
    %cst = arith.constant 0.000000e+00 : f32
    %0 = vector.broadcast %cst : f32 to vector<2x2x64xf32>
    %c0 = arith.constant 0 : index
    %c0_0 = arith.constant 0 : index
    %c0_1 = arith.constant 0 : index
    %1 = vector.load %arg10[%c0, %c0_0, %c0_1] : memref<2x20x64xf32, #tpu.memory_space<vmem>>, vector<2x2x64xf32>
    tpu.vector_store %arg10[%c0, %c0_0, %c0_1], %0 {strides = array<i32>} : memref<2x20x64xf32, #tpu.memory_space<vmem>>, vector<2x2x64xf32>,
    %c0_2 = arith.constant 0 : index
    %c18 = arith.constant 18 : index
    %c0_3 = arith.constant 0 : index
    %2 = vector.load %arg10[%c0_2, %c18, %c0_3] : memref<2x20x64xf32, #tpu.memory_space<vmem>>, vector<2x2x64xf32>
    tpu.vector_store %arg10[%c0_2, %c18, %c0_3], %0 {strides = array<i32>} : memref<2x20x64xf32, #tpu.memory_space<vmem>>, vector<2x2x64xf32>,
    %c0_4 = arith.constant 0 : index
    %c0_5 = arith.constant 0 : index
    %c0_6 = arith.constant 0 : index
    %3 = vector.load %arg0[%c0_4, %c0_5, %c0_6] : memref<2x16x64xf32, #tpu.memory_space<vmem>>, vector<2x16x64xf32>
    %c0_7 = arith.constant 0 : index
    %c0_8 = arith.constant 0 : index
    %4 = vector.load %arg8[%c0_7, %c0_8] : memref<64x64xf32, #tpu.memory_space<vmem>>, vector<64x64xf32>
    %c0_9 = arith.constant 0 : index
    %c2 = arith.constant 2 : index
    %c0_10 = arith.constant 0 : index
    %5 = vector.load %arg10[%c0_9, %c2, %c0_10] : memref<2x20x64xf32, #tpu.memory_space<vmem>>, vector<2x16x64xf32>
    tpu.vector_store %arg10[%c0_9, %c2, %c0_10], %3 {strides = array<i32>} : memref<2x20x64xf32, #tpu.memory_space<vmem>>, vector<2x16x64xf32>,
    %c0_11 = arith.constant 0 : index
    %c0_12 = arith.constant 0 : index
    %c0_13 = arith.constant 0 : index
    %6 = vector.load %arg10[%c0_11, %c0_12, %c0_13] : memref<2x20x64xf32, #tpu.memory_space<vmem>>, vector<2x20x64xf32>
    %cst_14 = arith.constant 0.000000e+00 : f32
    %7 = vector.broadcast %cst_14 : f32 to vector<32x64xf32>
    %8 = vector.extract_strided_slice %6 {offsets = [0, 0, 0], sizes = [2, 16, 64], strides = [1, 1, 1]} : vector<2x20x64xf32> to vector<2x16x64xf32>
    %9 = vector.shape_cast %8 : vector<2x16x64xf32> to vector<32x64xf32>
    %10 = arith.truncf %9 : vector<32x64xf32> to vector<32x64xbf16>
    %c0_15 = arith.constant 0 : index
    %c0_16 = arith.constant 0 : index
    %c0_17 = arith.constant 0 : index
    %11 = vector.load %arg1[%c0_15, %c0_16, %c0_17] : memref<5x64x64xbf16, #tpu.memory_space<vmem>>, vector<1x64x64xbf16>
    %12 = vector.shape_cast %11 : vector<1x64x64xbf16> to vector<64x64xbf16>
    %cst_18 = arith.constant dense<0.000000e+00> : vector<32x64xf32>
    %13 = tpu.matmul %10, %12, %cst_18 {dimension_numbers = #tpu.dot_dimension_numbers<[1], [0], [0], [1], [0, 0, 1, 1], [], []>} : vector<32x64xbf16>, vector<64x64xbf16>, vector<32x64xf32> -> vector<32x64xf32>
    %14 = arith.addf %7, %13 : vector<32x64xf32>
    %15 = vector.extract_strided_slice %6 {offsets = [0, 1, 0], sizes = [2, 16, 64], strides = [1, 1, 1]} : vector<2x20x64xf32> to vector<2x16x64xf32>
    %16 = vector.shape_cast %15 : vector<2x16x64xf32> to vector<32x64xf32>
    %17 = arith.truncf %16 : vector<32x64xf32> to vector<32x64xbf16>
    %c1 = arith.constant 1 : index
    %c0_19 = arith.constant 0 : index
    %c0_20 = arith.constant 0 : index
    %18 = vector.load %arg1[%c1, %c0_19, %c0_20] : memref<5x64x64xbf16, #tpu.memory_space<vmem>>, vector<1x64x64xbf16>
    %19 = vector.shape_cast %18 : vector<1x64x64xbf16> to vector<64x64xbf16>
    %cst_21 = arith.constant dense<0.000000e+00> : vector<32x64xf32>
    %20 = tpu.matmul %17, %19, %cst_21 {dimension_numbers = #tpu.dot_dimension_numbers<[1], [0], [0], [1], [0, 0, 1, 1], [], []>} : vector<32x64xbf16>, vector<64x64xbf16>, vector<32x64xf32> -> vector<32x64xf32>
    %21 = arith.addf %14, %20 : vector<32x64xf32>
    %22 = vector.extract_strided_slice %6 {offsets = [0, 2, 0], sizes = [2, 16, 64], strides = [1, 1, 1]} : vector<2x20x64xf32> to vector<2x16x64xf32>
    %23 = vector.shape_cast %22 : vector<2x16x64xf32> to vector<32x64xf32>
    %24 = arith.truncf %23 : vector<32x64xf32> to vector<32x64xbf16>
    %c2_22 = arith.constant 2 : index
    %c0_23 = arith.constant 0 : index
    %c0_24 = arith.constant 0 : index
    %25 = vector.load %arg1[%c2_22, %c0_23, %c0_24] : memref<5x64x64xbf16, #tpu.memory_space<vmem>>, vector<1x64x64xbf16>
    %26 = vector.shape_cast %25 : vector<1x64x64xbf16> to vector<64x64xbf16>
    %cst_25 = arith.constant dense<0.000000e+00> : vector<32x64xf32>
    %27 = tpu.matmul %24, %26, %cst_25 {dimension_numbers = #tpu.dot_dimension_numbers<[1], [0], [0], [1], [0, 0, 1, 1], [], []>} : vector<32x64xbf16>, vector<64x64xbf16>, vector<32x64xf32> -> vector<32x64xf32>
    %28 = arith.addf %21, %27 : vector<32x64xf32>
    %29 = vector.extract_strided_slice %6 {offsets = [0, 3, 0], sizes = [2, 16, 64], strides = [1, 1, 1]} : vector<2x20x64xf32> to vector<2x16x64xf32>
    %30 = vector.shape_cast %29 : vector<2x16x64xf32> to vector<32x64xf32>
    %31 = arith.truncf %30 : vector<32x64xf32> to vector<32x64xbf16>
    %c3 = arith.constant 3 : index
    %c0_26 = arith.constant 0 : index
    %c0_27 = arith.constant 0 : index
    %32 = vector.load %arg1[%c3, %c0_26, %c0_27] : memref<5x64x64xbf16, #tpu.memory_space<vmem>>, vector<1x64x64xbf16>
    %33 = vector.shape_cast %32 : vector<1x64x64xbf16> to vector<64x64xbf16>
    %cst_28 = arith.constant dense<0.000000e+00> : vector<32x64xf32>
    %34 = tpu.matmul %31, %33, %cst_28 {dimension_numbers = #tpu.dot_dimension_numbers<[1], [0], [0], [1], [0, 0, 1, 1], [], []>} : vector<32x64xbf16>, vector<64x64xbf16>, vector<32x64xf32> -> vector<32x64xf32>
    %35 = arith.addf %28, %34 : vector<32x64xf32>
    %36 = vector.extract_strided_slice %6 {offsets = [0, 4, 0], sizes = [2, 16, 64], strides = [1, 1, 1]} : vector<2x20x64xf32> to vector<2x16x64xf32>
    %37 = vector.shape_cast %36 : vector<2x16x64xf32> to vector<32x64xf32>
    %38 = arith.truncf %37 : vector<32x64xf32> to vector<32x64xbf16>
    %c4 = arith.constant 4 : index
    %c0_29 = arith.constant 0 : index
    %c0_30 = arith.constant 0 : index
    %39 = vector.load %arg1[%c4, %c0_29, %c0_30] : memref<5x64x64xbf16, #tpu.memory_space<vmem>>, vector<1x64x64xbf16>
    %40 = vector.shape_cast %39 : vector<1x64x64xbf16> to vector<64x64xbf16>
    %cst_31 = arith.constant dense<0.000000e+00> : vector<32x64xf32>
    %41 = tpu.matmul %38, %40, %cst_31 {dimension_numbers = #tpu.dot_dimension_numbers<[1], [0], [0], [1], [0, 0, 1, 1], [], []>} : vector<32x64xbf16>, vector<64x64xbf16>, vector<32x64xf32> -> vector<32x64xf32>
    %42 = arith.addf %35, %41 : vector<32x64xf32>
    %c0_32 = arith.constant 0 : index
    %c0_33 = arith.constant 0 : index
    %43 = vector.load %arg2[%c0_32, %c0_33] : memref<1x64xf32, #tpu.memory_space<vmem>>, vector<1x64xf32>
    %44 = vector.broadcast %43 : vector<1x64xf32> to vector<32x64xf32>
    %45 = arith.addf %42, %44 : vector<32x64xf32>
    %cst_34 = arith.constant 0.000000e+00 : f32
    %46 = vector.broadcast %cst_34 : f32 to vector<32x64xf32>
    %47 = arith.maximumf %45, %46 : vector<32x64xf32>
    %c0_35 = arith.constant 0 : index
    %c0_36 = arith.constant 0 : index
    %48 = vector.load %arg3[%c0_35, %c0_36] : memref<1x64xf32, #tpu.memory_space<vmem>>, vector<1x64xf32>
    %c0_37 = arith.constant 0 : index
    %c0_38 = arith.constant 0 : index
    %49 = vector.load %arg4[%c0_37, %c0_38] : memref<1x64xf32, #tpu.memory_space<vmem>>, vector<1x64xf32>
    %cst_39 = arith.constant dense<0.000000e+00> : vector<32x64xf32>
    %50 = tpu.matmul %47, %4, %cst_39 {dimension_numbers = #tpu.dot_dimension_numbers<[1], [0], [0], [1], [0, 0, 1, 1], [], []>, precision = #tpu.contract_precision<fp32>} : vector<32x64xf32>, vector<64x64xf32>, vector<32x64xf32> -> vector<32x64xf32>
    %cst_40 = arith.constant dense<0.000000e+00> : vector<64xf32>
    %51 = vector.multi_reduction <add>, %50, %cst_40 [0] : vector<32x64xf32> to vector<64xf32>
    %52 = vector.shape_cast %51 : vector<64xf32> to vector<1x64xf32>
    %cst_41 = arith.constant 0.001953125 : f32
    %53 = vector.broadcast %cst_41 : f32 to vector<1x64xf32>
    %54 = arith.mulf %52, %53 : vector<1x64xf32>
    %55 = vector.broadcast %54 : vector<1x64xf32> to vector<32x64xf32>
    %56 = arith.subf %47, %55 : vector<32x64xf32>
    %57 = arith.mulf %56, %56 : vector<32x64xf32>
    %cst_42 = arith.constant dense<0.000000e+00> : vector<32x64xf32>
    %58 = tpu.matmul %57, %4, %cst_42 {dimension_numbers = #tpu.dot_dimension_numbers<[1], [0], [0], [1], [0, 0, 1, 1], [], []>, precision = #tpu.contract_precision<fp32>} : vector<32x64xf32>, vector<64x64xf32>, vector<32x64xf32> -> vector<32x64xf32>
    %cst_43 = arith.constant dense<0.000000e+00> : vector<64xf32>
    %59 = vector.multi_reduction <add>, %58, %cst_43 [0] : vector<32x64xf32> to vector<64xf32>
    %60 = vector.shape_cast %59 : vector<64xf32> to vector<1x64xf32>
    %cst_44 = arith.constant 0.001953125 : f32
    %61 = vector.broadcast %cst_44 : f32 to vector<1x64xf32>
    %62 = arith.mulf %60, %61 : vector<1x64xf32>
    %cst_45 = arith.constant 9.99999974E-6 : f32
    %63 = vector.broadcast %cst_45 : f32 to vector<1x64xf32>
    %64 = arith.addf %62, %63 : vector<1x64xf32>
    %65 = math.rsqrt %64 : vector<1x64xf32>
    %66 = vector.broadcast %65 : vector<1x64xf32> to vector<32x64xf32>
    %67 = arith.mulf %56, %66 : vector<32x64xf32>
    %68 = vector.broadcast %48 : vector<1x64xf32> to vector<32x64xf32>
    %69 = arith.mulf %67, %68 : vector<32x64xf32>
    %70 = vector.broadcast %49 : vector<1x64xf32> to vector<32x64xf32>
    %71 = arith.addf %69, %70 : vector<32x64xf32>
    %72 = vector.shape_cast %71 : vector<32x64xf32> to vector<2x16x64xf32>
    %c0_46 = arith.constant 0 : index
    %c2_47 = arith.constant 2 : index
    %c0_48 = arith.constant 0 : index
    %73 = vector.load %arg10[%c0_46, %c2_47, %c0_48] : memref<2x20x64xf32, #tpu.memory_space<vmem>>, vector<2x16x64xf32>
    tpu.vector_store %arg10[%c0_46, %c2_47, %c0_48], %72 {strides = array<i32>} : memref<2x20x64xf32, #tpu.memory_space<vmem>>, vector<2x16x64xf32>,
    %c0_49 = arith.constant 0 : index
    %c0_50 = arith.constant 0 : index
    %c0_51 = arith.constant 0 : index
    %74 = vector.load %arg10[%c0_49, %c0_50, %c0_51] : memref<2x20x64xf32, #tpu.memory_space<vmem>>, vector<2x20x64xf32>
    %cst_52 = arith.constant 0.000000e+00 : f32
    %75 = vector.broadcast %cst_52 : f32 to vector<32x64xf32>
    %76 = vector.extract_strided_slice %74 {offsets = [0, 0, 0], sizes = [2, 16, 64], strides = [1, 1, 1]} : vector<2x20x64xf32> to vector<2x16x64xf32>
    %77 = vector.shape_cast %76 : vector<2x16x64xf32> to vector<32x64xf32>
    %78 = arith.truncf %77 : vector<32x64xf32> to vector<32x64xbf16>
    %c0_53 = arith.constant 0 : index
    %c0_54 = arith.constant 0 : index
    %c0_55 = arith.constant 0 : index
    %79 = vector.load %arg5[%c0_53, %c0_54, %c0_55] : memref<5x64x64xbf16, #tpu.memory_space<vmem>>, vector<1x64x64xbf16>
    %80 = vector.shape_cast %79 : vector<1x64x64xbf16> to vector<64x64xbf16>
    %cst_56 = arith.constant dense<0.000000e+00> : vector<32x64xf32>
    %81 = tpu.matmul %78, %80, %cst_56 {dimension_numbers = #tpu.dot_dimension_numbers<[1], [0], [0], [1], [0, 0, 1, 1], [], []>} : vector<32x64xbf16>, vector<64x64xbf16>, vector<32x64xf32> -> vector<32x64xf32>
    %82 = arith.addf %75, %81 : vector<32x64xf32>
    %83 = vector.extract_strided_slice %74 {offsets = [0, 1, 0], sizes = [2, 16, 64], strides = [1, 1, 1]} : vector<2x20x64xf32> to vector<2x16x64xf32>
    %84 = vector.shape_cast %83 : vector<2x16x64xf32> to vector<32x64xf32>
    %85 = arith.truncf %84 : vector<32x64xf32> to vector<32x64xbf16>
    %c1_57 = arith.constant 1 : index
    %c0_58 = arith.constant 0 : index
    %c0_59 = arith.constant 0 : index
    %86 = vector.load %arg5[%c1_57, %c0_58, %c0_59] : memref<5x64x64xbf16, #tpu.memory_space<vmem>>, vector<1x64x64xbf16>
    %87 = vector.shape_cast %86 : vector<1x64x64xbf16> to vector<64x64xbf16>
    %cst_60 = arith.constant dense<0.000000e+00> : vector<32x64xf32>
    %88 = tpu.matmul %85, %87, %cst_60 {dimension_numbers = #tpu.dot_dimension_numbers<[1], [0], [0], [1], [0, 0, 1, 1], [], []>} : vector<32x64xbf16>, vector<64x64xbf16>, vector<32x64xf32> -> vector<32x64xf32>
    %89 = arith.addf %82, %88 : vector<32x64xf32>
    %90 = vector.extract_strided_slice %74 {offsets = [0, 2, 0], sizes = [2, 16, 64], strides = [1, 1, 1]} : vector<2x20x64xf32> to vector<2x16x64xf32>
    %91 = vector.shape_cast %90 : vector<2x16x64xf32> to vector<32x64xf32>
    %92 = arith.truncf %91 : vector<32x64xf32> to vector<32x64xbf16>
    %c2_61 = arith.constant 2 : index
    %c0_62 = arith.constant 0 : index
    %c0_63 = arith.constant 0 : index
    %93 = vector.load %arg5[%c2_61, %c0_62, %c0_63] : memref<5x64x64xbf16, #tpu.memory_space<vmem>>, vector<1x64x64xbf16>
    %94 = vector.shape_cast %93 : vector<1x64x64xbf16> to vector<64x64xbf16>
    %cst_64 = arith.constant dense<0.000000e+00> : vector<32x64xf32>
    %95 = tpu.matmul %92, %94, %cst_64 {dimension_numbers = #tpu.dot_dimension_numbers<[1], [0], [0], [1], [0, 0, 1, 1], [], []>} : vector<32x64xbf16>, vector<64x64xbf16>, vector<32x64xf32> -> vector<32x64xf32>
    %96 = arith.addf %89, %95 : vector<32x64xf32>
    %97 = vector.extract_strided_slice %74 {offsets = [0, 3, 0], sizes = [2, 16, 64], strides = [1, 1, 1]} : vector<2x20x64xf32> to vector<2x16x64xf32>
    %98 = vector.shape_cast %97 : vector<2x16x64xf32> to vector<32x64xf32>
    %99 = arith.truncf %98 : vector<32x64xf32> to vector<32x64xbf16>
    %c3_65 = arith.constant 3 : index
    %c0_66 = arith.constant 0 : index
    %c0_67 = arith.constant 0 : index
    %100 = vector.load %arg5[%c3_65, %c0_66, %c0_67] : memref<5x64x64xbf16, #tpu.memory_space<vmem>>, vector<1x64x64xbf16>
    %101 = vector.shape_cast %100 : vector<1x64x64xbf16> to vector<64x64xbf16>
    %cst_68 = arith.constant dense<0.000000e+00> : vector<32x64xf32>
    %102 = tpu.matmul %99, %101, %cst_68 {dimension_numbers = #tpu.dot_dimension_numbers<[1], [0], [0], [1], [0, 0, 1, 1], [], []>} : vector<32x64xbf16>, vector<64x64xbf16>, vector<32x64xf32> -> vector<32x64xf32>
    %103 = arith.addf %96, %102 : vector<32x64xf32>
    %104 = vector.extract_strided_slice %74 {offsets = [0, 4, 0], sizes = [2, 16, 64], strides = [1, 1, 1]} : vector<2x20x64xf32> to vector<2x16x64xf32>
    %105 = vector.shape_cast %104 : vector<2x16x64xf32> to vector<32x64xf32>
    %106 = arith.truncf %105 : vector<32x64xf32> to vector<32x64xbf16>
    %c4_69 = arith.constant 4 : index
    %c0_70 = arith.constant 0 : index
    %c0_71 = arith.constant 0 : index
    %107 = vector.load %arg5[%c4_69, %c0_70, %c0_71] : memref<5x64x64xbf16, #tpu.memory_space<vmem>>, vector<1x64x64xbf16>
    %108 = vector.shape_cast %107 : vector<1x64x64xbf16> to vector<64x64xbf16>
    %cst_72 = arith.constant dense<0.000000e+00> : vector<32x64xf32>
    %109 = tpu.matmul %106, %108, %cst_72 {dimension_numbers = #tpu.dot_dimension_numbers<[1], [0], [0], [1], [0, 0, 1, 1], [], []>} : vector<32x64xbf16>, vector<64x64xbf16>, vector<32x64xf32> -> vector<32x64xf32>
    %110 = arith.addf %103, %109 : vector<32x64xf32>
    %c0_73 = arith.constant 0 : index
    %c0_74 = arith.constant 0 : index
    %111 = vector.load %arg6[%c0_73, %c0_74] : memref<1x64xf32, #tpu.memory_space<vmem>>, vector<1x64xf32>
    %c0_75 = arith.constant 0 : index
    %c0_76 = arith.constant 0 : index
    %112 = vector.load %arg7[%c0_75, %c0_76] : memref<1x64xf32, #tpu.memory_space<vmem>>, vector<1x64xf32>
    %cst_77 = arith.constant dense<0.000000e+00> : vector<32x64xf32>
    %113 = tpu.matmul %110, %4, %cst_77 {dimension_numbers = #tpu.dot_dimension_numbers<[1], [0], [0], [1], [0, 0, 1, 1], [], []>, precision = #tpu.contract_precision<fp32>} : vector<32x64xf32>, vector<64x64xf32>, vector<32x64xf32> -> vector<32x64xf32>
    %cst_78 = arith.constant dense<0.000000e+00> : vector<64xf32>
    %114 = vector.multi_reduction <add>, %113, %cst_78 [0] : vector<32x64xf32> to vector<64xf32>
    %115 = vector.shape_cast %114 : vector<64xf32> to vector<1x64xf32>
    %cst_79 = arith.constant 0.001953125 : f32
    %116 = vector.broadcast %cst_79 : f32 to vector<1x64xf32>
    %117 = arith.mulf %115, %116 : vector<1x64xf32>
    %118 = vector.broadcast %117 : vector<1x64xf32> to vector<32x64xf32>
    %119 = arith.subf %110, %118 : vector<32x64xf32>
    %120 = arith.mulf %119, %119 : vector<32x64xf32>
    %cst_80 = arith.constant dense<0.000000e+00> : vector<32x64xf32>
    %121 = tpu.matmul %120, %4, %cst_80 {dimension_numbers = #tpu.dot_dimension_numbers<[1], [0], [0], [1], [0, 0, 1, 1], [], []>, precision = #tpu.contract_precision<fp32>} : vector<32x64xf32>, vector<64x64xf32>, vector<32x64xf32> -> vector<32x64xf32>
    %cst_81 = arith.constant dense<0.000000e+00> : vector<64xf32>
    %122 = vector.multi_reduction <add>, %121, %cst_81 [0] : vector<32x64xf32> to vector<64xf32>
    %123 = vector.shape_cast %122 : vector<64xf32> to vector<1x64xf32>
    %cst_82 = arith.constant 0.001953125 : f32
    %124 = vector.broadcast %cst_82 : f32 to vector<1x64xf32>
    %125 = arith.mulf %123, %124 : vector<1x64xf32>
    %cst_83 = arith.constant 9.99999974E-6 : f32
    %126 = vector.broadcast %cst_83 : f32 to vector<1x64xf32>
    %127 = arith.addf %125, %126 : vector<1x64xf32>
    %128 = math.rsqrt %127 : vector<1x64xf32>
    %129 = vector.broadcast %128 : vector<1x64xf32> to vector<32x64xf32>
    %130 = arith.mulf %119, %129 : vector<32x64xf32>
    %131 = vector.broadcast %111 : vector<1x64xf32> to vector<32x64xf32>
    %132 = arith.mulf %130, %131 : vector<32x64xf32>
    %133 = vector.broadcast %112 : vector<1x64xf32> to vector<32x64xf32>
    %134 = arith.addf %132, %133 : vector<32x64xf32>
    %135 = vector.shape_cast %3 : vector<2x16x64xf32> to vector<32x64xf32>
    %136 = arith.addf %134, %135 : vector<32x64xf32>
    %cst_84 = arith.constant 0.000000e+00 : f32
    %137 = vector.broadcast %cst_84 : f32 to vector<32x64xf32>
    %138 = arith.maximumf %136, %137 : vector<32x64xf32>
    %139 = vector.shape_cast %138 : vector<32x64xf32> to vector<2x16x64xf32>
    %c0_85 = arith.constant 0 : index
    %c0_86 = arith.constant 0 : index
    %c0_87 = arith.constant 0 : index
    %140 = vector.load %arg9[%c0_85, %c0_86, %c0_87] : memref<2x16x64xf32, #tpu.memory_space<vmem>>, vector<2x16x64xf32>
    tpu.vector_store %arg9[%c0_85, %c0_86, %c0_87], %139 {strides = array<i32>} : memref<2x16x64xf32, #tpu.memory_space<vmem>>, vector<2x16x64xf32>,
    return
  }
}

</mosaic_0001>

<llo_original>
// kernel: residual_block.1
$region0: #{residual_block.1}
  #allocation0 [shape = 'u32[]', space=smem, size = 0x4, offset = 0x4, fixed_abs, tag = 'smem constant byte address 0x4 - core index']
  #allocation1 [shape = 'u32[144,128]{1,0:T(1,128)}', space=vmem, size = 0x12000, scoped, tag = 'internal scratch']
  #allocation2 [shape = 'f32[2,20,64]{2,1,0:T(8,128)}', space=vmem, size = 0x6000, scoped, tag = 'scratch operand']
  %s0 = inlined_call_operand.vmem [shape: f32[2,16,64], index: 0, kind: input, shape index: {}]
  %s1 = inlined_call_operand.vmem [shape: bf16[5,64,64], index: 1, kind: input, shape index: {}]
  %s2 = inlined_call_operand.vmem [shape: f32[1,64], index: 2, kind: input, shape index: {}]
  %s3 = inlined_call_operand.vmem [shape: f32[1,64], index: 3, kind: input, shape index: {}]
  %s4 = inlined_call_operand.vmem [shape: f32[1,64], index: 4, kind: input, shape index: {}]
  %s5 = inlined_call_operand.vmem [shape: bf16[5,64,64], index: 5, kind: input, shape index: {}]
  %s6 = inlined_call_operand.vmem [shape: f32[1,64], index: 6, kind: input, shape index: {}]
  %s7 = inlined_call_operand.vmem [shape: f32[1,64], index: 7, kind: input, shape index: {}]
  %s8 = inlined_call_operand.vmem [shape: f32[64,64], index: 8, kind: input, shape index: {}]
  %s9 = inlined_call_operand.vmem [shape: f32[2,16,64], index: 9, kind: output, shape index: {}]
  %s10 = sld [smem:[#allocation0]]
  $region46: #{residual_block.1} parent=0
    _
  %s12 = ssub.s32 1, %s10
  %s13 = scalar_select 0, %s12, %s10
  // Predicated region
  $region2: #{residual_block.1} parent=0 // pred_check
    _
  $region3: #{residual_block.1} parent=0 // pred_check_branch
    %15 = sbr.rel (0) target = $region5
  $region4: #{residual_block.1} parent=0 // pred_region
    _
  $region5: #{residual_block.1} parent=0 // pred_fallthru
    _
  // Predicated region
  $region6: #{residual_block.1} parent=0 // pred_check
    _
  $region7: #{residual_block.1} parent=0 // pred_check_branch
    %17 = sbr.rel (0) target = $region9
  $region8: #{residual_block.1} parent=0 // pred_region
    _
  $region9: #{residual_block.1} parent=0 // pred_fallthru
    _
  // Predicated region
  $region10: #{residual_block.1} parent=0 // pred_check
    _
  $region11: #{residual_block.1} parent=0 // pred_check_branch
    %19 = sbr.rel (0) target = $region13
  $region12: #{residual_block.1} parent=0 // pred_region
    _
  $region13: #{residual_block.1} parent=0 // pred_fallthru
    _
  // Predicated region
  $region14: #{residual_block.1} parent=0 // pred_check
    _
  $region15: #{residual_block.1} parent=0 // pred_check_branch
    %21 = sbr.rel (0) target = $region17
  $region16: #{residual_block.1} parent=0 // pred_region
    _
  $region17: #{residual_block.1} parent=0 // pred_fallthru
    _
  // Predicated region
  $region18: #{residual_block.1} parent=0 // pred_check
    _
  $region19: #{residual_block.1} parent=0 // pred_check_branch
    %23 = sbr.rel (0) target = $region21
  $region20: #{residual_block.1} parent=0 // pred_region
    _
  $region21: #{residual_block.1} parent=0 // pred_fallthru
    _
  // Predicated region
  $region22: #{residual_block.1} parent=0 // pred_check
    _
  $region23: #{residual_block.1} parent=0 // pred_check_branch
    %25 = sbr.rel (0) target = $region25
  $region24: #{residual_block.1} parent=0 // pred_region
    _
  $region25: #{residual_block.1} parent=0 // pred_fallthru
    _
  // Predicated region
  $region26: #{residual_block.1} parent=0 // pred_check
    _
  $region27: #{residual_block.1} parent=0 // pred_check_branch
    %27 = sbr.rel (0) target = $region29
  $region28: #{residual_block.1} parent=0 // pred_region
    _
  $region29: #{residual_block.1} parent=0 // pred_fallthru
    _
  // Predicated region
  $region30: #{residual_block.1} parent=0 // pred_check
    _
  $region31: #{residual_block.1} parent=0 // pred_check_branch
    %29 = sbr.rel (0) target = $region33
  $region32: #{residual_block.1} parent=0 // pred_region
    _
  $region33: #{residual_block.1} parent=0 // pred_fallthru
    _
  // Predicated region
  $region34: #{residual_block.1} parent=0 // pred_check
    _
  $region35: #{residual_block.1} parent=0 // pred_check_branch
    %31 = sbr.rel (0) target = $region37
  $region36: #{residual_block.1} parent=0 // pred_region
    _
  $region37: #{residual_block.1} parent=0 // pred_fallthru
    _
  %vm33 = vcmask 517120
  %34 = vst.msk [vmem:[#allocation2] sm:$0x3] %vm33, 0.0
  %35 = vst.msk [vmem:[#allocation2 + $0x18] sm:$0x3] %vm33, 0.0
  %36 = vst.msk [vmem:[#allocation2 + $0x12] sm:$0x3] %vm33, 0.0
  %37 = vst.msk [vmem:[#allocation2 + $0x2a] sm:$0x3] %vm33, 0.0
  %v38 = vld [vmem:[%s0] sm:$0xff]
  %v39 = vld [vmem:[%s0 + $0x8] sm:$0xff]
  %v40 = vld [vmem:[%s0 + $0x10] sm:$0xff]
  %v41 = vld [vmem:[%s0 + $0x18] sm:$0xff]
  %v42 = vld [vmem:[%s8] sm:$0xff]
  %v43 = vld [vmem:[%s8 + $0x8] sm:$0xff]
  %v44 = vld [vmem:[%s8 + $0x10] sm:$0xff]
  %v45 = vld [vmem:[%s8 + $0x18] sm:$0xff]
  %v46 = vld [vmem:[%s8 + $0x20] sm:$0xff]
  %v47 = vld [vmem:[%s8 + $0x28] sm:$0xff]
  %v48 = vld [vmem:[%s8 + $0x30] sm:$0xff]
  %v49 = vld [vmem:[%s8 + $0x38] sm:$0xff]
  %vm50 = vcmask 523264
  %51 = vst.msk [vmem:[#allocation2 + $0x2] sm:$0xff] %vm50, %v38
  %52 = vst.msk [vmem:[#allocation2 + $0xa] sm:$0xff] %vm50, %v39
  %53 = vst.msk [vmem:[#allocation2 + $0x1a] sm:$0xff] %vm50, %v40
  %54 = vst.msk [vmem:[#allocation2 + $0x22] sm:$0xff] %vm50, %v41
  %v55 = vld [vmem:[#allocation2] sm:$0xff]
  %v56 = vld [vmem:[#allocation2 + $0x8] sm:$0xff]
  %v57 = vld [vmem:[#allocation2 + $0x10] sm:$0xf]
  %v58 = vld [vmem:[#allocation2 + $0x18] sm:$0xff]
  %v59 = vld [vmem:[#allocation2 + $0x20] sm:$0xff]
  %v60 = vld [vmem:[#allocation2 + $0x28] sm:$0xf]
  %v61 = vpack.c.bf16 %v56, %v55
  %v62 = vpack.c.bf16 %v59, %v58
  %v63 = vld [vmem:[%s1] sm:$0xf]
  %v64 = vld [vmem:[%s1 + $0x4] sm:$0xf]
  %v65 = vld [vmem:[%s1 + $0x8] sm:$0xf]
  %v66 = vld [vmem:[%s1 + $0xc] sm:$0xf]
  %v67 = vld [vmem:[%s1 + $0x10] sm:$0xf]
  %v68 = vld [vmem:[%s1 + $0x14] sm:$0xf]
  %v69 = vld [vmem:[%s1 + $0x18] sm:$0xf]
  %v70 = vld [vmem:[%s1 + $0x1c] sm:$0xf]
  %vm77 = vcmask 1046528
  %v78 = vrot.slane %v55, 1
  %v79 = vrot.slane %v56, 1
  %v80 = vsel %vm77, %v78, %v79
  %v81 = vrot.slane %v57, 1
  %v82 = vsel %vm77, %v79, %v81
  %v83 = vrot.slane %v58, 1
  %v84 = vrot.slane %v59, 1
  %v85 = vsel %vm77, %v83, %v84
  %v86 = vrot.slane %v60, 1
  %v87 = vsel %vm77, %v84, %v86
  %v92 = vpack.c.bf16 %v82, %v80
  %v93 = vpack.c.bf16 %v87, %v85
  %s94 = scalar_lea.vmem %s1, 32
  %v95 = vld [vmem:[%s94] sm:$0xf]
  %v96 = vld [vmem:[%s94 + $0x4] sm:$0xf]
  %v97 = vld [vmem:[%s94 + $0x8] sm:$0xf]
  %v98 = vld [vmem:[%s94 + $0xc] sm:$0xf]
  %v99 = vld [vmem:[%s94 + $0x10] sm:$0xf]
  %v100 = vld [vmem:[%s94 + $0x14] sm:$0xf]
  %v101 = vld [vmem:[%s94 + $0x18] sm:$0xf]
  %v102 = vld [vmem:[%s94 + $0x1c] sm:$0xf]
  %v111 = vunpack.c.l.b16 %v95
  %v112 = vunpack.c.l.b16 %v96
  %v113 = vunpack.c.l.b16 %v97
  %v114 = vunpack.c.l.b16 %v98
  %v115 = vunpack.c.l.b16 %v99
  %v116 = vunpack.c.l.b16 %v100
  %v117 = vunpack.c.l.b16 %v101
  %v118 = vunpack.c.l.b16 %v102
  %v119 = vpack.c.b16 %v112, %v111
  %v120 = vpack.c.b16 %v114, %v113
  %v121 = vpack.c.b16 %v116, %v115
  %v122 = vpack.c.b16 %v118, %v117
  %v128 = vsel %vm50, %v92, 0
  %v131 = vsel %vm50, %v93, 0
  %133 = vmatprep.subr.bf16.mxu0 0
  %134 = vmatpush1.bf16.msra.mxu0 0
  %135 = vmatprep.subr.bf16.mxu0 0
  %136 = vmatpush1.bf16.msra.mxu0 0
  %137 = vmatprep.subr.bf16.mxu0 0
  %138 = vmatpush1.bf16.msra.mxu0 0
  %139 = vmatprep.subr.bf16.mxu0 0
  %140 = vmatpush1.bf16.msra.mxu0 0
  %141 = vmatprep.subr.bf16.mxu0 0
  %142 = vmatpush1.bf16.msra.mxu0 %v122
  %143 = vmatprep.subr.bf16.mxu0 0
  %144 = vmatpush1.bf16.msra.mxu0 %v121
  %145 = vmatprep.subr.bf16.mxu0 0
  %146 = vmatpush1.bf16.msra.mxu0 %v120
  %147 = vmatprep.subr.bf16.mxu0 0
  %148 = vmatpush1.bf16.msra.mxu0 %v119
  %149 = vmatprep.subr.bf16.mxu0 0
  %150 = vmatpush2.bf16.msra.mxu0 0
  %151 = vmatprep.subr.bf16.mxu0 0
  %152 = vmatpush2.bf16.msra.mxu0 0
  %153 = vmatprep.subr.bf16.mxu0 0
  %154 = vmatpush2.bf16.msra.mxu0 0
  %155 = vmatprep.subr.bf16.mxu0 0
  %156 = vmatpush2.bf16.msra.mxu0 0
  %157 = vmatprep.subr.bf16.mxu0 0
  %158 = vmatpush2.bf16.msra.mxu0 0
  %159 = vmatprep.subr.bf16.mxu0 0
  %160 = vmatpush2.bf16.msra.mxu0 0
  %161 = vmatprep.subr.bf16.mxu0 0
  %162 = vmatpush2.bf16.msra.mxu0 0
  %163 = vmatprep.subr.bf16.mxu0 0
  %164 = vmatpush2.bf16.msra.mxu0 0
  %165 = vmatprep.mubr.bf16.mxu0 0
  %166 = vmatmul.mubr.bf16.gmra.mxu0 %v128
  %v167 = vpop.f32.mrf.mxu0
  %v168 = vadd.f32 0.0, %v167
  %v169 = vpop.f32.mrf.mxu0
  %v170 = vpop.f32.mrf.mxu0
  %v171 = vadd.f32 0.0, %v170
  %v172 = vpop.f32.mrf.mxu0
  %173 = vmatprep.mubr.bf16.mxu0 0
  %174 = vmatmul.mubr.bf16.gmra.mxu0 %v131
  %v175 = vpop.f32.mrf.mxu0
  %v176 = vadd.f32 0.0, %v175
  %v177 = vpop.f32.mrf.mxu0
  %v178 = vpop.f32.mrf.mxu0
  %v179 = vadd.f32 0.0, %v178
  %v180 = vpop.f32.mrf.mxu0
  %181 = vdwg.mxu0
  %v190 = vunpack.c.l.b16 %v63
  %v191 = vunpack.c.l.b16 %v64
  %v192 = vunpack.c.l.b16 %v65
  %v193 = vunpack.c.l.b16 %v66
  %v194 = vunpack.c.l.b16 %v67
  %v195 = vunpack.c.l.b16 %v68
  %v196 = vunpack.c.l.b16 %v69
  %v197 = vunpack.c.l.b16 %v70
  %v198 = vpack.c.b16 %v191, %v190
  %v199 = vpack.c.b16 %v193, %v192
  %v200 = vpack.c.b16 %v195, %v194
  %v201 = vpack.c.b16 %v197, %v196
  %v207 = vsel %vm50, %v61, 0
  %v210 = vsel %vm50, %v62, 0
  %212 = vmatprep.subr.bf16.mxu0 0
  %213 = vmatpush1.bf16.msra.mxu0 0
  %214 = vmatprep.subr.bf16.mxu0 0
  %215 = vmatpush1.bf16.msra.mxu0 0
  %216 = vmatprep.subr.bf16.mxu0 0
  %217 = vmatpush1.bf16.msra.mxu0 0
  %218 = vmatprep.subr.bf16.mxu0 0
  %219 = vmatpush1.bf16.msra.mxu0 0
  %220 = vmatprep.subr.bf16.mxu0 0
  %221 = vmatpush1.bf16.msra.mxu0 %v201
  %222 = vmatprep.subr.bf16.mxu0 0
  %223 = vmatpush1.bf16.msra.mxu0 %v200
  %224 = vmatprep.subr.bf16.mxu0 0
  %225 = vmatpush1.bf16.msra.mxu0 %v199
  %226 = vmatprep.subr.bf16.mxu0 0
  %227 = vmatpush1.bf16.msra.mxu0 %v198
  %228 = vmatprep.subr.bf16.mxu0 0
  %229 = vmatpush2.bf16.msra.mxu0 0
  %230 = vmatprep.subr.bf16.mxu0 0
  %231 = vmatpush2.bf16.msra.mxu0 0
  %232 = vmatprep.subr.bf16.mxu0 0
  %233 = vmatpush2.bf16.msra.mxu0 0
  %234 = vmatprep.subr.bf16.mxu0 0
  %235 = vmatpush2.bf16.msra.mxu0 0
  %236 = vmatprep.subr.bf16.mxu0 0
  %237 = vmatpush2.bf16.msra.mxu0 0
  %238 = vmatprep.subr.bf16.mxu0 0
  %239 = vmatpush2.bf16.msra.mxu0 0
  %240 = vmatprep.subr.bf16.mxu0 0
  %241 = vmatpush2.bf16.msra.mxu0 0
  %242 = vmatprep.subr.bf16.mxu0 0
  %243 = vmatpush2.bf16.msra.mxu0 0
  %244 = vmatprep.mubr.bf16.mxu0 0
  %245 = vmatmul.mubr.bf16.gmra.mxu0 %v207
  %v246 = vpop.f32.mrf.mxu0
  %v247 = vadd.f32 %v168, %v246
  %v248 = vpop.f32.mrf.mxu0
  %v249 = vpop.f32.mrf.mxu0
  %v250 = vadd.f32 %v171, %v249
  %v251 = vpop.f32.mrf.mxu0
  %252 = vmatprep.mubr.bf16.mxu0 0
  %253 = vmatmul.mubr.bf16.gmra.mxu0 %v210
  %v254 = vpop.f32.mrf.mxu0
  %v255 = vadd.f32 %v176, %v254
  %v256 = vpop.f32.mrf.mxu0
  %v257 = vpop.f32.mrf.mxu0
  %v258 = vadd.f32 %v179, %v257
  %v259 = vpop.f32.mrf.mxu0
  %260 = vdwg.mxu0
  %vm261 = vcmask 1045504
  %v262 = vrot.slane %v55, 2
  %v263 = vrot.slane %v56, 2
  %v264 = vsel %vm261, %v262, %v263
  %v265 = vrot.slane %v57, 2
  %v266 = vsel %vm261, %v263, %v265
  %v267 = vrot.slane %v58, 2
  %v268 = vrot.slane %v59, 2
  %v269 = vsel %vm261, %v267, %v268
  %v270 = vrot.slane %v60, 2
  %v271 = vsel %vm261, %v268, %v270
  %v276 = vpack.c.bf16 %v266, %v264
  %v277 = vpack.c.bf16 %v271, %v269
  %s278 = scalar_lea.vmem %s1, 64
  %v279 = vld [vmem:[%s278] sm:$0xf]
  %v280 = vld [vmem:[%s278 + $0x4] sm:$0xf]
  %v281 = vld [vmem:[%s278 + $0x8] sm:$0xf]
  %v282 = vld [vmem:[%s278 + $0xc] sm:$0xf]
  %v283 = vld [vmem:[%s278 + $0x10] sm:$0xf]
  %v284 = vld [vmem:[%s278 + $0x14] sm:$0xf]
  %v285 = vld [vmem:[%s278 + $0x18] sm:$0xf]
  %v286 = vld [vmem:[%s278 + $0x1c] sm:$0xf]
  %v295 = vunpack.c.l.b16 %v279
  %v296 = vunpack.c.l.b16 %v280
  %v297 = vunpack.c.l.b16 %v281
  %v298 = vunpack.c.l.b16 %v282
  %v299 = vunpack.c.l.b16 %v283
  %v300 = vunpack.c.l.b16 %v284
  %v301 = vunpack.c.l.b16 %v285
  %v302 = vunpack.c.l.b16 %v286
  %v303 = vpack.c.b16 %v296, %v295
  %v304 = vpack.c.b16 %v298, %v297
  %v305 = vpack.c.b16 %v300, %v299
  %v306 = vpack.c.b16 %v302, %v301
  %v312 = vsel %vm50, %v276, 0
  %v315 = vsel %vm50, %v277, 0
  %317 = vmatprep.subr.bf16.mxu0 0
  %318 = vmatpush1.bf16.msra.mxu0 0
  %319 = vmatprep.subr.bf16.mxu0 0
  %320 = vmatpush1.bf16.msra.mxu0 0
  %321 = vmatprep.subr.bf16.mxu0 0
  %322 = vmatpush1.bf16.msra.mxu0 0
  %323 = vmatprep.subr.bf16.mxu0 0
  %324 = vmatpush1.bf16.msra.mxu0 0
  %325 = vmatprep.subr.bf16.mxu0 0
  %326 = vmatpush1.bf16.msra.mxu0 %v306
  %327 = vmatprep.subr.bf16.mxu0 0
  %328 = vmatpush1.bf16.msra.mxu0 %v305
  %329 = vmatprep.subr.bf16.mxu0 0
  %330 = vmatpush1.bf16.msra.mxu0 %v304
  %331 = vmatprep.subr.bf16.mxu0 0
  %332 = vmatpush1.bf16.msra.mxu0 %v303
  %333 = vmatprep.subr.bf16.mxu0 0
  %334 = vmatpush2.bf16.msra.mxu0 0
  %335 = vmatprep.subr.bf16.mxu0 0
  %336 = vmatpush2.bf16.msra.mxu0 0
  %337 = vmatprep.subr.bf16.mxu0 0
  %338 = vmatpush2.bf16.msra.mxu0 0
  %339 = vmatprep.subr.bf16.mxu0 0
  %340 = vmatpush2.bf16.msra.mxu0 0
  %341 = vmatprep.subr.bf16.mxu0 0
  %342 = vmatpush2.bf16.msra.mxu0 0
  %343 = vmatprep.subr.bf16.mxu0 0
  %344 = vmatpush2.bf16.msra.mxu0 0
  %345 = vmatprep.subr.bf16.mxu0 0
  %346 = vmatpush2.bf16.msra.mxu0 0
  %347 = vmatprep.subr.bf16.mxu0 0
  %348 = vmatpush2.bf16.msra.mxu0 0
  %349 = vmatprep.mubr.bf16.mxu0 0
  %350 = vmatmul.mubr.bf16.gmra.mxu0 %v312
  %v351 = vpop.f32.mrf.mxu0
  %v352 = vadd.f32 0.0, %v351
  %v353 = vpop.f32.mrf.mxu0
  %v354 = vpop.f32.mrf.mxu0
  %v355 = vadd.f32 0.0, %v354
  %v356 = vpop.f32.mrf.mxu0
  %357 = vmatprep.mubr.bf16.mxu0 0
  %358 = vmatmul.mubr.bf16.gmra.mxu0 %v315
  %v359 = vpop.f32.mrf.mxu0
  %v360 = vadd.f32 0.0, %v359
  %v361 = vpop.f32.mrf.mxu0
  %v362 = vpop.f32.mrf.mxu0
  %v363 = vadd.f32 0.0, %v362
  %v364 = vpop.f32.mrf.mxu0
  %365 = vdwg.mxu0
  %v366 = vadd.f32 %v247, %v352
  %v367 = vadd.f32 %v250, %v355
  %v368 = vadd.f32 %v255, %v360
  %v369 = vadd.f32 %v258, %v363
  %vm370 = vcmask 1044480
  %v371 = vrot.slane %v55, 3
  %v372 = vrot.slane %v56, 3
  %v373 = vsel %vm370, %v371, %v372
  %v374 = vrot.slane %v57, 3
  %v375 = vsel %vm370, %v372, %v374
  %v376 = vrot.slane %v58, 3
  %v377 = vrot.slane %v59, 3
  %v378 = vsel %vm370, %v376, %v377
  %v379 = vrot.slane %v60, 3
  %v380 = vsel %vm370, %v377, %v379
  %v385 = vpack.c.bf16 %v375, %v373
  %v386 = vpack.c.bf16 %v380, %v378
  %s387 = scalar_lea.vmem %s1, 96
  %v388 = vld [vmem:[%s387] sm:$0xf]
  %v389 = vld [vmem:[%s387 + $0x4] sm:$0xf]
  %v390 = vld [vmem:[%s387 + $0x8] sm:$0xf]
  %v391 = vld [vmem:[%s387 + $0xc] sm:$0xf]
  %v392 = vld [vmem:[%s387 + $0x10] sm:$0xf]
  %v393 = vld [vmem:[%s387 + $0x14] sm:$0xf]
  %v394 = vld [vmem:[%s387 + $0x18] sm:$0xf]
  %v395 = vld [vmem:[%s387 + $0x1c] sm:$0xf]
  %v404 = vunpack.c.l.b16 %v388
  %v405 = vunpack.c.l.b16 %v389
  %v406 = vunpack.c.l.b16 %v390
  %v407 = vunpack.c.l.b16 %v391
  %v408 = vunpack.c.l.b16 %v392
  %v409 = vunpack.c.l.b16 %v393
  %v410 = vunpack.c.l.b16 %v394
  %v411 = vunpack.c.l.b16 %v395
  %v412 = vpack.c.b16 %v405, %v404
  %v413 = vpack.c.b16 %v407, %v406
  %v414 = vpack.c.b16 %v409, %v408
  %v415 = vpack.c.b16 %v411, %v410
  %v421 = vsel %vm50, %v385, 0
  %v424 = vsel %vm50, %v386, 0
  %426 = vmatprep.subr.bf16.mxu0 0
  %427 = vmatpush1.bf16.msra.mxu0 0
  %428 = vmatprep.subr.bf16.mxu0 0
  %429 = vmatpush1.bf16.msra.mxu0 0
  %430 = vmatprep.subr.bf16.mxu0 0
  %431 = vmatpush1.bf16.msra.mxu0 0
  %432 = vmatprep.subr.bf16.mxu0 0
  %433 = vmatpush1.bf16.msra.mxu0 0
  %434 = vmatprep.subr.bf16.mxu0 0
  %435 = vmatpush1.bf16.msra.mxu0 %v415
  %436 = vmatprep.subr.bf16.mxu0 0
  %437 = vmatpush1.bf16.msra.mxu0 %v414
  %438 = vmatprep.subr.bf16.mxu0 0
  %439 = vmatpush1.bf16.msra.mxu0 %v413
  %440 = vmatprep.subr.bf16.mxu0 0
  %441 = vmatpush1.bf16.msra.mxu0 %v412
  %442 = vmatprep.subr.bf16.mxu0 0
  %443 = vmatpush2.bf16.msra.mxu0 0
  %444 = vmatprep.subr.bf16.mxu0 0
  %445 = vmatpush2.bf16.msra.mxu0 0
  %446 = vmatprep.subr.bf16.mxu0 0
  %447 = vmatpush2.bf16.msra.mxu0 0
  %448 = vmatprep.subr.bf16.mxu0 0
  %449 = vmatpush2.bf16.msra.mxu0 0
  %450 = vmatprep.subr.bf16.mxu0 0
  %451 = vmatpush2.bf16.msra.mxu0 0
  %452 = vmatprep.subr.bf16.mxu0 0
  %453 = vmatpush2.bf16.msra.mxu0 0
  %454 = vmatprep.subr.bf16.mxu0 0
  %455 = vmatpush2.bf16.msra.mxu0 0
  %456 = vmatprep.subr.bf16.mxu0 0
  %457 = vmatpush2.bf16.msra.mxu0 0
  %458 = vmatprep.mubr.bf16.mxu0 0
  %459 = vmatmul.mubr.bf16.gmra.mxu0 %v421
  %v460 = vpop.f32.mrf.mxu0
  %v461 = vadd.f32 0.0, %v460
  %v462 = vpop.f32.mrf.mxu0
  %v463 = vpop.f32.mrf.mxu0
  %v464 = vadd.f32 0.0, %v463
  %v465 = vpop.f32.mrf.mxu0
  %466 = vmatprep.mubr.bf16.mxu0 0
  %467 = vmatmul.mubr.bf16.gmra.mxu0 %v424
  %v468 = vpop.f32.mrf.mxu0
  %v469 = vadd.f32 0.0, %v468
  %v470 = vpop.f32.mrf.mxu0
  %v471 = vpop.f32.mrf.mxu0
  %v472 = vadd.f32 0.0, %v471
  %v473 = vpop.f32.mrf.mxu0
  %474 = vdwg.mxu0
  %v475 = vadd.f32 %v366, %v461
  %v476 = vadd.f32 %v367, %v464
  %v477 = vadd.f32 %v368, %v469
  %v478 = vadd.f32 %v369, %v472
  %vm479 = vcmask 1043456
  %v480 = vrot.slane %v55, 4
  %v481 = vrot.slane %v56, 4
  %v482 = vsel %vm479, %v480, %v481
  %v483 = vrot.slane %v57, 4
  %v484 = vsel %vm479, %v481, %v483
  %v485 = vrot.slane %v58, 4
  %v486 = vrot.slane %v59, 4
  %v487 = vsel %vm479, %v485, %v486
  %v488 = vrot.slane %v60, 4
  %v489 = vsel %vm479, %v486, %v488
  %v494 = vpack.c.bf16 %v484, %v482
  %v495 = vpack.c.bf16 %v489, %v487
  %s496 = scalar_lea.vmem %s1, 128
  %v497 = vld [vmem:[%s496] sm:$0xf]
  %v498 = vld [vmem:[%s496 + $0x4] sm:$0xf]
  %v499 = vld [vmem:[%s496 + $0x8] sm:$0xf]
  %v500 = vld [vmem:[%s496 + $0xc] sm:$0xf]
  %v501 = vld [vmem:[%s496 + $0x10] sm:$0xf]
  %v502 = vld [vmem:[%s496 + $0x14] sm:$0xf]
  %v503 = vld [vmem:[%s496 + $0x18] sm:$0xf]
  %v504 = vld [vmem:[%s496 + $0x1c] sm:$0xf]
  %v513 = vunpack.c.l.b16 %v497
  %v514 = vunpack.c.l.b16 %v498
  %v515 = vunpack.c.l.b16 %v499
  %v516 = vunpack.c.l.b16 %v500
  %v517 = vunpack.c.l.b16 %v501
  %v518 = vunpack.c.l.b16 %v502
  %v519 = vunpack.c.l.b16 %v503
  %v520 = vunpack.c.l.b16 %v504
  %v521 = vpack.c.b16 %v514, %v513
  %v522 = vpack.c.b16 %v516, %v515
  %v523 = vpack.c.b16 %v518, %v517
  %v524 = vpack.c.b16 %v520, %v519
  %v530 = vsel %vm50, %v494, 0
  %v533 = vsel %vm50, %v495, 0
  %535 = vmatprep.subr.bf16.mxu0 0
  %536 = vmatpush1.bf16.msra.mxu0 0
  %537 = vmatprep.subr.bf16.mxu0 0
  %538 = vmatpush1.bf16.msra.mxu0 0
  %539 = vmatprep.subr.bf16.mxu0 0
  %540 = vmatpush1.bf16.msra.mxu0 0
  %541 = vmatprep.subr.bf16.mxu0 0
  %542 = vmatpush1.bf16.msra.mxu0 0
  %543 = vmatprep.subr.bf16.mxu0 0
  %544 = vmatpush1.bf16.msra.mxu0 %v524
  %545 = vmatprep.subr.bf16.mxu0 0
  %546 = vmatpush1.bf16.msra.mxu0 %v523
  %547 = vmatprep.subr.bf16.mxu0 0
  %548 = vmatpush1.bf16.msra.mxu0 %v522
  %549 = vmatprep.subr.bf16.mxu0 0
  %550 = vmatpush1.bf16.msra.mxu0 %v521
  %551 = vmatprep.subr.bf16.mxu0 0
  %552 = vmatpush2.bf16.msra.mxu0 0
  %553 = vmatprep.subr.bf16.mxu0 0
  %554 = vmatpush2.bf16.msra.mxu0 0
  %555 = vmatprep.subr.bf16.mxu0 0
  %556 = vmatpush2.bf16.msra.mxu0 0
  %557 = vmatprep.subr.bf16.mxu0 0
  %558 = vmatpush2.bf16.msra.mxu0 0
  %559 = vmatprep.subr.bf16.mxu0 0
  %560 = vmatpush2.bf16.msra.mxu0 0
  %561 = vmatprep.subr.bf16.mxu0 0
  %562 = vmatpush2.bf16.msra.mxu0 0
  %563 = vmatprep.subr.bf16.mxu0 0
  %564 = vmatpush2.bf16.msra.mxu0 0
  %565 = vmatprep.subr.bf16.mxu0 0
  %566 = vmatpush2.bf16.msra.mxu0 0
  %567 = vmatprep.mubr.bf16.mxu0 0
  %568 = vmatmul.mubr.bf16.gmra.mxu0 %v530
  %v569 = vpop.f32.mrf.mxu0
  %v570 = vadd.f32 0.0, %v569
  %v571 = vpop.f32.mrf.mxu0
  %v572 = vpop.f32.mrf.mxu0
  %v573 = vadd.f32 0.0, %v572
  %v574 = vpop.f32.mrf.mxu0
  %575 = vmatprep.mubr.bf16.mxu0 0
  %576 = vmatmul.mubr.bf16.gmra.mxu0 %v533
  %v577 = vpop.f32.mrf.mxu0
  %v578 = vadd.f32 0.0, %v577
  %v579 = vpop.f32.mrf.mxu0
  %v580 = vpop.f32.mrf.mxu0
  %v581 = vadd.f32 0.0, %v580
  %v582 = vpop.f32.mrf.mxu0
  %583 = vdwg.mxu0
  %v584 = vadd.f32 %v475, %v570
  %v585 = vadd.f32 %v476, %v573
  %v586 = vadd.f32 %v477, %v578
  %v587 = vadd.f32 %v478, %v581
  %v588 = vld [vmem:[%s2] sm:$0x1]
  %v590 = vlaneseq
  %v591 = vshrl.u32 %v590, 7
  %v592 = vsub.s32 0, %v591
  %v593 = vrot.slane %v588, %v592
  %v595 = vadd.f32 %v584, %v593
  %v596 = vadd.f32 %v585, %v593
  %v597 = vadd.f32 %v586, %v593
  %v598 = vadd.f32 %v587, %v593
  %v599 = vmax.f32 %v595, 0.0
  %v600 = vmax.f32 %v596, 0.0
  %v601 = vmax.f32 %v597, 0.0
  %v602 = vmax.f32 %v598, 0.0
  %v603 = vld [vmem:[%s3] sm:$0x1]
  %v604 = vld [vmem:[%s4] sm:$0x1]
  %v606 = vsel %vm50, %v599, 0
  %v609 = vsel %vm50, %v600, 0
  %v612 = vsel %vm50, %v601, 0
  %v615 = vsel %vm50, %v602, 0
  %617 = vmatprep.subr.mxu0 0.0
  %618 = vmatpush1.msra.mxu0 0.0
  %619 = vmatprep.subr.mxu0 0.0
  %620 = vmatpush1.msra.mxu0 0.0
  %621 = vmatprep.subr.mxu0 0.0
  %622 = vmatpush1.msra.mxu0 0.0
  %623 = vmatprep.subr.mxu0 0.0
  %624 = vmatpush1.msra.mxu0 0.0
  %625 = vmatprep.subr.mxu0 0.0
  %626 = vmatpush1.msra.mxu0 0.0
  %627 = vmatprep.subr.mxu0 0.0
  %628 = vmatpush1.msra.mxu0 0.0
  %629 = vmatprep.subr.mxu0 0.0
  %630 = vmatpush1.msra.mxu0 0.0
  %631 = vmatprep.subr.mxu0 0.0
  %632 = vmatpush1.msra.mxu0 0.0
  %633 = vmatprep.subr.mxu0 0.0
  %v634 = vand.u32 %v49, 4294901760
  %635 = vmatpush1.msra.mxu0 %v634
  %636 = vmatprep.subr.mxu0 0.0
  %v637 = vand.u32 %v48, 4294901760
  %638 = vmatpush1.msra.mxu0 %v637
  %639 = vmatprep.subr.mxu0 0.0
  %v640 = vand.u32 %v47, 4294901760
  %641 = vmatpush1.msra.mxu0 %v640
  %642 = vmatprep.subr.mxu0 0.0
  %v643 = vand.u32 %v46, 4294901760
  %644 = vmatpush1.msra.mxu0 %v643
  %645 = vmatprep.subr.mxu0 0.0
  %v646 = vand.u32 %v45, 4294901760
  %647 = vmatpush1.msra.mxu0 %v646
  %648 = vmatprep.subr.mxu0 0.0
  %v649 = vand.u32 %v44, 4294901760
  %650 = vmatpush1.msra.mxu0 %v649
  %651 = vmatprep.subr.mxu0 0.0
  %v652 = vand.u32 %v43, 4294901760
  %653 = vmatpush1.msra.mxu0 %v652
  %654 = vmatprep.subr.mxu0 0.0
  %v655 = vand.u32 %v42, 4294901760
  %656 = vmatpush1.msra.mxu0 %v655
  %657 = vmatprep.subr.mxu0 0.0
  %658 = vmatpush2.msra.mxu0 0.0
  %659 = vmatprep.subr.mxu0 0.0
  %660 = vmatpush2.msra.mxu0 0.0
  %661 = vmatprep.subr.mxu0 0.0
  %662 = vmatpush2.msra.mxu0 0.0
  %663 = vmatprep.subr.mxu0 0.0
  %664 = vmatpush2.msra.mxu0 0.0
  %665 = vmatprep.subr.mxu0 0.0
  %666 = vmatpush2.msra.mxu0 0.0
  %667 = vmatprep.subr.mxu0 0.0
  %668 = vmatpush2.msra.mxu0 0.0
  %669 = vmatprep.subr.mxu0 0.0
  %670 = vmatpush2.msra.mxu0 0.0
  %671 = vmatprep.subr.mxu0 0.0
  %672 = vmatpush2.msra.mxu0 0.0
  %673 = vmatprep.subr.mxu0 0.0
  %674 = vmatpush2.msra.mxu0 0.0
  %675 = vmatprep.subr.mxu0 0.0
  %676 = vmatpush2.msra.mxu0 0.0
  %677 = vmatprep.subr.mxu0 0.0
  %678 = vmatpush2.msra.mxu0 0.0
  %679 = vmatprep.subr.mxu0 0.0
  %680 = vmatpush2.msra.mxu0 0.0
  %681 = vmatprep.subr.mxu0 0.0
  %682 = vmatpush2.msra.mxu0 0.0
  %683 = vmatprep.subr.mxu0 0.0
  %684 = vmatpush2.msra.mxu0 0.0
  %685 = vmatprep.subr.mxu0 0.0
  %686 = vmatpush2.msra.mxu0 0.0
  %687 = vmatprep.subr.mxu0 0.0
  %688 = vmatpush2.msra.mxu0 0.0
  %689 = vmatprep.mubr.f32.mxu0 0.0
  %v690 = vand.u32 %v606, 4294901760
  %v691 = vsub.f32 %v606, %v690
  %v692 = vand.u32 %v691, 4294901760
  %v693 = vsub.f32 %v691, %v692
  %v694 = vand.u32 %v693, 4294901760
  %695 = vmatmul.mubr.f32.gmra.mxu0 %v694
  %v696 = vpop.f32.mrf.mxu0
  %v697 = vadd.f32 0.0, %v696
  %v698 = vpop.f32.mrf.mxu0
  %699 = vmatprep.mubr.f32.mxu0 0.0
  %v700 = vand.u32 %v609, 4294901760
  %v701 = vsub.f32 %v609, %v700
  %v702 = vand.u32 %v701, 4294901760
  %v703 = vsub.f32 %v701, %v702
  %v704 = vand.u32 %v703, 4294901760
  %705 = vmatmul.mubr.f32.gmra.mxu0 %v704
  %v706 = vpop.f32.mrf.mxu0
  %v707 = vadd.f32 0.0, %v706
  %v708 = vpop.f32.mrf.mxu0
  %709 = vmatprep.mubr.f32.mxu0 0.0
  %v710 = vand.u32 %v612, 4294901760
  %v711 = vsub.f32 %v612, %v710
  %v712 = vand.u32 %v711, 4294901760
  %v713 = vsub.f32 %v711, %v712
  %v714 = vand.u32 %v713, 4294901760
  %715 = vmatmul.mubr.f32.gmra.mxu0 %v714
  %v716 = vpop.f32.mrf.mxu0
  %v717 = vadd.f32 0.0, %v716
  %v718 = vpop.f32.mrf.mxu0
  %719 = vmatprep.mubr.f32.mxu0 0.0
  %v720 = vand.u32 %v615, 4294901760
  %v721 = vsub.f32 %v615, %v720
  %v722 = vand.u32 %v721, 4294901760
  %v723 = vsub.f32 %v721, %v722
  %v724 = vand.u32 %v723, 4294901760
  %725 = vmatmul.mubr.f32.gmra.mxu0 %v724
  %v726 = vpop.f32.mrf.mxu0
  %v727 = vadd.f32 0.0, %v726
  %v728 = vpop.f32.mrf.mxu0
  %729 = vdwg.mxu0
  %730 = vmatprep.subr.mxu0 0.0
  %731 = vmatpush1.msra.mxu0 0.0
  %732 = vmatprep.subr.mxu0 0.0
  %733 = vmatpush1.msra.mxu0 0.0
  %734 = vmatprep.subr.mxu0 0.0
  %735 = vmatpush1.msra.mxu0 0.0
  %736 = vmatprep.subr.mxu0 0.0
  %737 = vmatpush1.msra.mxu0 0.0
  %738 = vmatprep.subr.mxu0 0.0
  %739 = vmatpush1.msra.mxu0 0.0
  %740 = vmatprep.subr.mxu0 0.0
  %741 = vmatpush1.msra.mxu0 0.0
  %742 = vmatprep.subr.mxu0 0.0
  %743 = vmatpush1.msra.mxu0 0.0
  %744 = vmatprep.subr.mxu0 0.0
  %745 = vmatpush1.msra.mxu0 0.0
  %746 = vmatprep.subr.mxu0 0.0
  %v747 = vand.u32 %v49, 4294901760
  %v748 = vsub.f32 %v49, %v747
  %v749 = vand.u32 %v748, 4294901760
  %v750 = vsub.f32 %v748, %v749
  %v751 = vand.u32 %v750, 4294901760
  %752 = vmatpush1.msra.mxu0 %v751
  %753 = vmatprep.subr.mxu0 0.0
  %v754 = vand.u32 %v48, 4294901760
  %v755 = vsub.f32 %v48, %v754
  %v756 = vand.u32 %v755, 4294901760
  %v757 = vsub.f32 %v755, %v756
  %v758 = vand.u32 %v757, 4294901760
  %759 = vmatpush1.msra.mxu0 %v758
  %760 = vmatprep.subr.mxu0 0.0
  %v761 = vand.u32 %v47, 4294901760
  %v762 = vsub.f32 %v47, %v761
  %v763 = vand.u32 %v762, 4294901760
  %v764 = vsub.f32 %v762, %v763
  %v765 = vand.u32 %v764, 4294901760
  %766 = vmatpush1.msra.mxu0 %v765
  %767 = vmatprep.subr.mxu0 0.0
  %v768 = vand.u32 %v46, 4294901760
  %v769 = vsub.f32 %v46, %v768
  %v770 = vand.u32 %v769, 4294901760
  %v771 = vsub.f32 %v769, %v770
  %v772 = vand.u32 %v771, 4294901760
  %773 = vmatpush1.msra.mxu0 %v772
  %774 = vmatprep.subr.mxu0 0.0
  %v775 = vand.u32 %v45, 4294901760
  %v776 = vsub.f32 %v45, %v775
  %v777 = vand.u32 %v776, 4294901760
  %v778 = vsub.f32 %v776, %v777
  %v779 = vand.u32 %v778, 4294901760
  %780 = vmatpush1.msra.mxu0 %v779
  %781 = vmatprep.subr.mxu0 0.0
  %v782 = vand.u32 %v44, 4294901760
  %v783 = vsub.f32 %v44, %v782
  %v784 = vand.u32 %v783, 4294901760
  %v785 = vsub.f32 %v783, %v784
  %v786 = vand.u32 %v785, 4294901760
  %787 = vmatpush1.msra.mxu0 %v786
  %788 = vmatprep.subr.mxu0 0.0
  %v789 = vand.u32 %v43, 4294901760
  %v790 = vsub.f32 %v43, %v789
  %v791 = vand.u32 %v790, 4294901760
  %v792 = vsub.f32 %v790, %v791
  %v793 = vand.u32 %v792, 4294901760
  %794 = vmatpush1.msra.mxu0 %v793
  %795 = vmatprep.subr.mxu0 0.0
  %v796 = vand.u32 %v42, 4294901760
  %v797 = vsub.f32 %v42, %v796
  %v798 = vand.u32 %v797, 4294901760
  %v799 = vsub.f32 %v797, %v798
  %v800 = vand.u32 %v799, 4294901760
  %801 = vmatpush1.msra.mxu0 %v800
  %802 = vmatprep.subr.mxu0 0.0
  %803 = vmatpush2.msra.mxu0 0.0
  %804 = vmatprep.subr.mxu0 0.0
  %805 = vmatpush2.msra.mxu0 0.0
  %806 = vmatprep.subr.mxu0 0.0
  %807 = vmatpush2.msra.mxu0 0.0
  %808 = vmatprep.subr.mxu0 0.0
  %809 = vmatpush2.msra.mxu0 0.0
  %810 = vmatprep.subr.mxu0 0.0
  %811 = vmatpush2.msra.mxu0 0.0
  %812 = vmatprep.subr.mxu0 0.0
  %813 = vmatpush2.msra.mxu0 0.0
  %814 = vmatprep.subr.mxu0 0.0
  %815 = vmatpush2.msra.mxu0 0.0
  %816 = vmatprep.subr.mxu0 0.0
  %817 = vmatpush2.msra.mxu0 0.0
  %818 = vmatprep.subr.mxu0 0.0
  %819 = vmatpush2.msra.mxu0 0.0
  %820 = vmatprep.subr.mxu0 0.0
  %821 = vmatpush2.msra.mxu0 0.0
  %822 = vmatprep.subr.mxu0 0.0
  %823 = vmatpush2.msra.mxu0 0.0
  %824 = vmatprep.subr.mxu0 0.0
  %825 = vmatpush2.msra.mxu0 0.0
  %826 = vmatprep.subr.mxu0 0.0
  %827 = vmatpush2.msra.mxu0 0.0
  %828 = vmatprep.subr.mxu0 0.0
  %829 = vmatpush2.msra.mxu0 0.0
  %830 = vmatprep.subr.mxu0 0.0
  %831 = vmatpush2.msra.mxu0 0.0
  %832 = vmatprep.subr.mxu0 0.0
  %833 = vmatpush2.msra.mxu0 0.0
  %834 = vmatprep.mubr.f32.mxu0 0.0
  %v835 = vand.u32 %v606, 4294901760
  %836 = vmatmul.mubr.f32.gmra.mxu0 %v835
  %v837 = vpop.f32.mrf.mxu0
  %v838 = vadd.f32 %v697, %v837
  %v839 = vpop.f32.mrf.mxu0
  %840 = vmatprep.mubr.f32.mxu0 0.0
  %v841 = vand.u32 %v609, 4294901760
  %842 = vmatmul.mubr.f32.gmra.mxu0 %v841
  %v843 = vpop.f32.mrf.mxu0
  %v844 = vadd.f32 %v707, %v843
  %v845 = vpop.f32.mrf.mxu0
  %846 = vmatprep.mubr.f32.mxu0 0.0
  %v847 = vand.u32 %v612, 4294901760
  %848 = vmatmul.mubr.f32.gmra.mxu0 %v847
  %v849 = vpop.f32.mrf.mxu0
  %v850 = vadd.f32 %v717, %v849
  %v851 = vpop.f32.mrf.mxu0
  %852 = vmatprep.mubr.f32.mxu0 0.0
  %v853 = vand.u32 %v615, 4294901760
  %854 = vmatmul.mubr.f32.gmra.mxu0 %v853
  %v855 = vpop.f32.mrf.mxu0
  %v856 = vadd.f32 %v727, %v855
  %v857 = vpop.f32.mrf.mxu0
  %858 = vdwg.mxu0
  %859 = vmatprep.subr.mxu0 0.0
  %860 = vmatpush1.msra.mxu0 0.0
  %861 = vmatprep.subr.mxu0 0.0
  %862 = vmatpush1.msra.mxu0 0.0
  %863 = vmatprep.subr.mxu0 0.0
  %864 = vmatpush1.msra.mxu0 0.0
  %865 = vmatprep.subr.mxu0 0.0
  %866 = vmatpush1.msra.mxu0 0.0
  %867 = vmatprep.subr.mxu0 0.0
  %868 = vmatpush1.msra.mxu0 0.0
  %869 = vmatprep.subr.mxu0 0.0
  %870 = vmatpush1.msra.mxu0 0.0
  %871 = vmatprep.subr.mxu0 0.0
  %872 = vmatpush1.msra.mxu0 0.0
  %873 = vmatprep.subr.mxu0 0.0
  %874 = vmatpush1.msra.mxu0 0.0
  %875 = vmatprep.subr.mxu0 0.0
  %v876 = vand.u32 %v49, 4294901760
  %v877 = vsub.f32 %v49, %v876
  %878 = vmatpush1.msra.mxu0 %v877
  %879 = vmatprep.subr.mxu0 0.0
  %v880 = vand.u32 %v48, 4294901760
  %v881 = vsub.f32 %v48, %v880
  %882 = vmatpush1.msra.mxu0 %v881
  %883 = vmatprep.subr.mxu0 0.0
  %v884 = vand.u32 %v47, 4294901760
  %v885 = vsub.f32 %v47, %v884
  %886 = vmatpush1.msra.mxu0 %v885
  %887 = vmatprep.subr.mxu0 0.0
  %v888 = vand.u32 %v46, 4294901760
  %v889 = vsub.f32 %v46, %v888
  %890 = vmatpush1.msra.mxu0 %v889
  %891 = vmatprep.subr.mxu0 0.0
  %v892 = vand.u32 %v45, 4294901760
  %v893 = vsub.f32 %v45, %v892
  %894 = vmatpush1.msra.mxu0 %v893
  %895 = vmatprep.subr.mxu0 0.0
  %v896 = vand.u32 %v44, 4294901760
  %v897 = vsub.f32 %v44, %v896
  %898 = vmatpush1.msra.mxu0 %v897
  %899 = vmatprep.subr.mxu0 0.0
  %v900 = vand.u32 %v43, 4294901760
  %v901 = vsub.f32 %v43, %v900
  %902 = vmatpush1.msra.mxu0 %v901
  %903 = vmatprep.subr.mxu0 0.0
  %v904 = vand.u32 %v42, 4294901760
  %v905 = vsub.f32 %v42, %v904
  %906 = vmatpush1.msra.mxu0 %v905
  %907 = vmatprep.subr.mxu0 0.0
  %908 = vmatpush2.msra.mxu0 0.0
  %909 = vmatprep.subr.mxu0 0.0
  %910 = vmatpush2.msra.mxu0 0.0
  %911 = vmatprep.subr.mxu0 0.0
  %912 = vmatpush2.msra.mxu0 0.0
  %913 = vmatprep.subr.mxu0 0.0
  %914 = vmatpush2.msra.mxu0 0.0
  %915 = vmatprep.subr.mxu0 0.0
  %916 = vmatpush2.msra.mxu0 0.0
  %917 = vmatprep.subr.mxu0 0.0
  %918 = vmatpush2.msra.mxu0 0.0
  %919 = vmatprep.subr.mxu0 0.0
  %920 = vmatpush2.msra.mxu0 0.0
  %921 = vmatprep.subr.mxu0 0.0
  %922 = vmatpush2.msra.mxu0 0.0
  %923 = vmatprep.subr.mxu0 0.0
  %924 = vmatpush2.msra.mxu0 0.0
  %925 = vmatprep.subr.mxu0 0.0
  %926 = vmatpush2.msra.mxu0 0.0
  %927 = vmatprep.subr.mxu0 0.0
  %928 = vmatpush2.msra.mxu0 0.0
  %929 = vmatprep.subr.mxu0 0.0
  %930 = vmatpush2.msra.mxu0 0.0
  %931 = vmatprep.subr.mxu0 0.0
  %932 = vmatpush2.msra.mxu0 0.0
  %933 = vmatprep.subr.mxu0 0.0
  %934 = vmatpush2.msra.mxu0 0.0
  %935 = vmatprep.subr.mxu0 0.0
  %936 = vmatpush2.msra.mxu0 0.0
  %937 = vmatprep.subr.mxu0 0.0
  %938 = vmatpush2.msra.mxu0 0.0
  %939 = vmatprep.mubr.f32.mxu0 0.0
  %v940 = vand.u32 %v606, 4294901760
  %v941 = vsub.f32 %v606, %v940
  %942 = vmatmul.mubr.f32.gmra.mxu0 %v941
  %v943 = vpop.f32.mrf.mxu0
  %v944 = vadd.f32 %v838, %v943
  %v945 = vpop.f32.mrf.mxu0
  %946 = vmatprep.mubr.f32.mxu0 0.0
  %v947 = vand.u32 %v609, 4294901760
  %v948 = vsub.f32 %v609, %v947
  %949 = vmatmul.mubr.f32.gmra.mxu0 %v948
  %v950 = vpop.f32.mrf.mxu0
  %v951 = vadd.f32 %v844, %v950
  %v952 = vpop.f32.mrf.mxu0
  %953 = vmatprep.mubr.f32.mxu0 0.0
  %v954 = vand.u32 %v612, 4294901760
  %v955 = vsub.f32 %v612, %v954
  %956 = vmatmul.mubr.f32.gmra.mxu0 %v955
  %v957 = vpop.f32.mrf.mxu0
  %v958 = vadd.f32 %v850, %v957
  %v959 = vpop.f32.mrf.mxu0
  %960 = vmatprep.mubr.f32.mxu0 0.0
  %v961 = vand.u32 %v615, 4294901760
  %v962 = vsub.f32 %v615, %v961
  %963 = vmatmul.mubr.f32.gmra.mxu0 %v962
  %v964 = vpop.f32.mrf.mxu0
  %v965 = vadd.f32 %v856, %v964
  %v966 = vpop.f32.mrf.mxu0
  %967 = vdwg.mxu0
  %968 = vmatprep.subr.mxu0 0.0
  %969 = vmatpush1.msra.mxu0 0.0
  %970 = vmatprep.subr.mxu0 0.0
  %971 = vmatpush1.msra.mxu0 0.0
  %972 = vmatprep.subr.mxu0 0.0
  %973 = vmatpush1.msra.mxu0 0.0
  %974 = vmatprep.subr.mxu0 0.0
  %975 = vmatpush1.msra.mxu0 0.0
  %976 = vmatprep.subr.mxu0 0.0
  %977 = vmatpush1.msra.mxu0 0.0
  %978 = vmatprep.subr.mxu0 0.0
  %979 = vmatpush1.msra.mxu0 0.0
  %980 = vmatprep.subr.mxu0 0.0
  %981 = vmatpush1.msra.mxu0 0.0
  %982 = vmatprep.subr.mxu0 0.0
  %983 = vmatpush1.msra.mxu0 0.0
  %984 = vmatprep.subr.mxu0 0.0
  %v985 = vand.u32 %v49, 4294901760
  %986 = vmatpush1.msra.mxu0 %v985
  %987 = vmatprep.subr.mxu0 0.0
  %v988 = vand.u32 %v48, 4294901760
  %989 = vmatpush1.msra.mxu0 %v988
  %990 = vmatprep.subr.mxu0 0.0
  %v991 = vand.u32 %v47, 4294901760
  %992 = vmatpush1.msra.mxu0 %v991
  %993 = vmatprep.subr.mxu0 0.0
  %v994 = vand.u32 %v46, 4294901760
  %995 = vmatpush1.msra.mxu0 %v994
  %996 = vmatprep.subr.mxu0 0.0
  %v997 = vand.u32 %v45, 4294901760
  %998 = vmatpush1.msra.mxu0 %v997
  %999 = vmatprep.subr.mxu0 0.0
  %v1000 = vand.u32 %v44, 4294901760
  %1001 = vmatpush1.msra.mxu0 %v1000
  %1002 = vmatprep.subr.mxu0 0.0
  %v1003 = vand.u32 %v43, 4294901760
  %1004 = vmatpush1.msra.mxu0 %v1003
  %1005 = vmatprep.subr.mxu0 0.0
  %v1006 = vand.u32 %v42, 4294901760
  %1007 = vmatpush1.msra.mxu0 %v1006
  %1008 = vmatprep.subr.mxu0 0.0
  %1009 = vmatpush2.msra.mxu0 0.0
  %1010 = vmatprep.subr.mxu0 0.0
  %1011 = vmatpush2.msra.mxu0 0.0
  %1012 = vmatprep.subr.mxu0 0.0
  %1013 = vmatpush2.msra.mxu0 0.0
  %1014 = vmatprep.subr.mxu0 0.0
  %1015 = vmatpush2.msra.mxu0 0.0
  %1016 = vmatprep.subr.mxu0 0.0
  %1017 = vmatpush2.msra.mxu0 0.0
  %1018 = vmatprep.subr.mxu0 0.0
  %1019 = vmatpush2.msra.mxu0 0.0
  %1020 = vmatprep.subr.mxu0 0.0
  %1021 = vmatpush2.msra.mxu0 0.0
  %1022 = vmatprep.subr.mxu0 0.0
  %1023 = vmatpush2.msra.mxu0 0.0
  %1024 = vmatprep.subr.mxu0 0.0
  %1025 = vmatpush2.msra.mxu0 0.0
  %1026 = vmatprep.subr.mxu0 0.0
  %1027 = vmatpush2.msra.mxu0 0.0
  %1028 = vmatprep.subr.mxu0 0.0
  %1029 = vmatpush2.msra.mxu0 0.0
  %1030 = vmatprep.subr.mxu0 0.0
  %1031 = vmatpush2.msra.mxu0 0.0
  %1032 = vmatprep.subr.mxu0 0.0
  %1033 = vmatpush2.msra.mxu0 0.0
  %1034 = vmatprep.subr.mxu0 0.0
  %1035 = vmatpush2.msra.mxu0 0.0
  %1036 = vmatprep.subr.mxu0 0.0
  %1037 = vmatpush2.msra.mxu0 0.0
  %1038 = vmatprep.subr.mxu0 0.0
  %1039 = vmatpush2.msra.mxu0 0.0
  %1040 = vmatprep.mubr.f32.mxu0 0.0
  %v1041 = vand.u32 %v606, 4294901760
  %v1042 = vsub.f32 %v606, %v1041
  %v1043 = vand.u32 %v1042, 4294901760
  %1044 = vmatmul.mubr.f32.gmra.mxu0 %v1043
  %v1045 = vpop.f32.mrf.mxu0
  %v1046 = vadd.f32 %v944, %v1045
  %v1047 = vpop.f32.mrf.mxu0
  %1048 = vmatprep.mubr.f32.mxu0 0.0
  %v1049 = vand.u32 %v609, 4294901760
  %v1050 = vsub.f32 %v609, %v1049
  %v1051 = vand.u32 %v1050, 4294901760
  %1052 = vmatmul.mubr.f32.gmra.mxu0 %v1051
  %v1053 = vpop.f32.mrf.mxu0
  %v1054 = vadd.f32 %v951, %v1053
  %v1055 = vpop.f32.mrf.mxu0
  %1056 = vmatprep.mubr.f32.mxu0 0.0
  %v1057 = vand.u32 %v612, 4294901760
  %v1058 = vsub.f32 %v612, %v1057
  %v1059 = vand.u32 %v1058, 4294901760
  %1060 = vmatmul.mubr.f32.gmra.mxu0 %v1059
  %v1061 = vpop.f32.mrf.mxu0
  %v1062 = vadd.f32 %v958, %v1061
  %v1063 = vpop.f32.mrf.mxu0
  %1064 = vmatprep.mubr.f32.mxu0 0.0
  %v1065 = vand.u32 %v615, 4294901760
  %v1066 = vsub.f32 %v615, %v1065
  %v1067 = vand.u32 %v1066, 4294901760
  %1068 = vmatmul.mubr.f32.gmra.mxu0 %v1067
  %v1069 = vpop.f32.mrf.mxu0
  %v1070 = vadd.f32 %v965, %v1069
  %v1071 = vpop.f32.mrf.mxu0
  %1072 = vdwg.mxu0
  %1073 = vmatprep.subr.mxu0 0.0
  %1074 = vmatpush1.msra.mxu0 0.0
  %1075 = vmatprep.subr.mxu0 0.0
  %1076 = vmatpush1.msra.mxu0 0.0
  %1077 = vmatprep.subr.mxu0 0.0
  %1078 = vmatpush1.msra.mxu0 0.0
  %1079 = vmatprep.subr.mxu0 0.0
  %1080 = vmatpush1.msra.mxu0 0.0
  %1081 = vmatprep.subr.mxu0 0.0
  %1082 = vmatpush1.msra.mxu0 0.0
  %1083 = vmatprep.subr.mxu0 0.0
  %1084 = vmatpush1.msra.mxu0 0.0
  %1085 = vmatprep.subr.mxu0 0.0
  %1086 = vmatpush1.msra.mxu0 0.0
  %1087 = vmatprep.subr.mxu0 0.0
  %1088 = vmatpush1.msra.mxu0 0.0
  %1089 = vmatprep.subr.mxu0 0.0
  %v1090 = vand.u32 %v49, 4294901760
  %v1091 = vsub.f32 %v49, %v1090
  %v1092 = vand.u32 %v1091, 4294901760
  %1093 = vmatpush1.msra.mxu0 %v1092
  %1094 = vmatprep.subr.mxu0 0.0
  %v1095 = vand.u32 %v48, 4294901760
  %v1096 = vsub.f32 %v48, %v1095
  %v1097 = vand.u32 %v1096, 4294901760
  %1098 = vmatpush1.msra.mxu0 %v1097
  %1099 = vmatprep.subr.mxu0 0.0
  %v1100 = vand.u32 %v47, 4294901760
  %v1101 = vsub.f32 %v47, %v1100
  %v1102 = vand.u32 %v1101, 4294901760
  %1103 = vmatpush1.msra.mxu0 %v1102
  %1104 = vmatprep.subr.mxu0 0.0
  %v1105 = vand.u32 %v46, 4294901760
  %v1106 = vsub.f32 %v46, %v1105
  %v1107 = vand.u32 %v1106, 4294901760
  %1108 = vmatpush1.msra.mxu0 %v1107
  %1109 = vmatprep.subr.mxu0 0.0
  %v1110 = vand.u32 %v45, 4294901760
  %v1111 = vsub.f32 %v45, %v1110
  %v1112 = vand.u32 %v1111, 4294901760
  %1113 = vmatpush1.msra.mxu0 %v1112
  %1114 = vmatprep.subr.mxu0 0.0
  %v1115 = vand.u32 %v44, 4294901760
  %v1116 = vsub.f32 %v44, %v1115
  %v1117 = vand.u32 %v1116, 4294901760
  %1118 = vmatpush1.msra.mxu0 %v1117
  %1119 = vmatprep.subr.mxu0 0.0
  %v1120 = vand.u32 %v43, 4294901760
  %v1121 = vsub.f32 %v43, %v1120
  %v1122 = vand.u32 %v1121, 4294901760
  %1123 = vmatpush1.msra.mxu0 %v1122
  %1124 = vmatprep.subr.mxu0 0.0
  %v1125 = vand.u32 %v42, 4294901760
  %v1126 = vsub.f32 %v42, %v1125
  %v1127 = vand.u32 %v1126, 4294901760
  %1128 = vmatpush1.msra.mxu0 %v1127
  %1129 = vmatprep.subr.mxu0 0.0
  %1130 = vmatpush2.msra.mxu0 0.0
  %1131 = vmatprep.subr.mxu0 0.0
  %1132 = vmatpush2.msra.mxu0 0.0
  %1133 = vmatprep.subr.mxu0 0.0
  %1134 = vmatpush2.msra.mxu0 0.0
  %1135 = vmatprep.subr.mxu0 0.0
  %1136 = vmatpush2.msra.mxu0 0.0
  %1137 = vmatprep.subr.mxu0 0.0
  %1138 = vmatpush2.msra.mxu0 0.0
  %1139 = vmatprep.subr.mxu0 0.0
  %1140 = vmatpush2.msra.mxu0 0.0
  %1141 = vmatprep.subr.mxu0 0.0
  %1142 = vmatpush2.msra.mxu0 0.0
  %1143 = vmatprep.subr.mxu0 0.0
  %1144 = vmatpush2.msra.mxu0 0.0
  %1145 = vmatprep.subr.mxu0 0.0
  %1146 = vmatpush2.msra.mxu0 0.0
  %1147 = vmatprep.subr.mxu0 0.0
  %1148 = vmatpush2.msra.mxu0 0.0
  %1149 = vmatprep.subr.mxu0 0.0
  %1150 = vmatpush2.msra.mxu0 0.0
  %1151 = vmatprep.subr.mxu0 0.0
  %1152 = vmatpush2.msra.mxu0 0.0
  %1153 = vmatprep.subr.mxu0 0.0
  %1154 = vmatpush2.msra.mxu0 0.0
  %1155 = vmatprep.subr.mxu0 0.0
  %1156 = vmatpush2.msra.mxu0 0.0
  %1157 = vmatprep.subr.mxu0 0.0
  %1158 = vmatpush2.msra.mxu0 0.0
  %1159 = vmatprep.subr.mxu0 0.0
  %1160 = vmatpush2.msra.mxu0 0.0
  %1161 = vmatprep.mubr.f32.mxu0 0.0
  %v1162 = vand.u32 %v606, 4294901760
  %1163 = vmatmul.mubr.f32.gmra.mxu0 %v1162
  %v1164 = vpop.f32.mrf.mxu0
  %v1165 = vadd.f32 %v1046, %v1164
  %v1166 = vpop.f32.mrf.mxu0
  %1167 = vmatprep.mubr.f32.mxu0 0.0
  %v1168 = vand.u32 %v609, 4294901760
  %1169 = vmatmul.mubr.f32.gmra.mxu0 %v1168
  %v1170 = vpop.f32.mrf.mxu0
  %v1171 = vadd.f32 %v1054, %v1170
  %v1172 = vpop.f32.mrf.mxu0
  %1173 = vmatprep.mubr.f32.mxu0 0.0
  %v1174 = vand.u32 %v612, 4294901760
  %1175 = vmatmul.mubr.f32.gmra.mxu0 %v1174
  %v1176 = vpop.f32.mrf.mxu0
  %v1177 = vadd.f32 %v1062, %v1176
  %v1178 = vpop.f32.mrf.mxu0
  %1179 = vmatprep.mubr.f32.mxu0 0.0
  %v1180 = vand.u32 %v615, 4294901760
  %1181 = vmatmul.mubr.f32.gmra.mxu0 %v1180
  %v1182 = vpop.f32.mrf.mxu0
  %v1183 = vadd.f32 %v1070, %v1182
  %v1184 = vpop.f32.mrf.mxu0
  %1185 = vdwg.mxu0
  %1186 = vmatprep.subr.mxu0 0.0
  %1187 = vmatpush1.msra.mxu0 0.0
  %1188 = vmatprep.subr.mxu0 0.0
  %1189 = vmatpush1.msra.mxu0 0.0
  %1190 = vmatprep.subr.mxu0 0.0
  %1191 = vmatpush1.msra.mxu0 0.0
  %1192 = vmatprep.subr.mxu0 0.0
  %1193 = vmatpush1.msra.mxu0 0.0
  %1194 = vmatprep.subr.mxu0 0.0
  %1195 = vmatpush1.msra.mxu0 0.0
  %1196 = vmatprep.subr.mxu0 0.0
  %1197 = vmatpush1.msra.mxu0 0.0
  %1198 = vmatprep.subr.mxu0 0.0
  %1199 = vmatpush1.msra.mxu0 0.0
  %1200 = vmatprep.subr.mxu0 0.0
  %1201 = vmatpush1.msra.mxu0 0.0
  %1202 = vmatprep.subr.mxu0 0.0
  %v1203 = vand.u32 %v49, 4294901760
  %1204 = vmatpush1.msra.mxu0 %v1203
  %1205 = vmatprep.subr.mxu0 0.0
  %v1206 = vand.u32 %v48, 4294901760
  %1207 = vmatpush1.msra.mxu0 %v1206
  %1208 = vmatprep.subr.mxu0 0.0
  %v1209 = vand.u32 %v47, 4294901760
  %1210 = vmatpush1.msra.mxu0 %v1209
  %1211 = vmatprep.subr.mxu0 0.0
  %v1212 = vand.u32 %v46, 4294901760
  %1213 = vmatpush1.msra.mxu0 %v1212
  %1214 = vmatprep.subr.mxu0 0.0
  %v1215 = vand.u32 %v45, 4294901760
  %1216 = vmatpush1.msra.mxu0 %v1215
  %1217 = vmatprep.subr.mxu0 0.0
  %v1218 = vand.u32 %v44, 4294901760
  %1219 = vmatpush1.msra.mxu0 %v1218
  %1220 = vmatprep.subr.mxu0 0.0
  %v1221 = vand.u32 %v43, 4294901760
  %1222 = vmatpush1.msra.mxu0 %v1221
  %1223 = vmatprep.subr.mxu0 0.0
  %v1224 = vand.u32 %v42, 4294901760
  %1225 = vmatpush1.msra.mxu0 %v1224
  %1226 = vmatprep.subr.mxu0 0.0
  %1227 = vmatpush2.msra.mxu0 0.0
  %1228 = vmatprep.subr.mxu0 0.0
  %1229 = vmatpush2.msra.mxu0 0.0
  %1230 = vmatprep.subr.mxu0 0.0
  %1231 = vmatpush2.msra.mxu0 0.0
  %1232 = vmatprep.subr.mxu0 0.0
  %1233 = vmatpush2.msra.mxu0 0.0
  %1234 = vmatprep.subr.mxu0 0.0
  %1235 = vmatpush2.msra.mxu0 0.0
  %1236 = vmatprep.subr.mxu0 0.0
  %1237 = vmatpush2.msra.mxu0 0.0
  %1238 = vmatprep.subr.mxu0 0.0
  %1239 = vmatpush2.msra.mxu0 0.0
  %1240 = vmatprep.subr.mxu0 0.0
  %1241 = vmatpush2.msra.mxu0 0.0
  %1242 = vmatprep.subr.mxu0 0.0
  %1243 = vmatpush2.msra.mxu0 0.0
  %1244 = vmatprep.subr.mxu0 0.0
  %1245 = vmatpush2.msra.mxu0 0.0
  %1246 = vmatprep.subr.mxu0 0.0
  %1247 = vmatpush2.msra.mxu0 0.0
  %1248 = vmatprep.subr.mxu0 0.0
  %1249 = vmatpush2.msra.mxu0 0.0
  %1250 = vmatprep.subr.mxu0 0.0
  %1251 = vmatpush2.msra.mxu0 0.0
  %1252 = vmatprep.subr.mxu0 0.0
  %1253 = vmatpush2.msra.mxu0 0.0
  %1254 = vmatprep.subr.mxu0 0.0
  %1255 = vmatpush2.msra.mxu0 0.0
  %1256 = vmatprep.subr.mxu0 0.0
  %1257 = vmatpush2.msra.mxu0 0.0
  %1258 = vmatprep.mubr.f32.mxu0 0.0
  %v1259 = vand.u32 %v606, 4294901760
  %1260 = vmatmul.mubr.f32.gmra.mxu0 %v1259
  %v1261 = vpop.f32.mrf.mxu0
  %v1262 = vadd.f32 %v1165, %v1261
  %v1263 = vpop.f32.mrf.mxu0
  %1264 = vmatprep.mubr.f32.mxu0 0.0
  %v1265 = vand.u32 %v609, 4294901760
  %1266 = vmatmul.mubr.f32.gmra.mxu0 %v1265
  %v1267 = vpop.f32.mrf.mxu0
  %v1268 = vadd.f32 %v1171, %v1267
  %v1269 = vpop.f32.mrf.mxu0
  %1270 = vmatprep.mubr.f32.mxu0 0.0
  %v1271 = vand.u32 %v612, 4294901760
  %1272 = vmatmul.mubr.f32.gmra.mxu0 %v1271
  %v1273 = vpop.f32.mrf.mxu0
  %v1274 = vadd.f32 %v1177, %v1273
  %v1275 = vpop.f32.mrf.mxu0
  %1276 = vmatprep.mubr.f32.mxu0 0.0
  %v1277 = vand.u32 %v615, 4294901760
  %1278 = vmatmul.mubr.f32.gmra.mxu0 %v1277
  %v1279 = vpop.f32.mrf.mxu0
  %v1280 = vadd.f32 %v1183, %v1279
  %v1281 = vpop.f32.mrf.mxu0
  %1282 = vdwg.mxu0
  %v1283 = vsel %vm50, %v1262, 0.0
  %v1284 = vsel %vm50, %v1268, 0.0
  %v1285 = vadd.f32 %v1283, %v1284
  %v1286 = vsel %vm50, %v1274, 0.0
  %v1287 = vadd.f32 %v1285, %v1286
  %v1288 = vsel %vm50, %v1280, 0.0
  %v1289 = vadd.f32 %v1287, %v1288
  %v1290 = vrot.slane %v1289, 4
  %v1291 = vadd.f32 %v1289, %v1290
  %v1292 = vrot.slane %v1291, 2
  %v1293 = vadd.f32 %v1291, %v1292
  %v1294 = vrot.slane %v1293, 1
  %v1295 = vadd.f32 %v1293, %v1294
  %v1296 = vmul.f32 %v1295, 0.001953125
  %v1297 = vsub.f32 %v599, %v1296
  %v1298 = vsub.f32 %v600, %v1296
  %v1299 = vsub.f32 %v601, %v1296
  %v1300 = vsub.f32 %v602, %v1296
  %v1301 = vmul.f32 %v1297, %v1297
  %v1302 = vmul.f32 %v1298, %v1298
  %v1303 = vmul.f32 %v1299, %v1299
  %v1304 = vmul.f32 %v1300, %v1300
  %v1306 = vsel %vm50, %v1301, 0
  %v1309 = vsel %vm50, %v1302, 0
  %v1312 = vsel %vm50, %v1303, 0
  %v1315 = vsel %vm50, %v1304, 0
  %1317 = vmatprep.subr.mxu0 0.0
  %1318 = vmatpush1.msra.mxu0 0.0
  %1319 = vmatprep.subr.mxu0 0.0
  %1320 = vmatpush1.msra.mxu0 0.0
  %1321 = vmatprep.subr.mxu0 0.0
  %1322 = vmatpush1.msra.mxu0 0.0
  %1323 = vmatprep.subr.mxu0 0.0
  %1324 = vmatpush1.msra.mxu0 0.0
  %1325 = vmatprep.subr.mxu0 0.0
  %1326 = vmatpush1.msra.mxu0 0.0
  %1327 = vmatprep.subr.mxu0 0.0
  %1328 = vmatpush1.msra.mxu0 0.0
  %1329 = vmatprep.subr.mxu0 0.0
  %1330 = vmatpush1.msra.mxu0 0.0
  %1331 = vmatprep.subr.mxu0 0.0
  %1332 = vmatpush1.msra.mxu0 0.0
  %1333 = vmatprep.subr.mxu0 0.0
  %v1334 = vand.u32 %v49, 4294901760
  %1335 = vmatpush1.msra.mxu0 %v1334
  %1336 = vmatprep.subr.mxu0 0.0
  %v1337 = vand.u32 %v48, 4294901760
  %1338 = vmatpush1.msra.mxu0 %v1337
  %1339 = vmatprep.subr.mxu0 0.0
  %v1340 = vand.u32 %v47, 4294901760
  %1341 = vmatpush1.msra.mxu0 %v1340
  %1342 = vmatprep.subr.mxu0 0.0
  %v1343 = vand.u32 %v46, 4294901760
  %1344 = vmatpush1.msra.mxu0 %v1343
  %1345 = vmatprep.subr.mxu0 0.0
  %v1346 = vand.u32 %v45, 4294901760
  %1347 = vmatpush1.msra.mxu0 %v1346
  %1348 = vmatprep.subr.mxu0 0.0
  %v1349 = vand.u32 %v44, 4294901760
  %1350 = vmatpush1.msra.mxu0 %v1349
  %1351 = vmatprep.subr.mxu0 0.0
  %v1352 = vand.u32 %v43, 4294901760
  %1353 = vmatpush1.msra.mxu0 %v1352
  %1354 = vmatprep.subr.mxu0 0.0
  %v1355 = vand.u32 %v42, 4294901760
  %1356 = vmatpush1.msra.mxu0 %v1355
  %1357 = vmatprep.subr.mxu0 0.0
  %1358 = vmatpush2.msra.mxu0 0.0
  %1359 = vmatprep.subr.mxu0 0.0
  %1360 = vmatpush2.msra.mxu0 0.0
  %1361 = vmatprep.subr.mxu0 0.0
  %1362 = vmatpush2.msra.mxu0 0.0
  %1363 = vmatprep.subr.mxu0 0.0
  %1364 = vmatpush2.msra.mxu0 0.0
  %1365 = vmatprep.subr.mxu0 0.0
  %1366 = vmatpush2.msra.mxu0 0.0
  %1367 = vmatprep.subr.mxu0 0.0
  %1368 = vmatpush2.msra.mxu0 0.0
  %1369 = vmatprep.subr.mxu0 0.0
  %1370 = vmatpush2.msra.mxu0 0.0
  %1371 = vmatprep.subr.mxu0 0.0
  %1372 = vmatpush2.msra.mxu0 0.0
  %1373 = vmatprep.subr.mxu0 0.0
  %1374 = vmatpush2.msra.mxu0 0.0
  %1375 = vmatprep.subr.mxu0 0.0
  %1376 = vmatpush2.msra.mxu0 0.0
  %1377 = vmatprep.subr.mxu0 0.0
  %1378 = vmatpush2.msra.mxu0 0.0
  %1379 = vmatprep.subr.mxu0 0.0
  %1380 = vmatpush2.msra.mxu0 0.0
  %1381 = vmatprep.subr.mxu0 0.0
  %1382 = vmatpush2.msra.mxu0 0.0
  %1383 = vmatprep.subr.mxu0 0.0
  %1384 = vmatpush2.msra.mxu0 0.0
  %1385 = vmatprep.subr.mxu0 0.0
  %1386 = vmatpush2.msra.mxu0 0.0
  %1387 = vmatprep.subr.mxu0 0.0
  %1388 = vmatpush2.msra.mxu0 0.0
  %1389 = vmatprep.mubr.f32.mxu0 0.0
  %v1390 = vand.u32 %v1306, 4294901760
  %v1391 = vsub.f32 %v1306, %v1390
  %v1392 = vand.u32 %v1391, 4294901760
  %v1393 = vsub.f32 %v1391, %v1392
  %v1394 = vand.u32 %v1393, 4294901760
  %1395 = vmatmul.mubr.f32.gmra.mxu0 %v1394
  %v1396 = vpop.f32.mrf.mxu0
  %v1397 = vadd.f32 0.0, %v1396
  %v1398 = vpop.f32.mrf.mxu0
  %1399 = vmatprep.mubr.f32.mxu0 0.0
  %v1400 = vand.u32 %v1309, 4294901760
  %v1401 = vsub.f32 %v1309, %v1400
  %v1402 = vand.u32 %v1401, 4294901760
  %v1403 = vsub.f32 %v1401, %v1402
  %v1404 = vand.u32 %v1403, 4294901760
  %1405 = vmatmul.mubr.f32.gmra.mxu0 %v1404
  %v1406 = vpop.f32.mrf.mxu0
  %v1407 = vadd.f32 0.0, %v1406
  %v1408 = vpop.f32.mrf.mxu0
  %1409 = vmatprep.mubr.f32.mxu0 0.0
  %v1410 = vand.u32 %v1312, 4294901760
  %v1411 = vsub.f32 %v1312, %v1410
  %v1412 = vand.u32 %v1411, 4294901760
  %v1413 = vsub.f32 %v1411, %v1412
  %v1414 = vand.u32 %v1413, 4294901760
  %1415 = vmatmul.mubr.f32.gmra.mxu0 %v1414
  %v1416 = vpop.f32.mrf.mxu0
  %v1417 = vadd.f32 0.0, %v1416
  %v1418 = vpop.f32.mrf.mxu0
  %1419 = vmatprep.mubr.f32.mxu0 0.0
  %v1420 = vand.u32 %v1315, 4294901760
  %v1421 = vsub.f32 %v1315, %v1420
  %v1422 = vand.u32 %v1421, 4294901760
  %v1423 = vsub.f32 %v1421, %v1422
  %v1424 = vand.u32 %v1423, 4294901760
  %1425 = vmatmul.mubr.f32.gmra.mxu0 %v1424
  %v1426 = vpop.f32.mrf.mxu0
  %v1427 = vadd.f32 0.0, %v1426
  %v1428 = vpop.f32.mrf.mxu0
  %1429 = vdwg.mxu0
  %1430 = vmatprep.subr.mxu0 0.0
  %1431 = vmatpush1.msra.mxu0 0.0
  %1432 = vmatprep.subr.mxu0 0.0
  %1433 = vmatpush1.msra.mxu0 0.0
  %1434 = vmatprep.subr.mxu0 0.0
  %1435 = vmatpush1.msra.mxu0 0.0
  %1436 = vmatprep.subr.mxu0 0.0
  %1437 = vmatpush1.msra.mxu0 0.0
  %1438 = vmatprep.subr.mxu0 0.0
  %1439 = vmatpush1.msra.mxu0 0.0
  %1440 = vmatprep.subr.mxu0 0.0
  %1441 = vmatpush1.msra.mxu0 0.0
  %1442 = vmatprep.subr.mxu0 0.0
  %1443 = vmatpush1.msra.mxu0 0.0
  %1444 = vmatprep.subr.mxu0 0.0
  %1445 = vmatpush1.msra.mxu0 0.0
  %1446 = vmatprep.subr.mxu0 0.0
  %v1447 = vand.u32 %v49, 4294901760
  %v1448 = vsub.f32 %v49, %v1447
  %v1449 = vand.u32 %v1448, 4294901760
  %v1450 = vsub.f32 %v1448, %v1449
  %v1451 = vand.u32 %v1450, 4294901760
  %1452 = vmatpush1.msra.mxu0 %v1451
  %1453 = vmatprep.subr.mxu0 0.0
  %v1454 = vand.u32 %v48, 4294901760
  %v1455 = vsub.f32 %v48, %v1454
  %v1456 = vand.u32 %v1455, 4294901760
  %v1457 = vsub.f32 %v1455, %v1456
  %v1458 = vand.u32 %v1457, 4294901760
  %1459 = vmatpush1.msra.mxu0 %v1458
  %1460 = vmatprep.subr.mxu0 0.0
  %v1461 = vand.u32 %v47, 4294901760
  %v1462 = vsub.f32 %v47, %v1461
  %v1463 = vand.u32 %v1462, 4294901760
  %v1464 = vsub.f32 %v1462, %v1463
  %v1465 = vand.u32 %v1464, 4294901760
  %1466 = vmatpush1.msra.mxu0 %v1465
  %1467 = vmatprep.subr.mxu0 0.0
  %v1468 = vand.u32 %v46, 4294901760
  %v1469 = vsub.f32 %v46, %v1468
  %v1470 = vand.u32 %v1469, 4294901760
  %v1471 = vsub.f32 %v1469, %v1470
  %v1472 = vand.u32 %v1471, 4294901760
  %1473 = vmatpush1.msra.mxu0 %v1472
  %1474 = vmatprep.subr.mxu0 0.0
  %v1475 = vand.u32 %v45, 4294901760
  %v1476 = vsub.f32 %v45, %v1475
  %v1477 = vand.u32 %v1476, 4294901760
  %v1478 = vsub.f32 %v1476, %v1477
  %v1479 = vand.u32 %v1478, 4294901760
  %1480 = vmatpush1.msra.mxu0 %v1479
  %1481 = vmatprep.subr.mxu0 0.0
  %v1482 = vand.u32 %v44, 4294901760
  %v1483 = vsub.f32 %v44, %v1482
  %v1484 = vand.u32 %v1483, 4294901760
  %v1485 = vsub.f32 %v1483, %v1484
  %v1486 = vand.u32 %v1485, 4294901760
  %1487 = vmatpush1.msra.mxu0 %v1486
  %1488 = vmatprep.subr.mxu0 0.0
  %v1489 = vand.u32 %v43, 4294901760
  %v1490 = vsub.f32 %v43, %v1489
  %v1491 = vand.u32 %v1490, 4294901760
  %v1492 = vsub.f32 %v1490, %v1491
  %v1493 = vand.u32 %v1492, 4294901760
  %1494 = vmatpush1.msra.mxu0 %v1493
  %1495 = vmatprep.subr.mxu0 0.0
  %v1496 = vand.u32 %v42, 4294901760
  %v1497 = vsub.f32 %v42, %v1496
  %v1498 = vand.u32 %v1497, 4294901760
  %v1499 = vsub.f32 %v1497, %v1498
  %v1500 = vand.u32 %v1499, 4294901760
  %1501 = vmatpush1.msra.mxu0 %v1500
  %1502 = vmatprep.subr.mxu0 0.0
  %1503 = vmatpush2.msra.mxu0 0.0
  %1504 = vmatprep.subr.mxu0 0.0
  %1505 = vmatpush2.msra.mxu0 0.0
  %1506 = vmatprep.subr.mxu0 0.0
  %1507 = vmatpush2.msra.mxu0 0.0
  %1508 = vmatprep.subr.mxu0 0.0
  %1509 = vmatpush2.msra.mxu0 0.0
  %1510 = vmatprep.subr.mxu0 0.0
  %1511 = vmatpush2.msra.mxu0 0.0
  %1512 = vmatprep.subr.mxu0 0.0
  %1513 = vmatpush2.msra.mxu0 0.0
  %1514 = vmatprep.subr.mxu0 0.0
  %1515 = vmatpush2.msra.mxu0 0.0
  %1516 = vmatprep.subr.mxu0 0.0
  %1517 = vmatpush2.msra.mxu0 0.0
  %1518 = vmatprep.subr.mxu0 0.0
  %1519 = vmatpush2.msra.mxu0 0.0
  %1520 = vmatprep.subr.mxu0 0.0
  %1521 = vmatpush2.msra.mxu0 0.0
  %1522 = vmatprep.subr.mxu0 0.0
  %1523 = vmatpush2.msra.mxu0 0.0
  %1524 = vmatprep.subr.mxu0 0.0
  %1525 = vmatpush2.msra.mxu0 0.0
  %1526 = vmatprep.subr.mxu0 0.0
  %1527 = vmatpush2.msra.mxu0 0.0
  %1528 = vmatprep.subr.mxu0 0.0
  %1529 = vmatpush2.msra.mxu0 0.0
  %1530 = vmatprep.subr.mxu0 0.0
  %1531 = vmatpush2.msra.mxu0 0.0
  %1532 = vmatprep.subr.mxu0 0.0
  %1533 = vmatpush2.msra.mxu0 0.0
  %1534 = vmatprep.mubr.f32.mxu0 0.0
  %v1535 = vand.u32 %v1306, 4294901760
  %1536 = vmatmul.mubr.f32.gmra.mxu0 %v1535
  %v1537 = vpop.f32.mrf.mxu0
  %v1538 = vadd.f32 %v1397, %v1537
  %v1539 = vpop.f32.mrf.mxu0
  %1540 = vmatprep.mubr.f32.mxu0 0.0
  %v1541 = vand.u32 %v1309, 4294901760
  %1542 = vmatmul.mubr.f32.gmra.mxu0 %v1541
  %v1543 = vpop.f32.mrf.mxu0
  %v1544 = vadd.f32 %v1407, %v1543
  %v1545 = vpop.f32.mrf.mxu0
  %1546 = vmatprep.mubr.f32.mxu0 0.0
  %v1547 = vand.u32 %v1312, 4294901760
  %1548 = vmatmul.mubr.f32.gmra.mxu0 %v1547
  %v1549 = vpop.f32.mrf.mxu0
  %v1550 = vadd.f32 %v1417, %v1549
  %v1551 = vpop.f32.mrf.mxu0
  %1552 = vmatprep.mubr.f32.mxu0 0.0
  %v1553 = vand.u32 %v1315, 4294901760
  %1554 = vmatmul.mubr.f32.gmra.mxu0 %v1553
  %v1555 = vpop.f32.mrf.mxu0
  %v1556 = vadd.f32 %v1427, %v1555
  %v1557 = vpop.f32.mrf.mxu0
  %1558 = vdwg.mxu0
  %1559 = vmatprep.subr.mxu0 0.0
  %1560 = vmatpush1.msra.mxu0 0.0
  %1561 = vmatprep.subr.mxu0 0.0
  %1562 = vmatpush1.msra.mxu0 0.0
  %1563 = vmatprep.subr.mxu0 0.0
  %1564 = vmatpush1.msra.mxu0 0.0
  %1565 = vmatprep.subr.mxu0 0.0
  %1566 = vmatpush1.msra.mxu0 0.0
  %1567 = vmatprep.subr.mxu0 0.0
  %1568 = vmatpush1.msra.mxu0 0.0
  %1569 = vmatprep.subr.mxu0 0.0
  %1570 = vmatpush1.msra.mxu0 0.0
  %1571 = vmatprep.subr.mxu0 0.0
  %1572 = vmatpush1.msra.mxu0 0.0
  %1573 = vmatprep.subr.mxu0 0.0
  %1574 = vmatpush1.msra.mxu0 0.0
  %1575 = vmatprep.subr.mxu0 0.0
  %v1576 = vand.u32 %v49, 4294901760
  %v1577 = vsub.f32 %v49, %v1576
  %1578 = vmatpush1.msra.mxu0 %v1577
  %1579 = vmatprep.subr.mxu0 0.0
  %v1580 = vand.u32 %v48, 4294901760
  %v1581 = vsub.f32 %v48, %v1580
  %1582 = vmatpush1.msra.mxu0 %v1581
  %1583 = vmatprep.subr.mxu0 0.0
  %v1584 = vand.u32 %v47, 4294901760
  %v1585 = vsub.f32 %v47, %v1584
  %1586 = vmatpush1.msra.mxu0 %v1585
  %1587 = vmatprep.subr.mxu0 0.0
  %v1588 = vand.u32 %v46, 4294901760
  %v1589 = vsub.f32 %v46, %v1588
  %1590 = vmatpush1.msra.mxu0 %v1589
  %1591 = vmatprep.subr.mxu0 0.0
  %v1592 = vand.u32 %v45, 4294901760
  %v1593 = vsub.f32 %v45, %v1592
  %1594 = vmatpush1.msra.mxu0 %v1593
  %1595 = vmatprep.subr.mxu0 0.0
  %v1596 = vand.u32 %v44, 4294901760
  %v1597 = vsub.f32 %v44, %v1596
  %1598 = vmatpush1.msra.mxu0 %v1597
  %1599 = vmatprep.subr.mxu0 0.0
  %v1600 = vand.u32 %v43, 4294901760
  %v1601 = vsub.f32 %v43, %v1600
  %1602 = vmatpush1.msra.mxu0 %v1601
  %1603 = vmatprep.subr.mxu0 0.0
  %v1604 = vand.u32 %v42, 4294901760
  %v1605 = vsub.f32 %v42, %v1604
  %1606 = vmatpush1.msra.mxu0 %v1605
  %1607 = vmatprep.subr.mxu0 0.0
  %1608 = vmatpush2.msra.mxu0 0.0
  %1609 = vmatprep.subr.mxu0 0.0
  %1610 = vmatpush2.msra.mxu0 0.0
  %1611 = vmatprep.subr.mxu0 0.0
  %1612 = vmatpush2.msra.mxu0 0.0
  %1613 = vmatprep.subr.mxu0 0.0
  %1614 = vmatpush2.msra.mxu0 0.0
  %1615 = vmatprep.subr.mxu0 0.0
  %1616 = vmatpush2.msra.mxu0 0.0
  %1617 = vmatprep.subr.mxu0 0.0
  %1618 = vmatpush2.msra.mxu0 0.0
  %1619 = vmatprep.subr.mxu0 0.0
  %1620 = vmatpush2.msra.mxu0 0.0
  %1621 = vmatprep.subr.mxu0 0.0
  %1622 = vmatpush2.msra.mxu0 0.0
  %1623 = vmatprep.subr.mxu0 0.0
  %1624 = vmatpush2.msra.mxu0 0.0
  %1625 = vmatprep.subr.mxu0 0.0
  %1626 = vmatpush2.msra.mxu0 0.0
  %1627 = vmatprep.subr.mxu0 0.0
  %1628 = vmatpush2.msra.mxu0 0.0
  %1629 = vmatprep.subr.mxu0 0.0
  %1630 = vmatpush2.msra.mxu0 0.0
  %1631 = vmatprep.subr.mxu0 0.0
  %1632 = vmatpush2.msra.mxu0 0.0
  %1633 = vmatprep.subr.mxu0 0.0
  %1634 = vmatpush2.msra.mxu0 0.0
  %1635 = vmatprep.subr.mxu0 0.0
  %1636 = vmatpush2.msra.mxu0 0.0
  %1637 = vmatprep.subr.mxu0 0.0
  %1638 = vmatpush2.msra.mxu0 0.0
  %1639 = vmatprep.mubr.f32.mxu0 0.0
  %v1640 = vand.u32 %v1306, 4294901760
  %v1641 = vsub.f32 %v1306, %v1640
  %1642 = vmatmul.mubr.f32.gmra.mxu0 %v1641
  %v1643 = vpop.f32.mrf.mxu0
  %v1644 = vadd.f32 %v1538, %v1643
  %v1645 = vpop.f32.mrf.mxu0
  %1646 = vmatprep.mubr.f32.mxu0 0.0
  %v1647 = vand.u32 %v1309, 4294901760
  %v1648 = vsub.f32 %v1309, %v1647
  %1649 = vmatmul.mubr.f32.gmra.mxu0 %v1648
  %v1650 = vpop.f32.mrf.mxu0
  %v1651 = vadd.f32 %v1544, %v1650
  %v1652 = vpop.f32.mrf.mxu0
  %1653 = vmatprep.mubr.f32.mxu0 0.0
  %v1654 = vand.u32 %v1312, 4294901760
  %v1655 = vsub.f32 %v1312, %v1654
  %1656 = vmatmul.mubr.f32.gmra.mxu0 %v1655
  %v1657 = vpop.f32.mrf.mxu0
  %v1658 = vadd.f32 %v1550, %v1657
  %v1659 = vpop.f32.mrf.mxu0
  %1660 = vmatprep.mubr.f32.mxu0 0.0
  %v1661 = vand.u32 %v1315, 4294901760
  %v1662 = vsub.f32 %v1315, %v1661
  %1663 = vmatmul.mubr.f32.gmra.mxu0 %v1662
  %v1664 = vpop.f32.mrf.mxu0
  %v1665 = vadd.f32 %v1556, %v1664
  %v1666 = vpop.f32.mrf.mxu0
  %1667 = vdwg.mxu0
  %1668 = vmatprep.subr.mxu0 0.0
  %1669 = vmatpush1.msra.mxu0 0.0
  %1670 = vmatprep.subr.mxu0 0.0
  %1671 = vmatpush1.msra.mxu0 0.0
  %1672 = vmatprep.subr.mxu0 0.0
  %1673 = vmatpush1.msra.mxu0 0.0
  %1674 = vmatprep.subr.mxu0 0.0
  %1675 = vmatpush1.msra.mxu0 0.0
  %1676 = vmatprep.subr.mxu0 0.0
  %1677 = vmatpush1.msra.mxu0 0.0
  %1678 = vmatprep.subr.mxu0 0.0
  %1679 = vmatpush1.msra.mxu0 0.0
  %1680 = vmatprep.subr.mxu0 0.0
  %1681 = vmatpush1.msra.mxu0 0.0
  %1682 = vmatprep.subr.mxu0 0.0
  %1683 = vmatpush1.msra.mxu0 0.0
  %1684 = vmatprep.subr.mxu0 0.0
  %v1685 = vand.u32 %v49, 4294901760
  %1686 = vmatpush1.msra.mxu0 %v1685
  %1687 = vmatprep.subr.mxu0 0.0
  %v1688 = vand.u32 %v48, 4294901760
  %1689 = vmatpush1.msra.mxu0 %v1688
  %1690 = vmatprep.subr.mxu0 0.0
  %v1691 = vand.u32 %v47, 4294901760
  %1692 = vmatpush1.msra.mxu0 %v1691
  %1693 = vmatprep.subr.mxu0 0.0
  %v1694 = vand.u32 %v46, 4294901760
  %1695 = vmatpush1.msra.mxu0 %v1694
  %1696 = vmatprep.subr.mxu0 0.0
  %v1697 = vand.u32 %v45, 4294901760
  %1698 = vmatpush1.msra.mxu0 %v1697
  %1699 = vmatprep.subr.mxu0 0.0
  %v1700 = vand.u32 %v44, 4294901760
  %1701 = vmatpush1.msra.mxu0 %v1700
  %1702 = vmatprep.subr.mxu0 0.0
  %v1703 = vand.u32 %v43, 4294901760
  %1704 = vmatpush1.msra.mxu0 %v1703
  %1705 = vmatprep.subr.mxu0 0.0
  %v1706 = vand.u32 %v42, 4294901760
  %1707 = vmatpush1.msra.mxu0 %v1706
  %1708 = vmatprep.subr.mxu0 0.0
  %1709 = vmatpush2.msra.mxu0 0.0
  %1710 = vmatprep.subr.mxu0 0.0
  %1711 = vmatpush2.msra.mxu0 0.0
  %1712 = vmatprep.subr.mxu0 0.0
  %1713 = vmatpush2.msra.mxu0 0.0
  %1714 = vmatprep.subr.mxu0 0.0
  %1715 = vmatpush2.msra.mxu0 0.0
  %1716 = vmatprep.subr.mxu0 0.0
  %1717 = vmatpush2.msra.mxu0 0.0
  %1718 = vmatprep.subr.mxu0 0.0
  %1719 = vmatpush2.msra.mxu0 0.0
  %1720 = vmatprep.subr.mxu0 0.0
  %1721 = vmatpush2.msra.mxu0 0.0
  %1722 = vmatprep.subr.mxu0 0.0
  %1723 = vmatpush2.msra.mxu0 0.0
  %1724 = vmatprep.subr.mxu0 0.0
  %1725 = vmatpush2.msra.mxu0 0.0
  %1726 = vmatprep.subr.mxu0 0.0
  %1727 = vmatpush2.msra.mxu0 0.0
  %1728 = vmatprep.subr.mxu0 0.0
  %1729 = vmatpush2.msra.mxu0 0.0
  %1730 = vmatprep.subr.mxu0 0.0
  %1731 = vmatpush2.msra.mxu0 0.0
  %1732 = vmatprep.subr.mxu0 0.0
  %1733 = vmatpush2.msra.mxu0 0.0
  %1734 = vmatprep.subr.mxu0 0.0
  %1735 = vmatpush2.msra.mxu0 0.0
  %1736 = vmatprep.subr.mxu0 0.0
  %1737 = vmatpush2.msra.mxu0 0.0
  %1738 = vmatprep.subr.mxu0 0.0
  %1739 = vmatpush2.msra.mxu0 0.0
  %1740 = vmatprep.mubr.f32.mxu0 0.0
  %v1741 = vand.u32 %v1306, 4294901760
  %v1742 = vsub.f32 %v1306, %v1741
  %v1743 = vand.u32 %v1742, 4294901760
  %1744 = vmatmul.mubr.f32.gmra.mxu0 %v1743
  %v1745 = vpop.f32.mrf.mxu0
  %v1746 = vadd.f32 %v1644, %v1745
  %v1747 = vpop.f32.mrf.mxu0
  %1748 = vmatprep.mubr.f32.mxu0 0.0
  %v1749 = vand.u32 %v1309, 4294901760
  %v1750 = vsub.f32 %v1309, %v1749
  %v1751 = vand.u32 %v1750, 4294901760
  %1752 = vmatmul.mubr.f32.gmra.mxu0 %v1751
  %v1753 = vpop.f32.mrf.mxu0
  %v1754 = vadd.f32 %v1651, %v1753
  %v1755 = vpop.f32.mrf.mxu0
  %1756 = vmatprep.mubr.f32.mxu0 0.0
  %v1757 = vand.u32 %v1312, 4294901760
  %v1758 = vsub.f32 %v1312, %v1757
  %v1759 = vand.u32 %v1758, 4294901760
  %1760 = vmatmul.mubr.f32.gmra.mxu0 %v1759
  %v1761 = vpop.f32.mrf.mxu0
  %v1762 = vadd.f32 %v1658, %v1761
  %v1763 = vpop.f32.mrf.mxu0
  %1764 = vmatprep.mubr.f32.mxu0 0.0
  %v1765 = vand.u32 %v1315, 4294901760
  %v1766 = vsub.f32 %v1315, %v1765
  %v1767 = vand.u32 %v1766, 4294901760
  %1768 = vmatmul.mubr.f32.gmra.mxu0 %v1767
  %v1769 = vpop.f32.mrf.mxu0
  %v1770 = vadd.f32 %v1665, %v1769
  %v1771 = vpop.f32.mrf.mxu0
  %1772 = vdwg.mxu0
  %1773 = vmatprep.subr.mxu0 0.0
  %1774 = vmatpush1.msra.mxu0 0.0
  %1775 = vmatprep.subr.mxu0 0.0
  %1776 = vmatpush1.msra.mxu0 0.0
  %1777 = vmatprep.subr.mxu0 0.0
  %1778 = vmatpush1.msra.mxu0 0.0
  %1779 = vmatprep.subr.mxu0 0.0
  %1780 = vmatpush1.msra.mxu0 0.0
  %1781 = vmatprep.subr.mxu0 0.0
  %1782 = vmatpush1.msra.mxu0 0.0
  %1783 = vmatprep.subr.mxu0 0.0
  %1784 = vmatpush1.msra.mxu0 0.0
  %1785 = vmatprep.subr.mxu0 0.0
  %1786 = vmatpush1.msra.mxu0 0.0
  %1787 = vmatprep.subr.mxu0 0.0
  %1788 = vmatpush1.msra.mxu0 0.0
  %1789 = vmatprep.subr.mxu0 0.0
  %v1790 = vand.u32 %v49, 4294901760
  %v1791 = vsub.f32 %v49, %v1790
  %v1792 = vand.u32 %v1791, 4294901760
  %1793 = vmatpush1.msra.mxu0 %v1792
  %1794 = vmatprep.subr.mxu0 0.0
  %v1795 = vand.u32 %v48, 4294901760
  %v1796 = vsub.f32 %v48, %v1795
  %v1797 = vand.u32 %v1796, 4294901760
  %1798 = vmatpush1.msra.mxu0 %v1797
  %1799 = vmatprep.subr.mxu0 0.0
  %v1800 = vand.u32 %v47, 4294901760
  %v1801 = vsub.f32 %v47, %v1800
  %v1802 = vand.u32 %v1801, 4294901760
  %1803 = vmatpush1.msra.mxu0 %v1802
  %1804 = vmatprep.subr.mxu0 0.0
  %v1805 = vand.u32 %v46, 4294901760
  %v1806 = vsub.f32 %v46, %v1805
  %v1807 = vand.u32 %v1806, 4294901760
  %1808 = vmatpush1.msra.mxu0 %v1807
  %1809 = vmatprep.subr.mxu0 0.0
  %v1810 = vand.u32 %v45, 4294901760
  %v1811 = vsub.f32 %v45, %v1810
  %v1812 = vand.u32 %v1811, 4294901760
  %1813 = vmatpush1.msra.mxu0 %v1812
  %1814 = vmatprep.subr.mxu0 0.0
  %v1815 = vand.u32 %v44, 4294901760
  %v1816 = vsub.f32 %v44, %v1815
  %v1817 = vand.u32 %v1816, 4294901760
  %1818 = vmatpush1.msra.mxu0 %v1817
  %1819 = vmatprep.subr.mxu0 0.0
  %v1820 = vand.u32 %v43, 4294901760
  %v1821 = vsub.f32 %v43, %v1820
  %v1822 = vand.u32 %v1821, 4294901760
  %1823 = vmatpush1.msra.mxu0 %v1822
  %1824 = vmatprep.subr.mxu0 0.0
  %v1825 = vand.u32 %v42, 4294901760
  %v1826 = vsub.f32 %v42, %v1825
  %v1827 = vand.u32 %v1826, 4294901760
  %1828 = vmatpush1.msra.mxu0 %v1827
  %1829 = vmatprep.subr.mxu0 0.0
  %1830 = vmatpush2.msra.mxu0 0.0
  %1831 = vmatprep.subr.mxu0 0.0
  %1832 = vmatpush2.msra.mxu0 0.0
  %1833 = vmatprep.subr.mxu0 0.0
  %1834 = vmatpush2.msra.mxu0 0.0
  %1835 = vmatprep.subr.mxu0 0.0
  %1836 = vmatpush2.msra.mxu0 0.0
  %1837 = vmatprep.subr.mxu0 0.0
  %1838 = vmatpush2.msra.mxu0 0.0
  %1839 = vmatprep.subr.mxu0 0.0
  %1840 = vmatpush2.msra.mxu0 0.0
  %1841 = vmatprep.subr.mxu0 0.0
  %1842 = vmatpush2.msra.mxu0 0.0
  %1843 = vmatprep.subr.mxu0 0.0
  %1844 = vmatpush2.msra.mxu0 0.0
  %1845 = vmatprep.subr.mxu0 0.0
  %1846 = vmatpush2.msra.mxu0 0.0
  %1847 = vmatprep.subr.mxu0 0.0
  %1848 = vmatpush2.msra.mxu0 0.0
  %1849 = vmatprep.subr.mxu0 0.0
  %1850 = vmatpush2.msra.mxu0 0.0
  %1851 = vmatprep.subr.mxu0 0.0
  %1852 = vmatpush2.msra.mxu0 0.0
  %1853 = vmatprep.subr.mxu0 0.0
  %1854 = vmatpush2.msra.mxu0 0.0
  %1855 = vmatprep.subr.mxu0 0.0
  %1856 = vmatpush2.msra.mxu0 0.0
  %1857 = vmatprep.subr.mxu0 0.0
  %1858 = vmatpush2.msra.mxu0 0.0
  %1859 = vmatprep.subr.mxu0 0.0
  %1860 = vmatpush2.msra.mxu0 0.0
  %1861 = vmatprep.mubr.f32.mxu0 0.0
  %v1862 = vand.u32 %v1306, 4294901760
  %1863 = vmatmul.mubr.f32.gmra.mxu0 %v1862
  %v1864 = vpop.f32.mrf.mxu0
  %v1865 = vadd.f32 %v1746, %v1864
  %v1866 = vpop.f32.mrf.mxu0
  %1867 = vmatprep.mubr.f32.mxu0 0.0
  %v1868 = vand.u32 %v1309, 4294901760
  %1869 = vmatmul.mubr.f32.gmra.mxu0 %v1868
  %v1870 = vpop.f32.mrf.mxu0
  %v1871 = vadd.f32 %v1754, %v1870
  %v1872 = vpop.f32.mrf.mxu0
  %1873 = vmatprep.mubr.f32.mxu0 0.0
  %v1874 = vand.u32 %v1312, 4294901760
  %1875 = vmatmul.mubr.f32.gmra.mxu0 %v1874
  %v1876 = vpop.f32.mrf.mxu0
  %v1877 = vadd.f32 %v1762, %v1876
  %v1878 = vpop.f32.mrf.mxu0
  %1879 = vmatprep.mubr.f32.mxu0 0.0
  %v1880 = vand.u32 %v1315, 4294901760
  %1881 = vmatmul.mubr.f32.gmra.mxu0 %v1880
  %v1882 = vpop.f32.mrf.mxu0
  %v1883 = vadd.f32 %v1770, %v1882
  %v1884 = vpop.f32.mrf.mxu0
  %1885 = vdwg.mxu0
  %1886 = vmatprep.subr.mxu0 0.0
  %1887 = vmatpush1.msra.mxu0 0.0
  %1888 = vmatprep.subr.mxu0 0.0
  %1889 = vmatpush1.msra.mxu0 0.0
  %1890 = vmatprep.subr.mxu0 0.0
  %1891 = vmatpush1.msra.mxu0 0.0
  %1892 = vmatprep.subr.mxu0 0.0
  %1893 = vmatpush1.msra.mxu0 0.0
  %1894 = vmatprep.subr.mxu0 0.0
  %1895 = vmatpush1.msra.mxu0 0.0
  %1896 = vmatprep.subr.mxu0 0.0
  %1897 = vmatpush1.msra.mxu0 0.0
  %1898 = vmatprep.subr.mxu0 0.0
  %1899 = vmatpush1.msra.mxu0 0.0
  %1900 = vmatprep.subr.mxu0 0.0
  %1901 = vmatpush1.msra.mxu0 0.0
  %1902 = vmatprep.subr.mxu0 0.0
  %v1903 = vand.u32 %v49, 4294901760
  %1904 = vmatpush1.msra.mxu0 %v1903
  %1905 = vmatprep.subr.mxu0 0.0
  %v1906 = vand.u32 %v48, 4294901760
  %1907 = vmatpush1.msra.mxu0 %v1906
  %1908 = vmatprep.subr.mxu0 0.0
  %v1909 = vand.u32 %v47, 4294901760
  %1910 = vmatpush1.msra.mxu0 %v1909
  %1911 = vmatprep.subr.mxu0 0.0
  %v1912 = vand.u32 %v46, 4294901760
  %1913 = vmatpush1.msra.mxu0 %v1912
  %1914 = vmatprep.subr.mxu0 0.0
  %v1915 = vand.u32 %v45, 4294901760
  %1916 = vmatpush1.msra.mxu0 %v1915
  %1917 = vmatprep.subr.mxu0 0.0
  %v1918 = vand.u32 %v44, 4294901760
  %1919 = vmatpush1.msra.mxu0 %v1918
  %1920 = vmatprep.subr.mxu0 0.0
  %v1921 = vand.u32 %v43, 4294901760
  %1922 = vmatpush1.msra.mxu0 %v1921
  %1923 = vmatprep.subr.mxu0 0.0
  %v1924 = vand.u32 %v42, 4294901760
  %1925 = vmatpush1.msra.mxu0 %v1924
  %1926 = vmatprep.subr.mxu0 0.0
  %1927 = vmatpush2.msra.mxu0 0.0
  %1928 = vmatprep.subr.mxu0 0.0
  %1929 = vmatpush2.msra.mxu0 0.0
  %1930 = vmatprep.subr.mxu0 0.0
  %1931 = vmatpush2.msra.mxu0 0.0
  %1932 = vmatprep.subr.mxu0 0.0
  %1933 = vmatpush2.msra.mxu0 0.0
  %1934 = vmatprep.subr.mxu0 0.0
  %1935 = vmatpush2.msra.mxu0 0.0
  %1936 = vmatprep.subr.mxu0 0.0
  %1937 = vmatpush2.msra.mxu0 0.0
  %1938 = vmatprep.subr.mxu0 0.0
  %1939 = vmatpush2.msra.mxu0 0.0
  %1940 = vmatprep.subr.mxu0 0.0
  %1941 = vmatpush2.msra.mxu0 0.0
  %1942 = vmatprep.subr.mxu0 0.0
  %1943 = vmatpush2.msra.mxu0 0.0
  %1944 = vmatprep.subr.mxu0 0.0
  %1945 = vmatpush2.msra.mxu0 0.0
  %1946 = vmatprep.subr.mxu0 0.0
  %1947 = vmatpush2.msra.mxu0 0.0
  %1948 = vmatprep.subr.mxu0 0.0
  %1949 = vmatpush2.msra.mxu0 0.0
  %1950 = vmatprep.subr.mxu0 0.0
  %1951 = vmatpush2.msra.mxu0 0.0
  %1952 = vmatprep.subr.mxu0 0.0
  %1953 = vmatpush2.msra.mxu0 0.0
  %1954 = vmatprep.subr.mxu0 0.0
  %1955 = vmatpush2.msra.mxu0 0.0
  %1956 = vmatprep.subr.mxu0 0.0
  %1957 = vmatpush2.msra.mxu0 0.0
  %1958 = vmatprep.mubr.f32.mxu0 0.0
  %v1959 = vand.u32 %v1306, 4294901760
  %1960 = vmatmul.mubr.f32.gmra.mxu0 %v1959
  %v1961 = vpop.f32.mrf.mxu0
  %v1962 = vadd.f32 %v1865, %v1961
  %v1963 = vpop.f32.mrf.mxu0
  %1964 = vmatprep.mubr.f32.mxu0 0.0
  %v1965 = vand.u32 %v1309, 4294901760
  %1966 = vmatmul.mubr.f32.gmra.mxu0 %v1965
  %v1967 = vpop.f32.mrf.mxu0
  %v1968 = vadd.f32 %v1871, %v1967
  %v1969 = vpop.f32.mrf.mxu0
  %1970 = vmatprep.mubr.f32.mxu0 0.0
  %v1971 = vand.u32 %v1312, 4294901760
  %1972 = vmatmul.mubr.f32.gmra.mxu0 %v1971
  %v1973 = vpop.f32.mrf.mxu0
  %v1974 = vadd.f32 %v1877, %v1973
  %v1975 = vpop.f32.mrf.mxu0
  %1976 = vmatprep.mubr.f32.mxu0 0.0
  %v1977 = vand.u32 %v1315, 4294901760
  %1978 = vmatmul.mubr.f32.gmra.mxu0 %v1977
  %v1979 = vpop.f32.mrf.mxu0
  %v1980 = vadd.f32 %v1883, %v1979
  %v1981 = vpop.f32.mrf.mxu0
  %1982 = vdwg.mxu0
  %v1983 = vsel %vm50, %v1962, 0.0
  %v1984 = vsel %vm50, %v1968, 0.0
  %v1985 = vadd.f32 %v1983, %v1984
  %v1986 = vsel %vm50, %v1974, 0.0
  %v1987 = vadd.f32 %v1985, %v1986
  %v1988 = vsel %vm50, %v1980, 0.0
  %v1989 = vadd.f32 %v1987, %v1988
  %v1990 = vrot.slane %v1989, 4
  %v1991 = vadd.f32 %v1989, %v1990
  %v1992 = vrot.slane %v1991, 2
  %v1993 = vadd.f32 %v1991, %v1992
  %v1994 = vrot.slane %v1993, 1
  %v1995 = vadd.f32 %v1993, %v1994
  %v1996 = vmul.f32 %v1995, 0.001953125
  %v1997 = vadd.f32 %v1996, 1e-05
  %v1998 = vrsqrt.pop %v1997
  %v1999 = vmul.f32 %v1297, %v1998
  %v2000 = vmul.f32 %v1298, %v1998
  %v2001 = vmul.f32 %v1299, %v1998
  %v2002 = vmul.f32 %v1300, %v1998
  %v2004 = vlaneseq
  %v2005 = vshrl.u32 %v2004, 7
  %v2006 = vsub.s32 0, %v2005
  %v2007 = vrot.slane %v603, %v2006
  %v2009 = vmul.f32 %v1999, %v2007
  %v2010 = vmul.f32 %v2000, %v2007
  %v2011 = vmul.f32 %v2001, %v2007
  %v2012 = vmul.f32 %v2002, %v2007
  %v2014 = vlaneseq
  %v2015 = vshrl.u32 %v2014, 7
  %v2016 = vsub.s32 0, %v2015
  %v2017 = vrot.slane %v604, %v2016
  %v2019 = vadd.f32 %v2009, %v2017
  %v2020 = vadd.f32 %v2010, %v2017
  %v2021 = vadd.f32 %v2011, %v2017
  %v2022 = vadd.f32 %v2012, %v2017
  %2023 = vst.msk [vmem:[#allocation2 + $0x2] sm:$0xff] %vm50, %v2019
  %2024 = vst.msk [vmem:[#allocation2 + $0xa] sm:$0xff] %vm50, %v2020
  %2025 = vst.msk [vmem:[#allocation2 + $0x1a] sm:$0xff] %vm50, %v2021
  %2026 = vst.msk [vmem:[#allocation2 + $0x22] sm:$0xff] %vm50, %v2022
  %v2027 = vld [vmem:[#allocation2] sm:$0xff]
  %v2028 = vld [vmem:[#allocation2 + $0x8] sm:$0xff]
  %v2029 = vld [vmem:[#allocation2 + $0x10] sm:$0xf]
  %v2030 = vld [vmem:[#allocation2 + $0x18] sm:$0xff]
  %v2031 = vld [vmem:[#allocation2 + $0x20] sm:$0xff]
  %v2032 = vld [vmem:[#allocation2 + $0x28] sm:$0xf]
  %v2033 = vpack.c.bf16 %v2028, %v2027
  %v2034 = vpack.c.bf16 %v2031, %v2030
  %v2035 = vld [vmem:[%s5] sm:$0xf]
  %v2036 = vld [vmem:[%s5 + $0x4] sm:$0xf]
  %v2037 = vld [vmem:[%s5 + $0x8] sm:$0xf]
  %v2038 = vld [vmem:[%s5 + $0xc] sm:$0xf]
  %v2039 = vld [vmem:[%s5 + $0x10] sm:$0xf]
  %v2040 = vld [vmem:[%s5 + $0x14] sm:$0xf]
  %v2041 = vld [vmem:[%s5 + $0x18] sm:$0xf]
  %v2042 = vld [vmem:[%s5 + $0x1c] sm:$0xf]
  %v2049 = vrot.slane %v2027, 1
  %v2050 = vrot.slane %v2028, 1
  %v2051 = vsel %vm77, %v2049, %v2050
  %v2052 = vrot.slane %v2029, 1
  %v2053 = vsel %vm77, %v2050, %v2052
  %v2054 = vrot.slane %v2030, 1
  %v2055 = vrot.slane %v2031, 1
  %v2056 = vsel %vm77, %v2054, %v2055
  %v2057 = vrot.slane %v2032, 1
  %v2058 = vsel %vm77, %v2055, %v2057
  %v2063 = vpack.c.bf16 %v2053, %v2051
  %v2064 = vpack.c.bf16 %v2058, %v2056
  %s2065 = scalar_lea.vmem %s5, 32
  %v2066 = vld [vmem:[%s2065] sm:$0xf]
  %v2067 = vld [vmem:[%s2065 + $0x4] sm:$0xf]
  %v2068 = vld [vmem:[%s2065 + $0x8] sm:$0xf]
  %v2069 = vld [vmem:[%s2065 + $0xc] sm:$0xf]
  %v2070 = vld [vmem:[%s2065 + $0x10] sm:$0xf]
  %v2071 = vld [vmem:[%s2065 + $0x14] sm:$0xf]
  %v2072 = vld [vmem:[%s2065 + $0x18] sm:$0xf]
  %v2073 = vld [vmem:[%s2065 + $0x1c] sm:$0xf]
  %v2082 = vunpack.c.l.b16 %v2066
  %v2083 = vunpack.c.l.b16 %v2067
  %v2084 = vunpack.c.l.b16 %v2068
  %v2085 = vunpack.c.l.b16 %v2069
  %v2086 = vunpack.c.l.b16 %v2070
  %v2087 = vunpack.c.l.b16 %v2071
  %v2088 = vunpack.c.l.b16 %v2072
  %v2089 = vunpack.c.l.b16 %v2073
  %v2090 = vpack.c.b16 %v2083, %v2082
  %v2091 = vpack.c.b16 %v2085, %v2084
  %v2092 = vpack.c.b16 %v2087, %v2086
  %v2093 = vpack.c.b16 %v2089, %v2088
  %v2099 = vsel %vm50, %v2063, 0
  %v2102 = vsel %vm50, %v2064, 0
  %2104 = vmatprep.subr.bf16.mxu0 0
  %2105 = vmatpush1.bf16.msra.mxu0 0
  %2106 = vmatprep.subr.bf16.mxu0 0
  %2107 = vmatpush1.bf16.msra.mxu0 0
  %2108 = vmatprep.subr.bf16.mxu0 0
  %2109 = vmatpush1.bf16.msra.mxu0 0
  %2110 = vmatprep.subr.bf16.mxu0 0
  %2111 = vmatpush1.bf16.msra.mxu0 0
  %2112 = vmatprep.subr.bf16.mxu0 0
  %2113 = vmatpush1.bf16.msra.mxu0 %v2093
  %2114 = vmatprep.subr.bf16.mxu0 0
  %2115 = vmatpush1.bf16.msra.mxu0 %v2092
  %2116 = vmatprep.subr.bf16.mxu0 0
  %2117 = vmatpush1.bf16.msra.mxu0 %v2091
  %2118 = vmatprep.subr.bf16.mxu0 0
  %2119 = vmatpush1.bf16.msra.mxu0 %v2090
  %2120 = vmatprep.subr.bf16.mxu0 0
  %2121 = vmatpush2.bf16.msra.mxu0 0
  %2122 = vmatprep.subr.bf16.mxu0 0
  %2123 = vmatpush2.bf16.msra.mxu0 0
  %2124 = vmatprep.subr.bf16.mxu0 0
  %2125 = vmatpush2.bf16.msra.mxu0 0
  %2126 = vmatprep.subr.bf16.mxu0 0
  %2127 = vmatpush2.bf16.msra.mxu0 0
  %2128 = vmatprep.subr.bf16.mxu0 0
  %2129 = vmatpush2.bf16.msra.mxu0 0
  %2130 = vmatprep.subr.bf16.mxu0 0
  %2131 = vmatpush2.bf16.msra.mxu0 0
  %2132 = vmatprep.subr.bf16.mxu0 0
  %2133 = vmatpush2.bf16.msra.mxu0 0
  %2134 = vmatprep.subr.bf16.mxu0 0
  %2135 = vmatpush2.bf16.msra.mxu0 0
  %2136 = vmatprep.mubr.bf16.mxu0 0
  %2137 = vmatmul.mubr.bf16.gmra.mxu0 %v2099
  %v2138 = vpop.f32.mrf.mxu0
  %v2139 = vadd.f32 0.0, %v2138
  %v2140 = vpop.f32.mrf.mxu0
  %v2141 = vpop.f32.mrf.mxu0
  %v2142 = vadd.f32 0.0, %v2141
  %v2143 = vpop.f32.mrf.mxu0
  %2144 = vmatprep.mubr.bf16.mxu0 0
  %2145 = vmatmul.mubr.bf16.gmra.mxu0 %v2102
  %v2146 = vpop.f32.mrf.mxu0
  %v2147 = vadd.f32 0.0, %v2146
  %v2148 = vpop.f32.mrf.mxu0
  %v2149 = vpop.f32.mrf.mxu0
  %v2150 = vadd.f32 0.0, %v2149
  %v2151 = vpop.f32.mrf.mxu0
  %2152 = vdwg.mxu0
  %v2161 = vunpack.c.l.b16 %v2035
  %v2162 = vunpack.c.l.b16 %v2036
  %v2163 = vunpack.c.l.b16 %v2037
  %v2164 = vunpack.c.l.b16 %v2038
  %v2165 = vunpack.c.l.b16 %v2039
  %v2166 = vunpack.c.l.b16 %v2040
  %v2167 = vunpack.c.l.b16 %v2041
  %v2168 = vunpack.c.l.b16 %v2042
  %v2169 = vpack.c.b16 %v2162, %v2161
  %v2170 = vpack.c.b16 %v2164, %v2163
  %v2171 = vpack.c.b16 %v2166, %v2165
  %v2172 = vpack.c.b16 %v2168, %v2167
  %v2178 = vsel %vm50, %v2033, 0
  %v2181 = vsel %vm50, %v2034, 0
  %2183 = vmatprep.subr.bf16.mxu0 0
  %2184 = vmatpush1.bf16.msra.mxu0 0
  %2185 = vmatprep.subr.bf16.mxu0 0
  %2186 = vmatpush1.bf16.msra.mxu0 0
  %2187 = vmatprep.subr.bf16.mxu0 0
  %2188 = vmatpush1.bf16.msra.mxu0 0
  %2189 = vmatprep.subr.bf16.mxu0 0
  %2190 = vmatpush1.bf16.msra.mxu0 0
  %2191 = vmatprep.subr.bf16.mxu0 0
  %2192 = vmatpush1.bf16.msra.mxu0 %v2172
  %2193 = vmatprep.subr.bf16.mxu0 0
  %2194 = vmatpush1.bf16.msra.mxu0 %v2171
  %2195 = vmatprep.subr.bf16.mxu0 0
  %2196 = vmatpush1.bf16.msra.mxu0 %v2170
  %2197 = vmatprep.subr.bf16.mxu0 0
  %2198 = vmatpush1.bf16.msra.mxu0 %v2169
  %2199 = vmatprep.subr.bf16.mxu0 0
  %2200 = vmatpush2.bf16.msra.mxu0 0
  %2201 = vmatprep.subr.bf16.mxu0 0
  %2202 = vmatpush2.bf16.msra.mxu0 0
  %2203 = vmatprep.subr.bf16.mxu0 0
  %2204 = vmatpush2.bf16.msra.mxu0 0
  %2205 = vmatprep.subr.bf16.mxu0 0
  %2206 = vmatpush2.bf16.msra.mxu0 0
  %2207 = vmatprep.subr.bf16.mxu0 0
  %2208 = vmatpush2.bf16.msra.mxu0 0
  %2209 = vmatprep.subr.bf16.mxu0 0
  %2210 = vmatpush2.bf16.msra.mxu0 0
  %2211 = vmatprep.subr.bf16.mxu0 0
  %2212 = vmatpush2.bf16.msra.mxu0 0
  %2213 = vmatprep.subr.bf16.mxu0 0
  %2214 = vmatpush2.bf16.msra.mxu0 0
  %2215 = vmatprep.mubr.bf16.mxu0 0
  %2216 = vmatmul.mubr.bf16.gmra.mxu0 %v2178
  %v2217 = vpop.f32.mrf.mxu0
  %v2218 = vadd.f32 %v2139, %v2217
  %v2219 = vpop.f32.mrf.mxu0
  %v2220 = vpop.f32.mrf.mxu0
  %v2221 = vadd.f32 %v2142, %v2220
  %v2222 = vpop.f32.mrf.mxu0
  %2223 = vmatprep.mubr.bf16.mxu0 0
  %2224 = vmatmul.mubr.bf16.gmra.mxu0 %v2181
  %v2225 = vpop.f32.mrf.mxu0
  %v2226 = vadd.f32 %v2147, %v2225
  %v2227 = vpop.f32.mrf.mxu0
  %v2228 = vpop.f32.mrf.mxu0
  %v2229 = vadd.f32 %v2150, %v2228
  %v2230 = vpop.f32.mrf.mxu0
  %2231 = vdwg.mxu0
  %v2232 = vrot.slane %v2027, 2
  %v2233 = vrot.slane %v2028, 2
  %v2234 = vsel %vm261, %v2232, %v2233
  %v2235 = vrot.slane %v2029, 2
  %v2236 = vsel %vm261, %v2233, %v2235
  %v2237 = vrot.slane %v2030, 2
  %v2238 = vrot.slane %v2031, 2
  %v2239 = vsel %vm261, %v2237, %v2238
  %v2240 = vrot.slane %v2032, 2
  %v2241 = vsel %vm261, %v2238, %v2240
  %v2246 = vpack.c.bf16 %v2236, %v2234
  %v2247 = vpack.c.bf16 %v2241, %v2239
  %s2248 = scalar_lea.vmem %s5, 64
  %v2249 = vld [vmem:[%s2248] sm:$0xf]
  %v2250 = vld [vmem:[%s2248 + $0x4] sm:$0xf]
  %v2251 = vld [vmem:[%s2248 + $0x8] sm:$0xf]
  %v2252 = vld [vmem:[%s2248 + $0xc] sm:$0xf]
  %v2253 = vld [vmem:[%s2248 + $0x10] sm:$0xf]
  %v2254 = vld [vmem:[%s2248 + $0x14] sm:$0xf]
  %v2255 = vld [vmem:[%s2248 + $0x18] sm:$0xf]
  %v2256 = vld [vmem:[%s2248 + $0x1c] sm:$0xf]
  %v2265 = vunpack.c.l.b16 %v2249
  %v2266 = vunpack.c.l.b16 %v2250
  %v2267 = vunpack.c.l.b16 %v2251
  %v2268 = vunpack.c.l.b16 %v2252
  %v2269 = vunpack.c.l.b16 %v2253
  %v2270 = vunpack.c.l.b16 %v2254
  %v2271 = vunpack.c.l.b16 %v2255
  %v2272 = vunpack.c.l.b16 %v2256
  %v2273 = vpack.c.b16 %v2266, %v2265
  %v2274 = vpack.c.b16 %v2268, %v2267
  %v2275 = vpack.c.b16 %v2270, %v2269
  %v2276 = vpack.c.b16 %v2272, %v2271
  %v2282 = vsel %vm50, %v2246, 0
  %v2285 = vsel %vm50, %v2247, 0
  %2287 = vmatprep.subr.bf16.mxu0 0
  %2288 = vmatpush1.bf16.msra.mxu0 0
  %2289 = vmatprep.subr.bf16.mxu0 0
  %2290 = vmatpush1.bf16.msra.mxu0 0
  %2291 = vmatprep.subr.bf16.mxu0 0
  %2292 = vmatpush1.bf16.msra.mxu0 0
  %2293 = vmatprep.subr.bf16.mxu0 0
  %2294 = vmatpush1.bf16.msra.mxu0 0
  %2295 = vmatprep.subr.bf16.mxu0 0
  %2296 = vmatpush1.bf16.msra.mxu0 %v2276
  %2297 = vmatprep.subr.bf16.mxu0 0
  %2298 = vmatpush1.bf16.msra.mxu0 %v2275
  %2299 = vmatprep.subr.bf16.mxu0 0
  %2300 = vmatpush1.bf16.msra.mxu0 %v2274
  %2301 = vmatprep.subr.bf16.mxu0 0
  %2302 = vmatpush1.bf16.msra.mxu0 %v2273
  %2303 = vmatprep.subr.bf16.mxu0 0
  %2304 = vmatpush2.bf16.msra.mxu0 0
  %2305 = vmatprep.subr.bf16.mxu0 0
  %2306 = vmatpush2.bf16.msra.mxu0 0
  %2307 = vmatprep.subr.bf16.mxu0 0
  %2308 = vmatpush2.bf16.msra.mxu0 0
  %2309 = vmatprep.subr.bf16.mxu0 0
  %2310 = vmatpush2.bf16.msra.mxu0 0
  %2311 = vmatprep.subr.bf16.mxu0 0
  %2312 = vmatpush2.bf16.msra.mxu0 0
  %2313 = vmatprep.subr.bf16.mxu0 0
  %2314 = vmatpush2.bf16.msra.mxu0 0
  %2315 = vmatprep.subr.bf16.mxu0 0
  %2316 = vmatpush2.bf16.msra.mxu0 0
  %2317 = vmatprep.subr.bf16.mxu0 0
  %2318 = vmatpush2.bf16.msra.mxu0 0
  %2319 = vmatprep.mubr.bf16.mxu0 0
  %2320 = vmatmul.mubr.bf16.gmra.mxu0 %v2282
  %v2321 = vpop.f32.mrf.mxu0
  %v2322 = vadd.f32 0.0, %v2321
  %v2323 = vpop.f32.mrf.mxu0
  %v2324 = vpop.f32.mrf.mxu0
  %v2325 = vadd.f32 0.0, %v2324
  %v2326 = vpop.f32.mrf.mxu0
  %2327 = vmatprep.mubr.bf16.mxu0 0
  %2328 = vmatmul.mubr.bf16.gmra.mxu0 %v2285
  %v2329 = vpop.f32.mrf.mxu0
  %v2330 = vadd.f32 0.0, %v2329
  %v2331 = vpop.f32.mrf.mxu0
  %v2332 = vpop.f32.mrf.mxu0
  %v2333 = vadd.f32 0.0, %v2332
  %v2334 = vpop.f32.mrf.mxu0
  %2335 = vdwg.mxu0
  %v2336 = vadd.f32 %v2218, %v2322
  %v2337 = vadd.f32 %v2221, %v2325
  %v2338 = vadd.f32 %v2226, %v2330
  %v2339 = vadd.f32 %v2229, %v2333
  %v2340 = vrot.slane %v2027, 3
  %v2341 = vrot.slane %v2028, 3
  %v2342 = vsel %vm370, %v2340, %v2341
  %v2343 = vrot.slane %v2029, 3
  %v2344 = vsel %vm370, %v2341, %v2343
  %v2345 = vrot.slane %v2030, 3
  %v2346 = vrot.slane %v2031, 3
  %v2347 = vsel %vm370, %v2345, %v2346
  %v2348 = vrot.slane %v2032, 3
  %v2349 = vsel %vm370, %v2346, %v2348
  %v2354 = vpack.c.bf16 %v2344, %v2342
  %v2355 = vpack.c.bf16 %v2349, %v2347
  %s2356 = scalar_lea.vmem %s5, 96
  %v2357 = vld [vmem:[%s2356] sm:$0xf]
  %v2358 = vld [vmem:[%s2356 + $0x4] sm:$0xf]
  %v2359 = vld [vmem:[%s2356 + $0x8] sm:$0xf]
  %v2360 = vld [vmem:[%s2356 + $0xc] sm:$0xf]
  %v2361 = vld [vmem:[%s2356 + $0x10] sm:$0xf]
  %v2362 = vld [vmem:[%s2356 + $0x14] sm:$0xf]
  %v2363 = vld [vmem:[%s2356 + $0x18] sm:$0xf]
  %v2364 = vld [vmem:[%s2356 + $0x1c] sm:$0xf]
  %v2373 = vunpack.c.l.b16 %v2357
  %v2374 = vunpack.c.l.b16 %v2358
  %v2375 = vunpack.c.l.b16 %v2359
  %v2376 = vunpack.c.l.b16 %v2360
  %v2377 = vunpack.c.l.b16 %v2361
  %v2378 = vunpack.c.l.b16 %v2362
  %v2379 = vunpack.c.l.b16 %v2363
  %v2380 = vunpack.c.l.b16 %v2364
  %v2381 = vpack.c.b16 %v2374, %v2373
  %v2382 = vpack.c.b16 %v2376, %v2375
  %v2383 = vpack.c.b16 %v2378, %v2377
  %v2384 = vpack.c.b16 %v2380, %v2379
  %v2390 = vsel %vm50, %v2354, 0
  %v2393 = vsel %vm50, %v2355, 0
  %2395 = vmatprep.subr.bf16.mxu0 0
  %2396 = vmatpush1.bf16.msra.mxu0 0
  %2397 = vmatprep.subr.bf16.mxu0 0
  %2398 = vmatpush1.bf16.msra.mxu0 0
  %2399 = vmatprep.subr.bf16.mxu0 0
  %2400 = vmatpush1.bf16.msra.mxu0 0
  %2401 = vmatprep.subr.bf16.mxu0 0
  %2402 = vmatpush1.bf16.msra.mxu0 0
  %2403 = vmatprep.subr.bf16.mxu0 0
  %2404 = vmatpush1.bf16.msra.mxu0 %v2384
  %2405 = vmatprep.subr.bf16.mxu0 0
  %2406 = vmatpush1.bf16.msra.mxu0 %v2383
  %2407 = vmatprep.subr.bf16.mxu0 0
  %2408 = vmatpush1.bf16.msra.mxu0 %v2382
  %2409 = vmatprep.subr.bf16.mxu0 0
  %2410 = vmatpush1.bf16.msra.mxu0 %v2381
  %2411 = vmatprep.subr.bf16.mxu0 0
  %2412 = vmatpush2.bf16.msra.mxu0 0
  %2413 = vmatprep.subr.bf16.mxu0 0
  %2414 = vmatpush2.bf16.msra.mxu0 0
  %2415 = vmatprep.subr.bf16.mxu0 0
  %2416 = vmatpush2.bf16.msra.mxu0 0
  %2417 = vmatprep.subr.bf16.mxu0 0
  %2418 = vmatpush2.bf16.msra.mxu0 0
  %2419 = vmatprep.subr.bf16.mxu0 0
  %2420 = vmatpush2.bf16.msra.mxu0 0
  %2421 = vmatprep.subr.bf16.mxu0 0
  %2422 = vmatpush2.bf16.msra.mxu0 0
  %2423 = vmatprep.subr.bf16.mxu0 0
  %2424 = vmatpush2.bf16.msra.mxu0 0
  %2425 = vmatprep.subr.bf16.mxu0 0
  %2426 = vmatpush2.bf16.msra.mxu0 0
  %2427 = vmatprep.mubr.bf16.mxu0 0
  %2428 = vmatmul.mubr.bf16.gmra.mxu0 %v2390
  %v2429 = vpop.f32.mrf.mxu0
  %v2430 = vadd.f32 0.0, %v2429
  %v2431 = vpop.f32.mrf.mxu0
  %v2432 = vpop.f32.mrf.mxu0
  %v2433 = vadd.f32 0.0, %v2432
  %v2434 = vpop.f32.mrf.mxu0
  %2435 = vmatprep.mubr.bf16.mxu0 0
  %2436 = vmatmul.mubr.bf16.gmra.mxu0 %v2393
  %v2437 = vpop.f32.mrf.mxu0
  %v2438 = vadd.f32 0.0, %v2437
  %v2439 = vpop.f32.mrf.mxu0
  %v2440 = vpop.f32.mrf.mxu0
  %v2441 = vadd.f32 0.0, %v2440
  %v2442 = vpop.f32.mrf.mxu0
  %2443 = vdwg.mxu0
  %v2444 = vadd.f32 %v2336, %v2430
  %v2445 = vadd.f32 %v2337, %v2433
  %v2446 = vadd.f32 %v2338, %v2438
  %v2447 = vadd.f32 %v2339, %v2441
  %v2448 = vrot.slane %v2027, 4
  %v2449 = vrot.slane %v2028, 4
  %v2450 = vsel %vm479, %v2448, %v2449
  %v2451 = vrot.slane %v2029, 4
  %v2452 = vsel %vm479, %v2449, %v2451
  %v2453 = vrot.slane %v2030, 4
  %v2454 = vrot.slane %v2031, 4
  %v2455 = vsel %vm479, %v2453, %v2454
  %v2456 = vrot.slane %v2032, 4
  %v2457 = vsel %vm479, %v2454, %v2456
  %v2462 = vpack.c.bf16 %v2452, %v2450
  %v2463 = vpack.c.bf16 %v2457, %v2455
  %s2464 = scalar_lea.vmem %s5, 128
  %v2465 = vld [vmem:[%s2464] sm:$0xf]
  %v2466 = vld [vmem:[%s2464 + $0x4] sm:$0xf]
  %v2467 = vld [vmem:[%s2464 + $0x8] sm:$0xf]
  %v2468 = vld [vmem:[%s2464 + $0xc] sm:$0xf]
  %v2469 = vld [vmem:[%s2464 + $0x10] sm:$0xf]
  %v2470 = vld [vmem:[%s2464 + $0x14] sm:$0xf]
  %v2471 = vld [vmem:[%s2464 + $0x18] sm:$0xf]
  %v2472 = vld [vmem:[%s2464 + $0x1c] sm:$0xf]
  %v2481 = vunpack.c.l.b16 %v2465
  %v2482 = vunpack.c.l.b16 %v2466
  %v2483 = vunpack.c.l.b16 %v2467
  %v2484 = vunpack.c.l.b16 %v2468
  %v2485 = vunpack.c.l.b16 %v2469
  %v2486 = vunpack.c.l.b16 %v2470
  %v2487 = vunpack.c.l.b16 %v2471
  %v2488 = vunpack.c.l.b16 %v2472
  %v2489 = vpack.c.b16 %v2482, %v2481
  %v2490 = vpack.c.b16 %v2484, %v2483
  %v2491 = vpack.c.b16 %v2486, %v2485
  %v2492 = vpack.c.b16 %v2488, %v2487
  %v2498 = vsel %vm50, %v2462, 0
  %v2501 = vsel %vm50, %v2463, 0
  %2503 = vmatprep.subr.bf16.mxu0 0
  %2504 = vmatpush1.bf16.msra.mxu0 0
  %2505 = vmatprep.subr.bf16.mxu0 0
  %2506 = vmatpush1.bf16.msra.mxu0 0
  %2507 = vmatprep.subr.bf16.mxu0 0
  %2508 = vmatpush1.bf16.msra.mxu0 0
  %2509 = vmatprep.subr.bf16.mxu0 0
  %2510 = vmatpush1.bf16.msra.mxu0 0
  %2511 = vmatprep.subr.bf16.mxu0 0
  %2512 = vmatpush1.bf16.msra.mxu0 %v2492
  %2513 = vmatprep.subr.bf16.mxu0 0
  %2514 = vmatpush1.bf16.msra.mxu0 %v2491
  %2515 = vmatprep.subr.bf16.mxu0 0
  %2516 = vmatpush1.bf16.msra.mxu0 %v2490
  %2517 = vmatprep.subr.bf16.mxu0 0
  %2518 = vmatpush1.bf16.msra.mxu0 %v2489
  %2519 = vmatprep.subr.bf16.mxu0 0
  %2520 = vmatpush2.bf16.msra.mxu0 0
  %2521 = vmatprep.subr.bf16.mxu0 0
  %2522 = vmatpush2.bf16.msra.mxu0 0
  %2523 = vmatprep.subr.bf16.mxu0 0
  %2524 = vmatpush2.bf16.msra.mxu0 0
  %2525 = vmatprep.subr.bf16.mxu0 0
  %2526 = vmatpush2.bf16.msra.mxu0 0
  %2527 = vmatprep.subr.bf16.mxu0 0
  %2528 = vmatpush2.bf16.msra.mxu0 0
  %2529 = vmatprep.subr.bf16.mxu0 0
  %2530 = vmatpush2.bf16.msra.mxu0 0
  %2531 = vmatprep.subr.bf16.mxu0 0
  %2532 = vmatpush2.bf16.msra.mxu0 0
  %2533 = vmatprep.subr.bf16.mxu0 0
  %2534 = vmatpush2.bf16.msra.mxu0 0
  %2535 = vmatprep.mubr.bf16.mxu0 0
  %2536 = vmatmul.mubr.bf16.gmra.mxu0 %v2498
  %v2537 = vpop.f32.mrf.mxu0
  %v2538 = vadd.f32 0.0, %v2537
  %v2539 = vpop.f32.mrf.mxu0
  %v2540 = vpop.f32.mrf.mxu0
  %v2541 = vadd.f32 0.0, %v2540
  %v2542 = vpop.f32.mrf.mxu0
  %2543 = vmatprep.mubr.bf16.mxu0 0
  %2544 = vmatmul.mubr.bf16.gmra.mxu0 %v2501
  %v2545 = vpop.f32.mrf.mxu0
  %v2546 = vadd.f32 0.0, %v2545
  %v2547 = vpop.f32.mrf.mxu0
  %v2548 = vpop.f32.mrf.mxu0
  %v2549 = vadd.f32 0.0, %v2548
  %v2550 = vpop.f32.mrf.mxu0
  %2551 = vdwg.mxu0
  %v2552 = vadd.f32 %v2444, %v2538
  %v2553 = vadd.f32 %v2445, %v2541
  %v2554 = vadd.f32 %v2446, %v2546
  %v2555 = vadd.f32 %v2447, %v2549
  %v2556 = vld [vmem:[%s6] sm:$0x1]
  %v2557 = vld [vmem:[%s7] sm:$0x1]
  %v2559 = vsel %vm50, %v2552, 0
  %v2562 = vsel %vm50, %v2553, 0
  %v2565 = vsel %vm50, %v2554, 0
  %v2568 = vsel %vm50, %v2555, 0
  %2570 = vmatprep.subr.mxu0 0.0
  %2571 = vmatpush1.msra.mxu0 0.0
  %2572 = vmatprep.subr.mxu0 0.0
  %2573 = vmatpush1.msra.mxu0 0.0
  %2574 = vmatprep.subr.mxu0 0.0
  %2575 = vmatpush1.msra.mxu0 0.0
  %2576 = vmatprep.subr.mxu0 0.0
  %2577 = vmatpush1.msra.mxu0 0.0
  %2578 = vmatprep.subr.mxu0 0.0
  %2579 = vmatpush1.msra.mxu0 0.0
  %2580 = vmatprep.subr.mxu0 0.0
  %2581 = vmatpush1.msra.mxu0 0.0
  %2582 = vmatprep.subr.mxu0 0.0
  %2583 = vmatpush1.msra.mxu0 0.0
  %2584 = vmatprep.subr.mxu0 0.0
  %2585 = vmatpush1.msra.mxu0 0.0
  %2586 = vmatprep.subr.mxu0 0.0
  %v2587 = vand.u32 %v49, 4294901760
  %2588 = vmatpush1.msra.mxu0 %v2587
  %2589 = vmatprep.subr.mxu0 0.0
  %v2590 = vand.u32 %v48, 4294901760
  %2591 = vmatpush1.msra.mxu0 %v2590
  %2592 = vmatprep.subr.mxu0 0.0
  %v2593 = vand.u32 %v47, 4294901760
  %2594 = vmatpush1.msra.mxu0 %v2593
  %2595 = vmatprep.subr.mxu0 0.0
  %v2596 = vand.u32 %v46, 4294901760
  %2597 = vmatpush1.msra.mxu0 %v2596
  %2598 = vmatprep.subr.mxu0 0.0
  %v2599 = vand.u32 %v45, 4294901760
  %2600 = vmatpush1.msra.mxu0 %v2599
  %2601 = vmatprep.subr.mxu0 0.0
  %v2602 = vand.u32 %v44, 4294901760
  %2603 = vmatpush1.msra.mxu0 %v2602
  %2604 = vmatprep.subr.mxu0 0.0
  %v2605 = vand.u32 %v43, 4294901760
  %2606 = vmatpush1.msra.mxu0 %v2605
  %2607 = vmatprep.subr.mxu0 0.0
  %v2608 = vand.u32 %v42, 4294901760
  %2609 = vmatpush1.msra.mxu0 %v2608
  %2610 = vmatprep.subr.mxu0 0.0
  %2611 = vmatpush2.msra.mxu0 0.0
  %2612 = vmatprep.subr.mxu0 0.0
  %2613 = vmatpush2.msra.mxu0 0.0
  %2614 = vmatprep.subr.mxu0 0.0
  %2615 = vmatpush2.msra.mxu0 0.0
  %2616 = vmatprep.subr.mxu0 0.0
  %2617 = vmatpush2.msra.mxu0 0.0
  %2618 = vmatprep.subr.mxu0 0.0
  %2619 = vmatpush2.msra.mxu0 0.0
  %2620 = vmatprep.subr.mxu0 0.0
  %2621 = vmatpush2.msra.mxu0 0.0
  %2622 = vmatprep.subr.mxu0 0.0
  %2623 = vmatpush2.msra.mxu0 0.0
  %2624 = vmatprep.subr.mxu0 0.0
  %2625 = vmatpush2.msra.mxu0 0.0
  %2626 = vmatprep.subr.mxu0 0.0
  %2627 = vmatpush2.msra.mxu0 0.0
  %2628 = vmatprep.subr.mxu0 0.0
  %2629 = vmatpush2.msra.mxu0 0.0
  %2630 = vmatprep.subr.mxu0 0.0
  %2631 = vmatpush2.msra.mxu0 0.0
  %2632 = vmatprep.subr.mxu0 0.0
  %2633 = vmatpush2.msra.mxu0 0.0
  %2634 = vmatprep.subr.mxu0 0.0
  %2635 = vmatpush2.msra.mxu0 0.0
  %2636 = vmatprep.subr.mxu0 0.0
  %2637 = vmatpush2.msra.mxu0 0.0
  %2638 = vmatprep.subr.mxu0 0.0
  %2639 = vmatpush2.msra.mxu0 0.0
  %2640 = vmatprep.subr.mxu0 0.0
  %2641 = vmatpush2.msra.mxu0 0.0
  %2642 = vmatprep.mubr.f32.mxu0 0.0
  %v2643 = vand.u32 %v2559, 4294901760
  %v2644 = vsub.f32 %v2559, %v2643
  %v2645 = vand.u32 %v2644, 4294901760
  %v2646 = vsub.f32 %v2644, %v2645
  %v2647 = vand.u32 %v2646, 4294901760
  %2648 = vmatmul.mubr.f32.gmra.mxu0 %v2647
  %v2649 = vpop.f32.mrf.mxu0
  %v2650 = vadd.f32 0.0, %v2649
  %v2651 = vpop.f32.mrf.mxu0
  %2652 = vmatprep.mubr.f32.mxu0 0.0
  %v2653 = vand.u32 %v2562, 4294901760
  %v2654 = vsub.f32 %v2562, %v2653
  %v2655 = vand.u32 %v2654, 4294901760
  %v2656 = vsub.f32 %v2654, %v2655
  %v2657 = vand.u32 %v2656, 4294901760
  %2658 = vmatmul.mubr.f32.gmra.mxu0 %v2657
  %v2659 = vpop.f32.mrf.mxu0
  %v2660 = vadd.f32 0.0, %v2659
  %v2661 = vpop.f32.mrf.mxu0
  %2662 = vmatprep.mubr.f32.mxu0 0.0
  %v2663 = vand.u32 %v2565, 4294901760
  %v2664 = vsub.f32 %v2565, %v2663
  %v2665 = vand.u32 %v2664, 4294901760
  %v2666 = vsub.f32 %v2664, %v2665
  %v2667 = vand.u32 %v2666, 4294901760
  %2668 = vmatmul.mubr.f32.gmra.mxu0 %v2667
  %v2669 = vpop.f32.mrf.mxu0
  %v2670 = vadd.f32 0.0, %v2669
  %v2671 = vpop.f32.mrf.mxu0
  %2672 = vmatprep.mubr.f32.mxu0 0.0
  %v2673 = vand.u32 %v2568, 4294901760
  %v2674 = vsub.f32 %v2568, %v2673
  %v2675 = vand.u32 %v2674, 4294901760
  %v2676 = vsub.f32 %v2674, %v2675
  %v2677 = vand.u32 %v2676, 4294901760
  %2678 = vmatmul.mubr.f32.gmra.mxu0 %v2677
  %v2679 = vpop.f32.mrf.mxu0
  %v2680 = vadd.f32 0.0, %v2679
  %v2681 = vpop.f32.mrf.mxu0
  %2682 = vdwg.mxu0
  %2683 = vmatprep.subr.mxu0 0.0
  %2684 = vmatpush1.msra.mxu0 0.0
  %2685 = vmatprep.subr.mxu0 0.0
  %2686 = vmatpush1.msra.mxu0 0.0
  %2687 = vmatprep.subr.mxu0 0.0
  %2688 = vmatpush1.msra.mxu0 0.0
  %2689 = vmatprep.subr.mxu0 0.0
  %2690 = vmatpush1.msra.mxu0 0.0
  %2691 = vmatprep.subr.mxu0 0.0
  %2692 = vmatpush1.msra.mxu0 0.0
  %2693 = vmatprep.subr.mxu0 0.0
  %2694 = vmatpush1.msra.mxu0 0.0
  %2695 = vmatprep.subr.mxu0 0.0
  %2696 = vmatpush1.msra.mxu0 0.0
  %2697 = vmatprep.subr.mxu0 0.0
  %2698 = vmatpush1.msra.mxu0 0.0
  %2699 = vmatprep.subr.mxu0 0.0
  %v2700 = vand.u32 %v49, 4294901760
  %v2701 = vsub.f32 %v49, %v2700
  %v2702 = vand.u32 %v2701, 4294901760
  %v2703 = vsub.f32 %v2701, %v2702
  %v2704 = vand.u32 %v2703, 4294901760
  %2705 = vmatpush1.msra.mxu0 %v2704
  %2706 = vmatprep.subr.mxu0 0.0
  %v2707 = vand.u32 %v48, 4294901760
  %v2708 = vsub.f32 %v48, %v2707
  %v2709 = vand.u32 %v2708, 4294901760
  %v2710 = vsub.f32 %v2708, %v2709
  %v2711 = vand.u32 %v2710, 4294901760
  %2712 = vmatpush1.msra.mxu0 %v2711
  %2713 = vmatprep.subr.mxu0 0.0
  %v2714 = vand.u32 %v47, 4294901760
  %v2715 = vsub.f32 %v47, %v2714
  %v2716 = vand.u32 %v2715, 4294901760
  %v2717 = vsub.f32 %v2715, %v2716
  %v2718 = vand.u32 %v2717, 4294901760
  %2719 = vmatpush1.msra.mxu0 %v2718
  %2720 = vmatprep.subr.mxu0 0.0
  %v2721 = vand.u32 %v46, 4294901760
  %v2722 = vsub.f32 %v46, %v2721
  %v2723 = vand.u32 %v2722, 4294901760
  %v2724 = vsub.f32 %v2722, %v2723
  %v2725 = vand.u32 %v2724, 4294901760
  %2726 = vmatpush1.msra.mxu0 %v2725
  %2727 = vmatprep.subr.mxu0 0.0
  %v2728 = vand.u32 %v45, 4294901760
  %v2729 = vsub.f32 %v45, %v2728
  %v2730 = vand.u32 %v2729, 4294901760
  %v2731 = vsub.f32 %v2729, %v2730
  %v2732 = vand.u32 %v2731, 4294901760
  %2733 = vmatpush1.msra.mxu0 %v2732
  %2734 = vmatprep.subr.mxu0 0.0
  %v2735 = vand.u32 %v44, 4294901760
  %v2736 = vsub.f32 %v44, %v2735
  %v2737 = vand.u32 %v2736, 4294901760
  %v2738 = vsub.f32 %v2736, %v2737
  %v2739 = vand.u32 %v2738, 4294901760
  %2740 = vmatpush1.msra.mxu0 %v2739
  %2741 = vmatprep.subr.mxu0 0.0
  %v2742 = vand.u32 %v43, 4294901760
  %v2743 = vsub.f32 %v43, %v2742
  %v2744 = vand.u32 %v2743, 4294901760
  %v2745 = vsub.f32 %v2743, %v2744
  %v2746 = vand.u32 %v2745, 4294901760
  %2747 = vmatpush1.msra.mxu0 %v2746
  %2748 = vmatprep.subr.mxu0 0.0
  %v2749 = vand.u32 %v42, 4294901760
  %v2750 = vsub.f32 %v42, %v2749
  %v2751 = vand.u32 %v2750, 4294901760
  %v2752 = vsub.f32 %v2750, %v2751
  %v2753 = vand.u32 %v2752, 4294901760
  %2754 = vmatpush1.msra.mxu0 %v2753
  %2755 = vmatprep.subr.mxu0 0.0
  %2756 = vmatpush2.msra.mxu0 0.0
  %2757 = vmatprep.subr.mxu0 0.0
  %2758 = vmatpush2.msra.mxu0 0.0
  %2759 = vmatprep.subr.mxu0 0.0
  %2760 = vmatpush2.msra.mxu0 0.0
  %2761 = vmatprep.subr.mxu0 0.0
  %2762 = vmatpush2.msra.mxu0 0.0
  %2763 = vmatprep.subr.mxu0 0.0
  %2764 = vmatpush2.msra.mxu0 0.0
  %2765 = vmatprep.subr.mxu0 0.0
  %2766 = vmatpush2.msra.mxu0 0.0
  %2767 = vmatprep.subr.mxu0 0.0
  %2768 = vmatpush2.msra.mxu0 0.0
  %2769 = vmatprep.subr.mxu0 0.0
  %2770 = vmatpush2.msra.mxu0 0.0
  %2771 = vmatprep.subr.mxu0 0.0
  %2772 = vmatpush2.msra.mxu0 0.0
  %2773 = vmatprep.subr.mxu0 0.0
  %2774 = vmatpush2.msra.mxu0 0.0
  %2775 = vmatprep.subr.mxu0 0.0
  %2776 = vmatpush2.msra.mxu0 0.0
  %2777 = vmatprep.subr.mxu0 0.0
  %2778 = vmatpush2.msra.mxu0 0.0
  %2779 = vmatprep.subr.mxu0 0.0
  %2780 = vmatpush2.msra.mxu0 0.0
  %2781 = vmatprep.subr.mxu0 0.0
  %2782 = vmatpush2.msra.mxu0 0.0
  %2783 = vmatprep.subr.mxu0 0.0
  %2784 = vmatpush2.msra.mxu0 0.0
  %2785 = vmatprep.subr.mxu0 0.0
  %2786 = vmatpush2.msra.mxu0 0.0
  %2787 = vmatprep.mubr.f32.mxu0 0.0
  %v2788 = vand.u32 %v2559, 4294901760
  %2789 = vmatmul.mubr.f32.gmra.mxu0 %v2788
  %v2790 = vpop.f32.mrf.mxu0
  %v2791 = vadd.f32 %v2650, %v2790
  %v2792 = vpop.f32.mrf.mxu0
  %2793 = vmatprep.mubr.f32.mxu0 0.0
  %v2794 = vand.u32 %v2562, 4294901760
  %2795 = vmatmul.mubr.f32.gmra.mxu0 %v2794
  %v2796 = vpop.f32.mrf.mxu0
  %v2797 = vadd.f32 %v2660, %v2796
  %v2798 = vpop.f32.mrf.mxu0
  %2799 = vmatprep.mubr.f32.mxu0 0.0
  %v2800 = vand.u32 %v2565, 4294901760
  %2801 = vmatmul.mubr.f32.gmra.mxu0 %v2800
  %v2802 = vpop.f32.mrf.mxu0
  %v2803 = vadd.f32 %v2670, %v2802
  %v2804 = vpop.f32.mrf.mxu0
  %2805 = vmatprep.mubr.f32.mxu0 0.0
  %v2806 = vand.u32 %v2568, 4294901760
  %2807 = vmatmul.mubr.f32.gmra.mxu0 %v2806
  %v2808 = vpop.f32.mrf.mxu0
  %v2809 = vadd.f32 %v2680, %v2808
  %v2810 = vpop.f32.mrf.mxu0
  %2811 = vdwg.mxu0
  %2812 = vmatprep.subr.mxu0 0.0
  %2813 = vmatpush1.msra.mxu0 0.0
  %2814 = vmatprep.subr.mxu0 0.0
  %2815 = vmatpush1.msra.mxu0 0.0
  %2816 = vmatprep.subr.mxu0 0.0
  %2817 = vmatpush1.msra.mxu0 0.0
  %2818 = vmatprep.subr.mxu0 0.0
  %2819 = vmatpush1.msra.mxu0 0.0
  %2820 = vmatprep.subr.mxu0 0.0
  %2821 = vmatpush1.msra.mxu0 0.0
  %2822 = vmatprep.subr.mxu0 0.0
  %2823 = vmatpush1.msra.mxu0 0.0
  %2824 = vmatprep.subr.mxu0 0.0
  %2825 = vmatpush1.msra.mxu0 0.0
  %2826 = vmatprep.subr.mxu0 0.0
  %2827 = vmatpush1.msra.mxu0 0.0
  %2828 = vmatprep.subr.mxu0 0.0
  %v2829 = vand.u32 %v49, 4294901760
  %v2830 = vsub.f32 %v49, %v2829
  %2831 = vmatpush1.msra.mxu0 %v2830
  %2832 = vmatprep.subr.mxu0 0.0
  %v2833 = vand.u32 %v48, 4294901760
  %v2834 = vsub.f32 %v48, %v2833
  %2835 = vmatpush1.msra.mxu0 %v2834
  %2836 = vmatprep.subr.mxu0 0.0
  %v2837 = vand.u32 %v47, 4294901760
  %v2838 = vsub.f32 %v47, %v2837
  %2839 = vmatpush1.msra.mxu0 %v2838
  %2840 = vmatprep.subr.mxu0 0.0
  %v2841 = vand.u32 %v46, 4294901760
  %v2842 = vsub.f32 %v46, %v2841
  %2843 = vmatpush1.msra.mxu0 %v2842
  %2844 = vmatprep.subr.mxu0 0.0
  %v2845 = vand.u32 %v45, 4294901760
  %v2846 = vsub.f32 %v45, %v2845
  %2847 = vmatpush1.msra.mxu0 %v2846
  %2848 = vmatprep.subr.mxu0 0.0
  %v2849 = vand.u32 %v44, 4294901760
  %v2850 = vsub.f32 %v44, %v2849
  %2851 = vmatpush1.msra.mxu0 %v2850
  %2852 = vmatprep.subr.mxu0 0.0
  %v2853 = vand.u32 %v43, 4294901760
  %v2854 = vsub.f32 %v43, %v2853
  %2855 = vmatpush1.msra.mxu0 %v2854
  %2856 = vmatprep.subr.mxu0 0.0
  %v2857 = vand.u32 %v42, 4294901760
  %v2858 = vsub.f32 %v42, %v2857
  %2859 = vmatpush1.msra.mxu0 %v2858
  %2860 = vmatprep.subr.mxu0 0.0
  %2861 = vmatpush2.msra.mxu0 0.0
  %2862 = vmatprep.subr.mxu0 0.0
  %2863 = vmatpush2.msra.mxu0 0.0
  %2864 = vmatprep.subr.mxu0 0.0
  %2865 = vmatpush2.msra.mxu0 0.0
  %2866 = vmatprep.subr.mxu0 0.0
  %2867 = vmatpush2.msra.mxu0 0.0
  %2868 = vmatprep.subr.mxu0 0.0
  %2869 = vmatpush2.msra.mxu0 0.0
  %2870 = vmatprep.subr.mxu0 0.0
  %2871 = vmatpush2.msra.mxu0 0.0
  %2872 = vmatprep.subr.mxu0 0.0
  %2873 = vmatpush2.msra.mxu0 0.0
  %2874 = vmatprep.subr.mxu0 0.0
  %2875 = vmatpush2.msra.mxu0 0.0
  %2876 = vmatprep.subr.mxu0 0.0
  %2877 = vmatpush2.msra.mxu0 0.0
  %2878 = vmatprep.subr.mxu0 0.0
  %2879 = vmatpush2.msra.mxu0 0.0
  %2880 = vmatprep.subr.mxu0 0.0
  %2881 = vmatpush2.msra.mxu0 0.0
  %2882 = vmatprep.subr.mxu0 0.0
  %2883 = vmatpush2.msra.mxu0 0.0
  %2884 = vmatprep.subr.mxu0 0.0
  %2885 = vmatpush2.msra.mxu0 0.0
  %2886 = vmatprep.subr.mxu0 0.0
  %2887 = vmatpush2.msra.mxu0 0.0
  %2888 = vmatprep.subr.mxu0 0.0
  %2889 = vmatpush2.msra.mxu0 0.0
  %2890 = vmatprep.subr.mxu0 0.0
  %2891 = vmatpush2.msra.mxu0 0.0
  %2892 = vmatprep.mubr.f32.mxu0 0.0
  %v2893 = vand.u32 %v2559, 4294901760
  %v2894 = vsub.f32 %v2559, %v2893
  %2895 = vmatmul.mubr.f32.gmra.mxu0 %v2894
  %v2896 = vpop.f32.mrf.mxu0
  %v2897 = vadd.f32 %v2791, %v2896
  %v2898 = vpop.f32.mrf.mxu0
  %2899 = vmatprep.mubr.f32.mxu0 0.0
  %v2900 = vand.u32 %v2562, 4294901760
  %v2901 = vsub.f32 %v2562, %v2900
  %2902 = vmatmul.mubr.f32.gmra.mxu0 %v2901
  %v2903 = vpop.f32.mrf.mxu0
  %v2904 = vadd.f32 %v2797, %v2903
  %v2905 = vpop.f32.mrf.mxu0
  %2906 = vmatprep.mubr.f32.mxu0 0.0
  %v2907 = vand.u32 %v2565, 4294901760
  %v2908 = vsub.f32 %v2565, %v2907
  %2909 = vmatmul.mubr.f32.gmra.mxu0 %v2908
  %v2910 = vpop.f32.mrf.mxu0
  %v2911 = vadd.f32 %v2803, %v2910
  %v2912 = vpop.f32.mrf.mxu0
  %2913 = vmatprep.mubr.f32.mxu0 0.0
  %v2914 = vand.u32 %v2568, 4294901760
  %v2915 = vsub.f32 %v2568, %v2914
  %2916 = vmatmul.mubr.f32.gmra.mxu0 %v2915
  %v2917 = vpop.f32.mrf.mxu0
  %v2918 = vadd.f32 %v2809, %v2917
  %v2919 = vpop.f32.mrf.mxu0
  %2920 = vdwg.mxu0
  %2921 = vmatprep.subr.mxu0 0.0
  %2922 = vmatpush1.msra.mxu0 0.0
  %2923 = vmatprep.subr.mxu0 0.0
  %2924 = vmatpush1.msra.mxu0 0.0
  %2925 = vmatprep.subr.mxu0 0.0
  %2926 = vmatpush1.msra.mxu0 0.0
  %2927 = vmatprep.subr.mxu0 0.0
  %2928 = vmatpush1.msra.mxu0 0.0
  %2929 = vmatprep.subr.mxu0 0.0
  %2930 = vmatpush1.msra.mxu0 0.0
  %2931 = vmatprep.subr.mxu0 0.0
  %2932 = vmatpush1.msra.mxu0 0.0
  %2933 = vmatprep.subr.mxu0 0.0
  %2934 = vmatpush1.msra.mxu0 0.0
  %2935 = vmatprep.subr.mxu0 0.0
  %2936 = vmatpush1.msra.mxu0 0.0
  %2937 = vmatprep.subr.mxu0 0.0
  %v2938 = vand.u32 %v49, 4294901760
  %2939 = vmatpush1.msra.mxu0 %v2938
  %2940 = vmatprep.subr.mxu0 0.0
  %v2941 = vand.u32 %v48, 4294901760
  %2942 = vmatpush1.msra.mxu0 %v2941
  %2943 = vmatprep.subr.mxu0 0.0
  %v2944 = vand.u32 %v47, 4294901760
  %2945 = vmatpush1.msra.mxu0 %v2944
  %2946 = vmatprep.subr.mxu0 0.0
  %v2947 = vand.u32 %v46, 4294901760
  %2948 = vmatpush1.msra.mxu0 %v2947
  %2949 = vmatprep.subr.mxu0 0.0
  %v2950 = vand.u32 %v45, 4294901760
  %2951 = vmatpush1.msra.mxu0 %v2950
  %2952 = vmatprep.subr.mxu0 0.0
  %v2953 = vand.u32 %v44, 4294901760
  %2954 = vmatpush1.msra.mxu0 %v2953
  %2955 = vmatprep.subr.mxu0 0.0
  %v2956 = vand.u32 %v43, 4294901760
  %2957 = vmatpush1.msra.mxu0 %v2956
  %2958 = vmatprep.subr.mxu0 0.0
  %v2959 = vand.u32 %v42, 4294901760
  %2960 = vmatpush1.msra.mxu0 %v2959
  %2961 = vmatprep.subr.mxu0 0.0
  %2962 = vmatpush2.msra.mxu0 0.0
  %2963 = vmatprep.subr.mxu0 0.0
  %2964 = vmatpush2.msra.mxu0 0.0
  %2965 = vmatprep.subr.mxu0 0.0
  %2966 = vmatpush2.msra.mxu0 0.0
  %2967 = vmatprep.subr.mxu0 0.0
  %2968 = vmatpush2.msra.mxu0 0.0
  %2969 = vmatprep.subr.mxu0 0.0
  %2970 = vmatpush2.msra.mxu0 0.0
  %2971 = vmatprep.subr.mxu0 0.0
  %2972 = vmatpush2.msra.mxu0 0.0
  %2973 = vmatprep.subr.mxu0 0.0
  %2974 = vmatpush2.msra.mxu0 0.0
  %2975 = vmatprep.subr.mxu0 0.0
  %2976 = vmatpush2.msra.mxu0 0.0
  %2977 = vmatprep.subr.mxu0 0.0
  %2978 = vmatpush2.msra.mxu0 0.0
  %2979 = vmatprep.subr.mxu0 0.0
  %2980 = vmatpush2.msra.mxu0 0.0
  %2981 = vmatprep.subr.mxu0 0.0
  %2982 = vmatpush2.msra.mxu0 0.0
  %2983 = vmatprep.subr.mxu0 0.0
  %2984 = vmatpush2.msra.mxu0 0.0
  %2985 = vmatprep.subr.mxu0 0.0
  %2986 = vmatpush2.msra.mxu0 0.0
  %2987 = vmatprep.subr.mxu0 0.0
  %2988 = vmatpush2.msra.mxu0 0.0
  %2989 = vmatprep.subr.mxu0 0.0
  %2990 = vmatpush2.msra.mxu0 0.0
  %2991 = vmatprep.subr.mxu0 0.0
  %2992 = vmatpush2.msra.mxu0 0.0
  %2993 = vmatprep.mubr.f32.mxu0 0.0
  %v2994 = vand.u32 %v2559, 4294901760
  %v2995 = vsub.f32 %v2559, %v2994
  %v2996 = vand.u32 %v2995, 4294901760
  %2997 = vmatmul.mubr.f32.gmra.mxu0 %v2996
  %v2998 = vpop.f32.mrf.mxu0
  %v2999 = vadd.f32 %v2897, %v2998
  %v3000 = vpop.f32.mrf.mxu0
  %3001 = vmatprep.mubr.f32.mxu0 0.0
  %v3002 = vand.u32 %v2562, 4294901760
  %v3003 = vsub.f32 %v2562, %v3002
  %v3004 = vand.u32 %v3003, 4294901760
  %3005 = vmatmul.mubr.f32.gmra.mxu0 %v3004
  %v3006 = vpop.f32.mrf.mxu0
  %v3007 = vadd.f32 %v2904, %v3006
  %v3008 = vpop.f32.mrf.mxu0
  %3009 = vmatprep.mubr.f32.mxu0 0.0
  %v3010 = vand.u32 %v2565, 4294901760
  %v3011 = vsub.f32 %v2565, %v3010
  %v3012 = vand.u32 %v3011, 4294901760
  %3013 = vmatmul.mubr.f32.gmra.mxu0 %v3012
  %v3014 = vpop.f32.mrf.mxu0
  %v3015 = vadd.f32 %v2911, %v3014
  %v3016 = vpop.f32.mrf.mxu0
  %3017 = vmatprep.mubr.f32.mxu0 0.0
  %v3018 = vand.u32 %v2568, 4294901760
  %v3019 = vsub.f32 %v2568, %v3018
  %v3020 = vand.u32 %v3019, 4294901760
  %3021 = vmatmul.mubr.f32.gmra.mxu0 %v3020
  %v3022 = vpop.f32.mrf.mxu0
  %v3023 = vadd.f32 %v2918, %v3022
  %v3024 = vpop.f32.mrf.mxu0
  %3025 = vdwg.mxu0
  %3026 = vmatprep.subr.mxu0 0.0
  %3027 = vmatpush1.msra.mxu0 0.0
  %3028 = vmatprep.subr.mxu0 0.0
  %3029 = vmatpush1.msra.mxu0 0.0
  %3030 = vmatprep.subr.mxu0 0.0
  %3031 = vmatpush1.msra.mxu0 0.0
  %3032 = vmatprep.subr.mxu0 0.0
  %3033 = vmatpush1.msra.mxu0 0.0
  %3034 = vmatprep.subr.mxu0 0.0
  %3035 = vmatpush1.msra.mxu0 0.0
  %3036 = vmatprep.subr.mxu0 0.0
  %3037 = vmatpush1.msra.mxu0 0.0
  %3038 = vmatprep.subr.mxu0 0.0
  %3039 = vmatpush1.msra.mxu0 0.0
  %3040 = vmatprep.subr.mxu0 0.0
  %3041 = vmatpush1.msra.mxu0 0.0
  %3042 = vmatprep.subr.mxu0 0.0
  %v3043 = vand.u32 %v49, 4294901760
  %v3044 = vsub.f32 %v49, %v3043
  %v3045 = vand.u32 %v3044, 4294901760
  %3046 = vmatpush1.msra.mxu0 %v3045
  %3047 = vmatprep.subr.mxu0 0.0
  %v3048 = vand.u32 %v48, 4294901760
  %v3049 = vsub.f32 %v48, %v3048
  %v3050 = vand.u32 %v3049, 4294901760
  %3051 = vmatpush1.msra.mxu0 %v3050
  %3052 = vmatprep.subr.mxu0 0.0
  %v3053 = vand.u32 %v47, 4294901760
  %v3054 = vsub.f32 %v47, %v3053
  %v3055 = vand.u32 %v3054, 4294901760
  %3056 = vmatpush1.msra.mxu0 %v3055
  %3057 = vmatprep.subr.mxu0 0.0
  %v3058 = vand.u32 %v46, 4294901760
  %v3059 = vsub.f32 %v46, %v3058
  %v3060 = vand.u32 %v3059, 4294901760
  %3061 = vmatpush1.msra.mxu0 %v3060
  %3062 = vmatprep.subr.mxu0 0.0
  %v3063 = vand.u32 %v45, 4294901760
  %v3064 = vsub.f32 %v45, %v3063
  %v3065 = vand.u32 %v3064, 4294901760
  %3066 = vmatpush1.msra.mxu0 %v3065
  %3067 = vmatprep.subr.mxu0 0.0
  %v3068 = vand.u32 %v44, 4294901760
  %v3069 = vsub.f32 %v44, %v3068
  %v3070 = vand.u32 %v3069, 4294901760
  %3071 = vmatpush1.msra.mxu0 %v3070
  %3072 = vmatprep.subr.mxu0 0.0
  %v3073 = vand.u32 %v43, 4294901760
  %v3074 = vsub.f32 %v43, %v3073
  %v3075 = vand.u32 %v3074, 4294901760
  %3076 = vmatpush1.msra.mxu0 %v3075
  %3077 = vmatprep.subr.mxu0 0.0
  %v3078 = vand.u32 %v42, 4294901760
  %v3079 = vsub.f32 %v42, %v3078
  %v3080 = vand.u32 %v3079, 4294901760
  %3081 = vmatpush1.msra.mxu0 %v3080
  %3082 = vmatprep.subr.mxu0 0.0
  %3083 = vmatpush2.msra.mxu0 0.0
  %3084 = vmatprep.subr.mxu0 0.0
  %3085 = vmatpush2.msra.mxu0 0.0
  %3086 = vmatprep.subr.mxu0 0.0
  %3087 = vmatpush2.msra.mxu0 0.0
  %3088 = vmatprep.subr.mxu0 0.0
  %3089 = vmatpush2.msra.mxu0 0.0
  %3090 = vmatprep.subr.mxu0 0.0
  %3091 = vmatpush2.msra.mxu0 0.0
  %3092 = vmatprep.subr.mxu0 0.0
  %3093 = vmatpush2.msra.mxu0 0.0
  %3094 = vmatprep.subr.mxu0 0.0
  %3095 = vmatpush2.msra.mxu0 0.0
  %3096 = vmatprep.subr.mxu0 0.0
  %3097 = vmatpush2.msra.mxu0 0.0
  %3098 = vmatprep.subr.mxu0 0.0
  %3099 = vmatpush2.msra.mxu0 0.0
  %3100 = vmatprep.subr.mxu0 0.0
  %3101 = vmatpush2.msra.mxu0 0.0
  %3102 = vmatprep.subr.mxu0 0.0
  %3103 = vmatpush2.msra.mxu0 0.0
  %3104 = vmatprep.subr.mxu0 0.0
  %3105 = vmatpush2.msra.mxu0 0.0
  %3106 = vmatprep.subr.mxu0 0.0
  %3107 = vmatpush2.msra.mxu0 0.0
  %3108 = vmatprep.subr.mxu0 0.0
  %3109 = vmatpush2.msra.mxu0 0.0
  %3110 = vmatprep.subr.mxu0 0.0
  %3111 = vmatpush2.msra.mxu0 0.0
  %3112 = vmatprep.subr.mxu0 0.0
  %3113 = vmatpush2.msra.mxu0 0.0
  %3114 = vmatprep.mubr.f32.mxu0 0.0
  %v3115 = vand.u32 %v2559, 4294901760
  %3116 = vmatmul.mubr.f32.gmra.mxu0 %v3115
  %v3117 = vpop.f32.mrf.mxu0
  %v3118 = vadd.f32 %v2999, %v3117
  %v3119 = vpop.f32.mrf.mxu0
  %3120 = vmatprep.mubr.f32.mxu0 0.0
  %v3121 = vand.u32 %v2562, 4294901760
  %3122 = vmatmul.mubr.f32.gmra.mxu0 %v3121
  %v3123 = vpop.f32.mrf.mxu0
  %v3124 = vadd.f32 %v3007, %v3123
  %v3125 = vpop.f32.mrf.mxu0
  %3126 = vmatprep.mubr.f32.mxu0 0.0
  %v3127 = vand.u32 %v2565, 4294901760
  %3128 = vmatmul.mubr.f32.gmra.mxu0 %v3127
  %v3129 = vpop.f32.mrf.mxu0
  %v3130 = vadd.f32 %v3015, %v3129
  %v3131 = vpop.f32.mrf.mxu0
  %3132 = vmatprep.mubr.f32.mxu0 0.0
  %v3133 = vand.u32 %v2568, 4294901760
  %3134 = vmatmul.mubr.f32.gmra.mxu0 %v3133
  %v3135 = vpop.f32.mrf.mxu0
  %v3136 = vadd.f32 %v3023, %v3135
  %v3137 = vpop.f32.mrf.mxu0
  %3138 = vdwg.mxu0
  %3139 = vmatprep.subr.mxu0 0.0
  %3140 = vmatpush1.msra.mxu0 0.0
  %3141 = vmatprep.subr.mxu0 0.0
  %3142 = vmatpush1.msra.mxu0 0.0
  %3143 = vmatprep.subr.mxu0 0.0
  %3144 = vmatpush1.msra.mxu0 0.0
  %3145 = vmatprep.subr.mxu0 0.0
  %3146 = vmatpush1.msra.mxu0 0.0
  %3147 = vmatprep.subr.mxu0 0.0
  %3148 = vmatpush1.msra.mxu0 0.0
  %3149 = vmatprep.subr.mxu0 0.0
  %3150 = vmatpush1.msra.mxu0 0.0
  %3151 = vmatprep.subr.mxu0 0.0
  %3152 = vmatpush1.msra.mxu0 0.0
  %3153 = vmatprep.subr.mxu0 0.0
  %3154 = vmatpush1.msra.mxu0 0.0
  %3155 = vmatprep.subr.mxu0 0.0
  %v3156 = vand.u32 %v49, 4294901760
  %3157 = vmatpush1.msra.mxu0 %v3156
  %3158 = vmatprep.subr.mxu0 0.0
  %v3159 = vand.u32 %v48, 4294901760
  %3160 = vmatpush1.msra.mxu0 %v3159
  %3161 = vmatprep.subr.mxu0 0.0
  %v3162 = vand.u32 %v47, 4294901760
  %3163 = vmatpush1.msra.mxu0 %v3162
  %3164 = vmatprep.subr.mxu0 0.0
  %v3165 = vand.u32 %v46, 4294901760
  %3166 = vmatpush1.msra.mxu0 %v3165
  %3167 = vmatprep.subr.mxu0 0.0
  %v3168 = vand.u32 %v45, 4294901760
  %3169 = vmatpush1.msra.mxu0 %v3168
  %3170 = vmatprep.subr.mxu0 0.0
  %v3171 = vand.u32 %v44, 4294901760
  %3172 = vmatpush1.msra.mxu0 %v3171
  %3173 = vmatprep.subr.mxu0 0.0
  %v3174 = vand.u32 %v43, 4294901760
  %3175 = vmatpush1.msra.mxu0 %v3174
  %3176 = vmatprep.subr.mxu0 0.0
  %v3177 = vand.u32 %v42, 4294901760
  %3178 = vmatpush1.msra.mxu0 %v3177
  %3179 = vmatprep.subr.mxu0 0.0
  %3180 = vmatpush2.msra.mxu0 0.0
  %3181 = vmatprep.subr.mxu0 0.0
  %3182 = vmatpush2.msra.mxu0 0.0
  %3183 = vmatprep.subr.mxu0 0.0
  %3184 = vmatpush2.msra.mxu0 0.0
  %3185 = vmatprep.subr.mxu0 0.0
  %3186 = vmatpush2.msra.mxu0 0.0
  %3187 = vmatprep.subr.mxu0 0.0
  %3188 = vmatpush2.msra.mxu0 0.0
  %3189 = vmatprep.subr.mxu0 0.0
  %3190 = vmatpush2.msra.mxu0 0.0
  %3191 = vmatprep.subr.mxu0 0.0
  %3192 = vmatpush2.msra.mxu0 0.0
  %3193 = vmatprep.subr.mxu0 0.0
  %3194 = vmatpush2.msra.mxu0 0.0
  %3195 = vmatprep.subr.mxu0 0.0
  %3196 = vmatpush2.msra.mxu0 0.0
  %3197 = vmatprep.subr.mxu0 0.0
  %3198 = vmatpush2.msra.mxu0 0.0
  %3199 = vmatprep.subr.mxu0 0.0
  %3200 = vmatpush2.msra.mxu0 0.0
  %3201 = vmatprep.subr.mxu0 0.0
  %3202 = vmatpush2.msra.mxu0 0.0
  %3203 = vmatprep.subr.mxu0 0.0
  %3204 = vmatpush2.msra.mxu0 0.0
  %3205 = vmatprep.subr.mxu0 0.0
  %3206 = vmatpush2.msra.mxu0 0.0
  %3207 = vmatprep.subr.mxu0 0.0
  %3208 = vmatpush2.msra.mxu0 0.0
  %3209 = vmatprep.subr.mxu0 0.0
  %3210 = vmatpush2.msra.mxu0 0.0
  %3211 = vmatprep.mubr.f32.mxu0 0.0
  %v3212 = vand.u32 %v2559, 4294901760
  %3213 = vmatmul.mubr.f32.gmra.mxu0 %v3212
  %v3214 = vpop.f32.mrf.mxu0
  %v3215 = vadd.f32 %v3118, %v3214
  %v3216 = vpop.f32.mrf.mxu0
  %3217 = vmatprep.mubr.f32.mxu0 0.0
  %v3218 = vand.u32 %v2562, 4294901760
  %3219 = vmatmul.mubr.f32.gmra.mxu0 %v3218
  %v3220 = vpop.f32.mrf.mxu0
  %v3221 = vadd.f32 %v3124, %v3220
  %v3222 = vpop.f32.mrf.mxu0
  %3223 = vmatprep.mubr.f32.mxu0 0.0
  %v3224 = vand.u32 %v2565, 4294901760
  %3225 = vmatmul.mubr.f32.gmra.mxu0 %v3224
  %v3226 = vpop.f32.mrf.mxu0
  %v3227 = vadd.f32 %v3130, %v3226
  %v3228 = vpop.f32.mrf.mxu0
  %3229 = vmatprep.mubr.f32.mxu0 0.0
  %v3230 = vand.u32 %v2568, 4294901760
  %3231 = vmatmul.mubr.f32.gmra.mxu0 %v3230
  %v3232 = vpop.f32.mrf.mxu0
  %v3233 = vadd.f32 %v3136, %v3232
  %v3234 = vpop.f32.mrf.mxu0
  %3235 = vdwg.mxu0
  %v3236 = vsel %vm50, %v3215, 0.0
  %v3237 = vsel %vm50, %v3221, 0.0
  %v3238 = vadd.f32 %v3236, %v3237
  %v3239 = vsel %vm50, %v3227, 0.0
  %v3240 = vadd.f32 %v3238, %v3239
  %v3241 = vsel %vm50, %v3233, 0.0
  %v3242 = vadd.f32 %v3240, %v3241
  %v3243 = vrot.slane %v3242, 4
  %v3244 = vadd.f32 %v3242, %v3243
  %v3245 = vrot.slane %v3244, 2
  %v3246 = vadd.f32 %v3244, %v3245
  %v3247 = vrot.slane %v3246, 1
  %v3248 = vadd.f32 %v3246, %v3247
  %v3249 = vmul.f32 %v3248, 0.001953125
  %v3250 = vsub.f32 %v2552, %v3249
  %v3251 = vsub.f32 %v2553, %v3249
  %v3252 = vsub.f32 %v2554, %v3249
  %v3253 = vsub.f32 %v2555, %v3249
  %v3254 = vmul.f32 %v3250, %v3250
  %v3255 = vmul.f32 %v3251, %v3251
  %v3256 = vmul.f32 %v3252, %v3252
  %v3257 = vmul.f32 %v3253, %v3253
  %v3259 = vsel %vm50, %v3254, 0
  %v3262 = vsel %vm50, %v3255, 0
  %v3265 = vsel %vm50, %v3256, 0
  %v3268 = vsel %vm50, %v3257, 0
  %3270 = vmatprep.subr.mxu0 0.0
  %3271 = vmatpush1.msra.mxu0 0.0
  %3272 = vmatprep.subr.mxu0 0.0
  %3273 = vmatpush1.msra.mxu0 0.0
  %3274 = vmatprep.subr.mxu0 0.0
  %3275 = vmatpush1.msra.mxu0 0.0
  %3276 = vmatprep.subr.mxu0 0.0
  %3277 = vmatpush1.msra.mxu0 0.0
  %3278 = vmatprep.subr.mxu0 0.0
  %3279 = vmatpush1.msra.mxu0 0.0
  %3280 = vmatprep.subr.mxu0 0.0
  %3281 = vmatpush1.msra.mxu0 0.0
  %3282 = vmatprep.subr.mxu0 0.0
  %3283 = vmatpush1.msra.mxu0 0.0
  %3284 = vmatprep.subr.mxu0 0.0
  %3285 = vmatpush1.msra.mxu0 0.0
  %3286 = vmatprep.subr.mxu0 0.0
  %v3287 = vand.u32 %v49, 4294901760
  %3288 = vmatpush1.msra.mxu0 %v3287
  %3289 = vmatprep.subr.mxu0 0.0
  %v3290 = vand.u32 %v48, 4294901760
  %3291 = vmatpush1.msra.mxu0 %v3290
  %3292 = vmatprep.subr.mxu0 0.0
  %v3293 = vand.u32 %v47, 4294901760
  %3294 = vmatpush1.msra.mxu0 %v3293
  %3295 = vmatprep.subr.mxu0 0.0
  %v3296 = vand.u32 %v46, 4294901760
  %3297 = vmatpush1.msra.mxu0 %v3296
  %3298 = vmatprep.subr.mxu0 0.0
  %v3299 = vand.u32 %v45, 4294901760
  %3300 = vmatpush1.msra.mxu0 %v3299
  %3301 = vmatprep.subr.mxu0 0.0
  %v3302 = vand.u32 %v44, 4294901760
  %3303 = vmatpush1.msra.mxu0 %v3302
  %3304 = vmatprep.subr.mxu0 0.0
  %v3305 = vand.u32 %v43, 4294901760
  %3306 = vmatpush1.msra.mxu0 %v3305
  %3307 = vmatprep.subr.mxu0 0.0
  %v3308 = vand.u32 %v42, 4294901760
  %3309 = vmatpush1.msra.mxu0 %v3308
  %3310 = vmatprep.subr.mxu0 0.0
  %3311 = vmatpush2.msra.mxu0 0.0
  %3312 = vmatprep.subr.mxu0 0.0
  %3313 = vmatpush2.msra.mxu0 0.0
  %3314 = vmatprep.subr.mxu0 0.0
  %3315 = vmatpush2.msra.mxu0 0.0
  %3316 = vmatprep.subr.mxu0 0.0
  %3317 = vmatpush2.msra.mxu0 0.0
  %3318 = vmatprep.subr.mxu0 0.0
  %3319 = vmatpush2.msra.mxu0 0.0
  %3320 = vmatprep.subr.mxu0 0.0
  %3321 = vmatpush2.msra.mxu0 0.0
  %3322 = vmatprep.subr.mxu0 0.0
  %3323 = vmatpush2.msra.mxu0 0.0
  %3324 = vmatprep.subr.mxu0 0.0
  %3325 = vmatpush2.msra.mxu0 0.0
  %3326 = vmatprep.subr.mxu0 0.0
  %3327 = vmatpush2.msra.mxu0 0.0
  %3328 = vmatprep.subr.mxu0 0.0
  %3329 = vmatpush2.msra.mxu0 0.0
  %3330 = vmatprep.subr.mxu0 0.0
  %3331 = vmatpush2.msra.mxu0 0.0
  %3332 = vmatprep.subr.mxu0 0.0
  %3333 = vmatpush2.msra.mxu0 0.0
  %3334 = vmatprep.subr.mxu0 0.0
  %3335 = vmatpush2.msra.mxu0 0.0
  %3336 = vmatprep.subr.mxu0 0.0
  %3337 = vmatpush2.msra.mxu0 0.0
  %3338 = vmatprep.subr.mxu0 0.0
  %3339 = vmatpush2.msra.mxu0 0.0
  %3340 = vmatprep.subr.mxu0 0.0
  %3341 = vmatpush2.msra.mxu0 0.0
  %3342 = vmatprep.mubr.f32.mxu0 0.0
  %v3343 = vand.u32 %v3259, 4294901760
  %v3344 = vsub.f32 %v3259, %v3343
  %v3345 = vand.u32 %v3344, 4294901760
  %v3346 = vsub.f32 %v3344, %v3345
  %v3347 = vand.u32 %v3346, 4294901760
  %3348 = vmatmul.mubr.f32.gmra.mxu0 %v3347
  %v3349 = vpop.f32.mrf.mxu0
  %v3350 = vadd.f32 0.0, %v3349
  %v3351 = vpop.f32.mrf.mxu0
  %3352 = vmatprep.mubr.f32.mxu0 0.0
  %v3353 = vand.u32 %v3262, 4294901760
  %v3354 = vsub.f32 %v3262, %v3353
  %v3355 = vand.u32 %v3354, 4294901760
  %v3356 = vsub.f32 %v3354, %v3355
  %v3357 = vand.u32 %v3356, 4294901760
  %3358 = vmatmul.mubr.f32.gmra.mxu0 %v3357
  %v3359 = vpop.f32.mrf.mxu0
  %v3360 = vadd.f32 0.0, %v3359
  %v3361 = vpop.f32.mrf.mxu0
  %3362 = vmatprep.mubr.f32.mxu0 0.0
  %v3363 = vand.u32 %v3265, 4294901760
  %v3364 = vsub.f32 %v3265, %v3363
  %v3365 = vand.u32 %v3364, 4294901760
  %v3366 = vsub.f32 %v3364, %v3365
  %v3367 = vand.u32 %v3366, 4294901760
  %3368 = vmatmul.mubr.f32.gmra.mxu0 %v3367
  %v3369 = vpop.f32.mrf.mxu0
  %v3370 = vadd.f32 0.0, %v3369
  %v3371 = vpop.f32.mrf.mxu0
  %3372 = vmatprep.mubr.f32.mxu0 0.0
  %v3373 = vand.u32 %v3268, 4294901760
  %v3374 = vsub.f32 %v3268, %v3373
  %v3375 = vand.u32 %v3374, 4294901760
  %v3376 = vsub.f32 %v3374, %v3375
  %v3377 = vand.u32 %v3376, 4294901760
  %3378 = vmatmul.mubr.f32.gmra.mxu0 %v3377
  %v3379 = vpop.f32.mrf.mxu0
  %v3380 = vadd.f32 0.0, %v3379
  %v3381 = vpop.f32.mrf.mxu0
  %3382 = vdwg.mxu0
  %3383 = vmatprep.subr.mxu0 0.0
  %3384 = vmatpush1.msra.mxu0 0.0
  %3385 = vmatprep.subr.mxu0 0.0
  %3386 = vmatpush1.msra.mxu0 0.0
  %3387 = vmatprep.subr.mxu0 0.0
  %3388 = vmatpush1.msra.mxu0 0.0
  %3389 = vmatprep.subr.mxu0 0.0
  %3390 = vmatpush1.msra.mxu0 0.0
  %3391 = vmatprep.subr.mxu0 0.0
  %3392 = vmatpush1.msra.mxu0 0.0
  %3393 = vmatprep.subr.mxu0 0.0
  %3394 = vmatpush1.msra.mxu0 0.0
  %3395 = vmatprep.subr.mxu0 0.0
  %3396 = vmatpush1.msra.mxu0 0.0
  %3397 = vmatprep.subr.mxu0 0.0
  %3398 = vmatpush1.msra.mxu0 0.0
  %3399 = vmatprep.subr.mxu0 0.0
  %v3400 = vand.u32 %v49, 4294901760
  %v3401 = vsub.f32 %v49, %v3400
  %v3402 = vand.u32 %v3401, 4294901760
  %v3403 = vsub.f32 %v3401, %v3402
  %v3404 = vand.u32 %v3403, 4294901760
  %3405 = vmatpush1.msra.mxu0 %v3404
  %3406 = vmatprep.subr.mxu0 0.0
  %v3407 = vand.u32 %v48, 4294901760
  %v3408 = vsub.f32 %v48, %v3407
  %v3409 = vand.u32 %v3408, 4294901760
  %v3410 = vsub.f32 %v3408, %v3409
  %v3411 = vand.u32 %v3410, 4294901760
  %3412 = vmatpush1.msra.mxu0 %v3411
  %3413 = vmatprep.subr.mxu0 0.0
  %v3414 = vand.u32 %v47, 4294901760
  %v3415 = vsub.f32 %v47, %v3414
  %v3416 = vand.u32 %v3415, 4294901760
  %v3417 = vsub.f32 %v3415, %v3416
  %v3418 = vand.u32 %v3417, 4294901760
  %3419 = vmatpush1.msra.mxu0 %v3418
  %3420 = vmatprep.subr.mxu0 0.0
  %v3421 = vand.u32 %v46, 4294901760
  %v3422 = vsub.f32 %v46, %v3421
  %v3423 = vand.u32 %v3422, 4294901760
  %v3424 = vsub.f32 %v3422, %v3423
  %v3425 = vand.u32 %v3424, 4294901760
  %3426 = vmatpush1.msra.mxu0 %v3425
  %3427 = vmatprep.subr.mxu0 0.0
  %v3428 = vand.u32 %v45, 4294901760
  %v3429 = vsub.f32 %v45, %v3428
  %v3430 = vand.u32 %v3429, 4294901760
  %v3431 = vsub.f32 %v3429, %v3430
  %v3432 = vand.u32 %v3431, 4294901760
  %3433 = vmatpush1.msra.mxu0 %v3432
  %3434 = vmatprep.subr.mxu0 0.0
  %v3435 = vand.u32 %v44, 4294901760
  %v3436 = vsub.f32 %v44, %v3435
  %v3437 = vand.u32 %v3436, 4294901760
  %v3438 = vsub.f32 %v3436, %v3437
  %v3439 = vand.u32 %v3438, 4294901760
  %3440 = vmatpush1.msra.mxu0 %v3439
  %3441 = vmatprep.subr.mxu0 0.0
  %v3442 = vand.u32 %v43, 4294901760
  %v3443 = vsub.f32 %v43, %v3442
  %v3444 = vand.u32 %v3443, 4294901760
  %v3445 = vsub.f32 %v3443, %v3444
  %v3446 = vand.u32 %v3445, 4294901760
  %3447 = vmatpush1.msra.mxu0 %v3446
  %3448 = vmatprep.subr.mxu0 0.0
  %v3449 = vand.u32 %v42, 4294901760
  %v3450 = vsub.f32 %v42, %v3449
  %v3451 = vand.u32 %v3450, 4294901760
  %v3452 = vsub.f32 %v3450, %v3451
  %v3453 = vand.u32 %v3452, 4294901760
  %3454 = vmatpush1.msra.mxu0 %v3453
  %3455 = vmatprep.subr.mxu0 0.0
  %3456 = vmatpush2.msra.mxu0 0.0
  %3457 = vmatprep.subr.mxu0 0.0
  %3458 = vmatpush2.msra.mxu0 0.0
  %3459 = vmatprep.subr.mxu0 0.0
  %3460 = vmatpush2.msra.mxu0 0.0
  %3461 = vmatprep.subr.mxu0 0.0
  %3462 = vmatpush2.msra.mxu0 0.0
  %3463 = vmatprep.subr.mxu0 0.0
  %3464 = vmatpush2.msra.mxu0 0.0
  %3465 = vmatprep.subr.mxu0 0.0
  %3466 = vmatpush2.msra.mxu0 0.0
  %3467 = vmatprep.subr.mxu0 0.0
  %3468 = vmatpush2.msra.mxu0 0.0
  %3469 = vmatprep.subr.mxu0 0.0
  %3470 = vmatpush2.msra.mxu0 0.0
  %3471 = vmatprep.subr.mxu0 0.0
  %3472 = vmatpush2.msra.mxu0 0.0
  %3473 = vmatprep.subr.mxu0 0.0
  %3474 = vmatpush2.msra.mxu0 0.0
  %3475 = vmatprep.subr.mxu0 0.0
  %3476 = vmatpush2.msra.mxu0 0.0
  %3477 = vmatprep.subr.mxu0 0.0
  %3478 = vmatpush2.msra.mxu0 0.0
  %3479 = vmatprep.subr.mxu0 0.0
  %3480 = vmatpush2.msra.mxu0 0.0
  %3481 = vmatprep.subr.mxu0 0.0
  %3482 = vmatpush2.msra.mxu0 0.0
  %3483 = vmatprep.subr.mxu0 0.0
  %3484 = vmatpush2.msra.mxu0 0.0
  %3485 = vmatprep.subr.mxu0 0.0
  %3486 = vmatpush2.msra.mxu0 0.0
  %3487 = vmatprep.mubr.f32.mxu0 0.0
  %v3488 = vand.u32 %v3259, 4294901760
  %3489 = vmatmul.mubr.f32.gmra.mxu0 %v3488
  %v3490 = vpop.f32.mrf.mxu0
  %v3491 = vadd.f32 %v3350, %v3490
  %v3492 = vpop.f32.mrf.mxu0
  %3493 = vmatprep.mubr.f32.mxu0 0.0
  %v3494 = vand.u32 %v3262, 4294901760
  %3495 = vmatmul.mubr.f32.gmra.mxu0 %v3494
  %v3496 = vpop.f32.mrf.mxu0
  %v3497 = vadd.f32 %v3360, %v3496
  %v3498 = vpop.f32.mrf.mxu0
  %3499 = vmatprep.mubr.f32.mxu0 0.0
  %v3500 = vand.u32 %v3265, 4294901760
  %3501 = vmatmul.mubr.f32.gmra.mxu0 %v3500
  %v3502 = vpop.f32.mrf.mxu0
  %v3503 = vadd.f32 %v3370, %v3502
  %v3504 = vpop.f32.mrf.mxu0
  %3505 = vmatprep.mubr.f32.mxu0 0.0
  %v3506 = vand.u32 %v3268, 4294901760
  %3507 = vmatmul.mubr.f32.gmra.mxu0 %v3506
  %v3508 = vpop.f32.mrf.mxu0
  %v3509 = vadd.f32 %v3380, %v3508
  %v3510 = vpop.f32.mrf.mxu0
  %3511 = vdwg.mxu0
  %3512 = vmatprep.subr.mxu0 0.0
  %3513 = vmatpush1.msra.mxu0 0.0
  %3514 = vmatprep.subr.mxu0 0.0
  %3515 = vmatpush1.msra.mxu0 0.0
  %3516 = vmatprep.subr.mxu0 0.0
  %3517 = vmatpush1.msra.mxu0 0.0
  %3518 = vmatprep.subr.mxu0 0.0
  %3519 = vmatpush1.msra.mxu0 0.0
  %3520 = vmatprep.subr.mxu0 0.0
  %3521 = vmatpush1.msra.mxu0 0.0
  %3522 = vmatprep.subr.mxu0 0.0
  %3523 = vmatpush1.msra.mxu0 0.0
  %3524 = vmatprep.subr.mxu0 0.0
  %3525 = vmatpush1.msra.mxu0 0.0
  %3526 = vmatprep.subr.mxu0 0.0
  %3527 = vmatpush1.msra.mxu0 0.0
  %3528 = vmatprep.subr.mxu0 0.0
  %v3529 = vand.u32 %v49, 4294901760
  %v3530 = vsub.f32 %v49, %v3529
  %3531 = vmatpush1.msra.mxu0 %v3530
  %3532 = vmatprep.subr.mxu0 0.0
  %v3533 = vand.u32 %v48, 4294901760
  %v3534 = vsub.f32 %v48, %v3533
  %3535 = vmatpush1.msra.mxu0 %v3534
  %3536 = vmatprep.subr.mxu0 0.0
  %v3537 = vand.u32 %v47, 4294901760
  %v3538 = vsub.f32 %v47, %v3537
  %3539 = vmatpush1.msra.mxu0 %v3538
  %3540 = vmatprep.subr.mxu0 0.0
  %v3541 = vand.u32 %v46, 4294901760
  %v3542 = vsub.f32 %v46, %v3541
  %3543 = vmatpush1.msra.mxu0 %v3542
  %3544 = vmatprep.subr.mxu0 0.0
  %v3545 = vand.u32 %v45, 4294901760
  %v3546 = vsub.f32 %v45, %v3545
  %3547 = vmatpush1.msra.mxu0 %v3546
  %3548 = vmatprep.subr.mxu0 0.0
  %v3549 = vand.u32 %v44, 4294901760
  %v3550 = vsub.f32 %v44, %v3549
  %3551 = vmatpush1.msra.mxu0 %v3550
  %3552 = vmatprep.subr.mxu0 0.0
  %v3553 = vand.u32 %v43, 4294901760
  %v3554 = vsub.f32 %v43, %v3553
  %3555 = vmatpush1.msra.mxu0 %v3554
  %3556 = vmatprep.subr.mxu0 0.0
  %v3557 = vand.u32 %v42, 4294901760
  %v3558 = vsub.f32 %v42, %v3557
  %3559 = vmatpush1.msra.mxu0 %v3558
  %3560 = vmatprep.subr.mxu0 0.0
  %3561 = vmatpush2.msra.mxu0 0.0
  %3562 = vmatprep.subr.mxu0 0.0
  %3563 = vmatpush2.msra.mxu0 0.0
  %3564 = vmatprep.subr.mxu0 0.0
  %3565 = vmatpush2.msra.mxu0 0.0
  %3566 = vmatprep.subr.mxu0 0.0
  %3567 = vmatpush2.msra.mxu0 0.0
  %3568 = vmatprep.subr.mxu0 0.0
  %3569 = vmatpush2.msra.mxu0 0.0
  %3570 = vmatprep.subr.mxu0 0.0
  %3571 = vmatpush2.msra.mxu0 0.0
  %3572 = vmatprep.subr.mxu0 0.0
  %3573 = vmatpush2.msra.mxu0 0.0
  %3574 = vmatprep.subr.mxu0 0.0
  %3575 = vmatpush2.msra.mxu0 0.0
  %3576 = vmatprep.subr.mxu0 0.0
  %3577 = vmatpush2.msra.mxu0 0.0
  %3578 = vmatprep.subr.mxu0 0.0
  %3579 = vmatpush2.msra.mxu0 0.0
  %3580 = vmatprep.subr.mxu0 0.0
  %3581 = vmatpush2.msra.mxu0 0.0
  %3582 = vmatprep.subr.mxu0 0.0
  %3583 = vmatpush2.msra.mxu0 0.0
  %3584 = vmatprep.subr.mxu0 0.0
  %3585 = vmatpush2.msra.mxu0 0.0
  %3586 = vmatprep.subr.mxu0 0.0
  %3587 = vmatpush2.msra.mxu0 0.0
  %3588 = vmatprep.subr.mxu0 0.0
  %3589 = vmatpush2.msra.mxu0 0.0
  %3590 = vmatprep.subr.mxu0 0.0
  %3591 = vmatpush2.msra.mxu0 0.0
  %3592 = vmatprep.mubr.f32.mxu0 0.0
  %v3593 = vand.u32 %v3259, 4294901760
  %v3594 = vsub.f32 %v3259, %v3593
  %3595 = vmatmul.mubr.f32.gmra.mxu0 %v3594
  %v3596 = vpop.f32.mrf.mxu0
  %v3597 = vadd.f32 %v3491, %v3596
  %v3598 = vpop.f32.mrf.mxu0
  %3599 = vmatprep.mubr.f32.mxu0 0.0
  %v3600 = vand.u32 %v3262, 4294901760
  %v3601 = vsub.f32 %v3262, %v3600
  %3602 = vmatmul.mubr.f32.gmra.mxu0 %v3601
  %v3603 = vpop.f32.mrf.mxu0
  %v3604 = vadd.f32 %v3497, %v3603
  %v3605 = vpop.f32.mrf.mxu0
  %3606 = vmatprep.mubr.f32.mxu0 0.0
  %v3607 = vand.u32 %v3265, 4294901760
  %v3608 = vsub.f32 %v3265, %v3607
  %3609 = vmatmul.mubr.f32.gmra.mxu0 %v3608
  %v3610 = vpop.f32.mrf.mxu0
  %v3611 = vadd.f32 %v3503, %v3610
  %v3612 = vpop.f32.mrf.mxu0
  %3613 = vmatprep.mubr.f32.mxu0 0.0
  %v3614 = vand.u32 %v3268, 4294901760
  %v3615 = vsub.f32 %v3268, %v3614
  %3616 = vmatmul.mubr.f32.gmra.mxu0 %v3615
  %v3617 = vpop.f32.mrf.mxu0
  %v3618 = vadd.f32 %v3509, %v3617
  %v3619 = vpop.f32.mrf.mxu0
  %3620 = vdwg.mxu0
  %3621 = vmatprep.subr.mxu0 0.0
  %3622 = vmatpush1.msra.mxu0 0.0
  %3623 = vmatprep.subr.mxu0 0.0
  %3624 = vmatpush1.msra.mxu0 0.0
  %3625 = vmatprep.subr.mxu0 0.0
  %3626 = vmatpush1.msra.mxu0 0.0
  %3627 = vmatprep.subr.mxu0 0.0
  %3628 = vmatpush1.msra.mxu0 0.0
  %3629 = vmatprep.subr.mxu0 0.0
  %3630 = vmatpush1.msra.mxu0 0.0
  %3631 = vmatprep.subr.mxu0 0.0
  %3632 = vmatpush1.msra.mxu0 0.0
  %3633 = vmatprep.subr.mxu0 0.0
  %3634 = vmatpush1.msra.mxu0 0.0
  %3635 = vmatprep.subr.mxu0 0.0
  %3636 = vmatpush1.msra.mxu0 0.0
  %3637 = vmatprep.subr.mxu0 0.0
  %v3638 = vand.u32 %v49, 4294901760
  %3639 = vmatpush1.msra.mxu0 %v3638
  %3640 = vmatprep.subr.mxu0 0.0
  %v3641 = vand.u32 %v48, 4294901760
  %3642 = vmatpush1.msra.mxu0 %v3641
  %3643 = vmatprep.subr.mxu0 0.0
  %v3644 = vand.u32 %v47, 4294901760
  %3645 = vmatpush1.msra.mxu0 %v3644
  %3646 = vmatprep.subr.mxu0 0.0
  %v3647 = vand.u32 %v46, 4294901760
  %3648 = vmatpush1.msra.mxu0 %v3647
  %3649 = vmatprep.subr.mxu0 0.0
  %v3650 = vand.u32 %v45, 4294901760
  %3651 = vmatpush1.msra.mxu0 %v3650
  %3652 = vmatprep.subr.mxu0 0.0
  %v3653 = vand.u32 %v44, 4294901760
  %3654 = vmatpush1.msra.mxu0 %v3653
  %3655 = vmatprep.subr.mxu0 0.0
  %v3656 = vand.u32 %v43, 4294901760
  %3657 = vmatpush1.msra.mxu0 %v3656
  %3658 = vmatprep.subr.mxu0 0.0
  %v3659 = vand.u32 %v42, 4294901760
  %3660 = vmatpush1.msra.mxu0 %v3659
  %3661 = vmatprep.subr.mxu0 0.0
  %3662 = vmatpush2.msra.mxu0 0.0
  %3663 = vmatprep.subr.mxu0 0.0
  %3664 = vmatpush2.msra.mxu0 0.0
  %3665 = vmatprep.subr.mxu0 0.0
  %3666 = vmatpush2.msra.mxu0 0.0
  %3667 = vmatprep.subr.mxu0 0.0
  %3668 = vmatpush2.msra.mxu0 0.0
  %3669 = vmatprep.subr.mxu0 0.0
  %3670 = vmatpush2.msra.mxu0 0.0
  %3671 = vmatprep.subr.mxu0 0.0
  %3672 = vmatpush2.msra.mxu0 0.0
  %3673 = vmatprep.subr.mxu0 0.0
  %3674 = vmatpush2.msra.mxu0 0.0
  %3675 = vmatprep.subr.mxu0 0.0
  %3676 = vmatpush2.msra.mxu0 0.0
  %3677 = vmatprep.subr.mxu0 0.0
  %3678 = vmatpush2.msra.mxu0 0.0
  %3679 = vmatprep.subr.mxu0 0.0
  %3680 = vmatpush2.msra.mxu0 0.0
  %3681 = vmatprep.subr.mxu0 0.0
  %3682 = vmatpush2.msra.mxu0 0.0
  %3683 = vmatprep.subr.mxu0 0.0
  %3684 = vmatpush2.msra.mxu0 0.0
  %3685 = vmatprep.subr.mxu0 0.0
  %3686 = vmatpush2.msra.mxu0 0.0
  %3687 = vmatprep.subr.mxu0 0.0
  %3688 = vmatpush2.msra.mxu0 0.0
  %3689 = vmatprep.subr.mxu0 0.0
  %3690 = vmatpush2.msra.mxu0 0.0
  %3691 = vmatprep.subr.mxu0 0.0
  %3692 = vmatpush2.msra.mxu0 0.0
  %3693 = vmatprep.mubr.f32.mxu0 0.0
  %v3694 = vand.u32 %v3259, 4294901760
  %v3695 = vsub.f32 %v3259, %v3694
  %v3696 = vand.u32 %v3695, 4294901760
  %3697 = vmatmul.mubr.f32.gmra.mxu0 %v3696
  %v3698 = vpop.f32.mrf.mxu0
  %v3699 = vadd.f32 %v3597, %v3698
  %v3700 = vpop.f32.mrf.mxu0
  %3701 = vmatprep.mubr.f32.mxu0 0.0
  %v3702 = vand.u32 %v3262, 4294901760
  %v3703 = vsub.f32 %v3262, %v3702
  %v3704 = vand.u32 %v3703, 4294901760
  %3705 = vmatmul.mubr.f32.gmra.mxu0 %v3704
  %v3706 = vpop.f32.mrf.mxu0
  %v3707 = vadd.f32 %v3604, %v3706
  %v3708 = vpop.f32.mrf.mxu0
  %3709 = vmatprep.mubr.f32.mxu0 0.0
  %v3710 = vand.u32 %v3265, 4294901760
  %v3711 = vsub.f32 %v3265, %v3710
  %v3712 = vand.u32 %v3711, 4294901760
  %3713 = vmatmul.mubr.f32.gmra.mxu0 %v3712
  %v3714 = vpop.f32.mrf.mxu0
  %v3715 = vadd.f32 %v3611, %v3714
  %v3716 = vpop.f32.mrf.mxu0
  %3717 = vmatprep.mubr.f32.mxu0 0.0
  %v3718 = vand.u32 %v3268, 4294901760
  %v3719 = vsub.f32 %v3268, %v3718
  %v3720 = vand.u32 %v3719, 4294901760
  %3721 = vmatmul.mubr.f32.gmra.mxu0 %v3720
  %v3722 = vpop.f32.mrf.mxu0
  %v3723 = vadd.f32 %v3618, %v3722
  %v3724 = vpop.f32.mrf.mxu0
  %3725 = vdwg.mxu0
  %3726 = vmatprep.subr.mxu0 0.0
  %3727 = vmatpush1.msra.mxu0 0.0
  %3728 = vmatprep.subr.mxu0 0.0
  %3729 = vmatpush1.msra.mxu0 0.0
  %3730 = vmatprep.subr.mxu0 0.0
  %3731 = vmatpush1.msra.mxu0 0.0
  %3732 = vmatprep.subr.mxu0 0.0
  %3733 = vmatpush1.msra.mxu0 0.0
  %3734 = vmatprep.subr.mxu0 0.0
  %3735 = vmatpush1.msra.mxu0 0.0
  %3736 = vmatprep.subr.mxu0 0.0
  %3737 = vmatpush1.msra.mxu0 0.0
  %3738 = vmatprep.subr.mxu0 0.0
  %3739 = vmatpush1.msra.mxu0 0.0
  %3740 = vmatprep.subr.mxu0 0.0
  %3741 = vmatpush1.msra.mxu0 0.0
  %3742 = vmatprep.subr.mxu0 0.0
  %v3743 = vand.u32 %v49, 4294901760
  %v3744 = vsub.f32 %v49, %v3743
  %v3745 = vand.u32 %v3744, 4294901760
  %3746 = vmatpush1.msra.mxu0 %v3745
  %3747 = vmatprep.subr.mxu0 0.0
  %v3748 = vand.u32 %v48, 4294901760
  %v3749 = vsub.f32 %v48, %v3748
  %v3750 = vand.u32 %v3749, 4294901760
  %3751 = vmatpush1.msra.mxu0 %v3750
  %3752 = vmatprep.subr.mxu0 0.0
  %v3753 = vand.u32 %v47, 4294901760
  %v3754 = vsub.f32 %v47, %v3753
  %v3755 = vand.u32 %v3754, 4294901760
  %3756 = vmatpush1.msra.mxu0 %v3755
  %3757 = vmatprep.subr.mxu0 0.0
  %v3758 = vand.u32 %v46, 4294901760
  %v3759 = vsub.f32 %v46, %v3758
  %v3760 = vand.u32 %v3759, 4294901760
  %3761 = vmatpush1.msra.mxu0 %v3760
  %3762 = vmatprep.subr.mxu0 0.0
  %v3763 = vand.u32 %v45, 4294901760
  %v3764 = vsub.f32 %v45, %v3763
  %v3765 = vand.u32 %v3764, 4294901760
  %3766 = vmatpush1.msra.mxu0 %v3765
  %3767 = vmatprep.subr.mxu0 0.0
  %v3768 = vand.u32 %v44, 4294901760
  %v3769 = vsub.f32 %v44, %v3768
  %v3770 = vand.u32 %v3769, 4294901760
  %3771 = vmatpush1.msra.mxu0 %v3770
  %3772 = vmatprep.subr.mxu0 0.0
  %v3773 = vand.u32 %v43, 4294901760
  %v3774 = vsub.f32 %v43, %v3773
  %v3775 = vand.u32 %v3774, 4294901760
  %3776 = vmatpush1.msra.mxu0 %v3775
  %3777 = vmatprep.subr.mxu0 0.0
  %v3778 = vand.u32 %v42, 4294901760
  %v3779 = vsub.f32 %v42, %v3778
  %v3780 = vand.u32 %v3779, 4294901760
  %3781 = vmatpush1.msra.mxu0 %v3780
  %3782 = vmatprep.subr.mxu0 0.0
  %3783 = vmatpush2.msra.mxu0 0.0
  %3784 = vmatprep.subr.mxu0 0.0
  %3785 = vmatpush2.msra.mxu0 0.0
  %3786 = vmatprep.subr.mxu0 0.0
  %3787 = vmatpush2.msra.mxu0 0.0
  %3788 = vmatprep.subr.mxu0 0.0
  %3789 = vmatpush2.msra.mxu0 0.0
  %3790 = vmatprep.subr.mxu0 0.0
  %3791 = vmatpush2.msra.mxu0 0.0
  %3792 = vmatprep.subr.mxu0 0.0
  %3793 = vmatpush2.msra.mxu0 0.0
  %3794 = vmatprep.subr.mxu0 0.0
  %3795 = vmatpush2.msra.mxu0 0.0
  %3796 = vmatprep.subr.mxu0 0.0
  %3797 = vmatpush2.msra.mxu0 0.0
  %3798 = vmatprep.subr.mxu0 0.0
  %3799 = vmatpush2.msra.mxu0 0.0
  %3800 = vmatprep.subr.mxu0 0.0
  %3801 = vmatpush2.msra.mxu0 0.0
  %3802 = vmatprep.subr.mxu0 0.0
  %3803 = vmatpush2.msra.mxu0 0.0
  %3804 = vmatprep.subr.mxu0 0.0
  %3805 = vmatpush2.msra.mxu0 0.0
  %3806 = vmatprep.subr.mxu0 0.0
  %3807 = vmatpush2.msra.mxu0 0.0
  %3808 = vmatprep.subr.mxu0 0.0
  %3809 = vmatpush2.msra.mxu0 0.0
  %3810 = vmatprep.subr.mxu0 0.0
  %3811 = vmatpush2.msra.mxu0 0.0
  %3812 = vmatprep.subr.mxu0 0.0
  %3813 = vmatpush2.msra.mxu0 0.0
  %3814 = vmatprep.mubr.f32.mxu0 0.0
  %v3815 = vand.u32 %v3259, 4294901760
  %3816 = vmatmul.mubr.f32.gmra.mxu0 %v3815
  %v3817 = vpop.f32.mrf.mxu0
  %v3818 = vadd.f32 %v3699, %v3817
  %v3819 = vpop.f32.mrf.mxu0
  %3820 = vmatprep.mubr.f32.mxu0 0.0
  %v3821 = vand.u32 %v3262, 4294901760
  %3822 = vmatmul.mubr.f32.gmra.mxu0 %v3821
  %v3823 = vpop.f32.mrf.mxu0
  %v3824 = vadd.f32 %v3707, %v3823
  %v3825 = vpop.f32.mrf.mxu0
  %3826 = vmatprep.mubr.f32.mxu0 0.0
  %v3827 = vand.u32 %v3265, 4294901760
  %3828 = vmatmul.mubr.f32.gmra.mxu0 %v3827
  %v3829 = vpop.f32.mrf.mxu0
  %v3830 = vadd.f32 %v3715, %v3829
  %v3831 = vpop.f32.mrf.mxu0
  %3832 = vmatprep.mubr.f32.mxu0 0.0
  %v3833 = vand.u32 %v3268, 4294901760
  %3834 = vmatmul.mubr.f32.gmra.mxu0 %v3833
  %v3835 = vpop.f32.mrf.mxu0
  %v3836 = vadd.f32 %v3723, %v3835
  %v3837 = vpop.f32.mrf.mxu0
  %3838 = vdwg.mxu0
  %3839 = vmatprep.subr.mxu0 0.0
  %3840 = vmatpush1.msra.mxu0 0.0
  %3841 = vmatprep.subr.mxu0 0.0
  %3842 = vmatpush1.msra.mxu0 0.0
  %3843 = vmatprep.subr.mxu0 0.0
  %3844 = vmatpush1.msra.mxu0 0.0
  %3845 = vmatprep.subr.mxu0 0.0
  %3846 = vmatpush1.msra.mxu0 0.0
  %3847 = vmatprep.subr.mxu0 0.0
  %3848 = vmatpush1.msra.mxu0 0.0
  %3849 = vmatprep.subr.mxu0 0.0
  %3850 = vmatpush1.msra.mxu0 0.0
  %3851 = vmatprep.subr.mxu0 0.0
  %3852 = vmatpush1.msra.mxu0 0.0
  %3853 = vmatprep.subr.mxu0 0.0
  %3854 = vmatpush1.msra.mxu0 0.0
  %3855 = vmatprep.subr.mxu0 0.0
  %v3856 = vand.u32 %v49, 4294901760
  %3857 = vmatpush1.msra.mxu0 %v3856
  %3858 = vmatprep.subr.mxu0 0.0
  %v3859 = vand.u32 %v48, 4294901760
  %3860 = vmatpush1.msra.mxu0 %v3859
  %3861 = vmatprep.subr.mxu0 0.0
  %v3862 = vand.u32 %v47, 4294901760
  %3863 = vmatpush1.msra.mxu0 %v3862
  %3864 = vmatprep.subr.mxu0 0.0
  %v3865 = vand.u32 %v46, 4294901760
  %3866 = vmatpush1.msra.mxu0 %v3865
  %3867 = vmatprep.subr.mxu0 0.0
  %v3868 = vand.u32 %v45, 4294901760
  %3869 = vmatpush1.msra.mxu0 %v3868
  %3870 = vmatprep.subr.mxu0 0.0
  %v3871 = vand.u32 %v44, 4294901760
  %3872 = vmatpush1.msra.mxu0 %v3871
  %3873 = vmatprep.subr.mxu0 0.0
  %v3874 = vand.u32 %v43, 4294901760
  %3875 = vmatpush1.msra.mxu0 %v3874
  %3876 = vmatprep.subr.mxu0 0.0
  %v3877 = vand.u32 %v42, 4294901760
  %3878 = vmatpush1.msra.mxu0 %v3877
  %3879 = vmatprep.subr.mxu0 0.0
  %3880 = vmatpush2.msra.mxu0 0.0
  %3881 = vmatprep.subr.mxu0 0.0
  %3882 = vmatpush2.msra.mxu0 0.0
  %3883 = vmatprep.subr.mxu0 0.0
  %3884 = vmatpush2.msra.mxu0 0.0
  %3885 = vmatprep.subr.mxu0 0.0
  %3886 = vmatpush2.msra.mxu0 0.0
  %3887 = vmatprep.subr.mxu0 0.0
  %3888 = vmatpush2.msra.mxu0 0.0
  %3889 = vmatprep.subr.mxu0 0.0
  %3890 = vmatpush2.msra.mxu0 0.0
  %3891 = vmatprep.subr.mxu0 0.0
  %3892 = vmatpush2.msra.mxu0 0.0
  %3893 = vmatprep.subr.mxu0 0.0
  %3894 = vmatpush2.msra.mxu0 0.0
  %3895 = vmatprep.subr.mxu0 0.0
  %3896 = vmatpush2.msra.mxu0 0.0
  %3897 = vmatprep.subr.mxu0 0.0
  %3898 = vmatpush2.msra.mxu0 0.0
  %3899 = vmatprep.subr.mxu0 0.0
  %3900 = vmatpush2.msra.mxu0 0.0
  %3901 = vmatprep.subr.mxu0 0.0
  %3902 = vmatpush2.msra.mxu0 0.0
  %3903 = vmatprep.subr.mxu0 0.0
  %3904 = vmatpush2.msra.mxu0 0.0
  %3905 = vmatprep.subr.mxu0 0.0
  %3906 = vmatpush2.msra.mxu0 0.0
  %3907 = vmatprep.subr.mxu0 0.0
  %3908 = vmatpush2.msra.mxu0 0.0
  %3909 = vmatprep.subr.mxu0 0.0
  %3910 = vmatpush2.msra.mxu0 0.0
  %3911 = vmatprep.mubr.f32.mxu0 0.0
  %v3912 = vand.u32 %v3259, 4294901760
  %3913 = vmatmul.mubr.f32.gmra.mxu0 %v3912
  %v3914 = vpop.f32.mrf.mxu0
  %v3915 = vadd.f32 %v3818, %v3914
  %v3916 = vpop.f32.mrf.mxu0
  %3917 = vmatprep.mubr.f32.mxu0 0.0
  %v3918 = vand.u32 %v3262, 4294901760
  %3919 = vmatmul.mubr.f32.gmra.mxu0 %v3918
  %v3920 = vpop.f32.mrf.mxu0
  %v3921 = vadd.f32 %v3824, %v3920
  %v3922 = vpop.f32.mrf.mxu0
  %3923 = vmatprep.mubr.f32.mxu0 0.0
  %v3924 = vand.u32 %v3265, 4294901760
  %3925 = vmatmul.mubr.f32.gmra.mxu0 %v3924
  %v3926 = vpop.f32.mrf.mxu0
  %v3927 = vadd.f32 %v3830, %v3926
  %v3928 = vpop.f32.mrf.mxu0
  %3929 = vmatprep.mubr.f32.mxu0 0.0
  %v3930 = vand.u32 %v3268, 4294901760
  %3931 = vmatmul.mubr.f32.gmra.mxu0 %v3930
  %v3932 = vpop.f32.mrf.mxu0
  %v3933 = vadd.f32 %v3836, %v3932
  %v3934 = vpop.f32.mrf.mxu0
  %3935 = vdwg.mxu0
  %v3936 = vsel %vm50, %v3915, 0.0
  %v3937 = vsel %vm50, %v3921, 0.0
  %v3938 = vadd.f32 %v3936, %v3937
  %v3939 = vsel %vm50, %v3927, 0.0
  %v3940 = vadd.f32 %v3938, %v3939
  %v3941 = vsel %vm50, %v3933, 0.0
  %v3942 = vadd.f32 %v3940, %v3941
  %v3943 = vrot.slane %v3942, 4
  %v3944 = vadd.f32 %v3942, %v3943
  %v3945 = vrot.slane %v3944, 2
  %v3946 = vadd.f32 %v3944, %v3945
  %v3947 = vrot.slane %v3946, 1
  %v3948 = vadd.f32 %v3946, %v3947
  %v3949 = vmul.f32 %v3948, 0.001953125
  %v3950 = vadd.f32 %v3949, 1e-05
  %v3951 = vrsqrt.pop %v3950
  %v3952 = vmul.f32 %v3250, %v3951
  %v3953 = vmul.f32 %v3251, %v3951
  %v3954 = vmul.f32 %v3252, %v3951
  %v3955 = vmul.f32 %v3253, %v3951
  %v3957 = vlaneseq
  %v3958 = vshrl.u32 %v3957, 7
  %v3959 = vsub.s32 0, %v3958
  %v3960 = vrot.slane %v2556, %v3959
  %v3962 = vmul.f32 %v3952, %v3960
  %v3963 = vmul.f32 %v3953, %v3960
  %v3964 = vmul.f32 %v3954, %v3960
  %v3965 = vmul.f32 %v3955, %v3960
  %v3967 = vlaneseq
  %v3968 = vshrl.u32 %v3967, 7
  %v3969 = vsub.s32 0, %v3968
  %v3970 = vrot.slane %v2557, %v3969
  %v3972 = vadd.f32 %v3962, %v3970
  %v3973 = vadd.f32 %v3963, %v3970
  %v3974 = vadd.f32 %v3964, %v3970
  %v3975 = vadd.f32 %v3965, %v3970
  %v3976 = vadd.f32 %v3972, %v38
  %v3977 = vadd.f32 %v3973, %v39
  %v3978 = vadd.f32 %v3974, %v40
  %v3979 = vadd.f32 %v3975, %v41
  %v3980 = vmax.f32 %v3976, 0.0
  %v3981 = vmax.f32 %v3977, 0.0
  %v3982 = vmax.f32 %v3978, 0.0
  %v3983 = vmax.f32 %v3979, 0.0
  %3984 = vst.msk [vmem:[%s9] sm:$0xff] %vm50, %v3980
  %3985 = vst.msk [vmem:[%s9 + $0x8] sm:$0xff] %vm50, %v3981
  %3986 = vst.msk [vmem:[%s9 + $0x10] sm:$0xff] %vm50, %v3982
  %3987 = vst.msk [vmem:[%s9 + $0x18] sm:$0xff] %vm50, %v3983
  // Predicated region
  $region38: #{residual_block.1} parent=0 // pred_check
    _
  $region39: #{residual_block.1} parent=0 // pred_check_branch
    %3989 = sbr.rel (0) target = $region41
  $region40: #{residual_block.1} parent=0 // pred_region
    _
  $region41: #{residual_block.1} parent=0 // pred_fallthru
    _
  // Predicated region
  $region42: #{residual_block.1} parent=0 // pred_check
    _
  $region43: #{residual_block.1} parent=0 // pred_check_branch
    %3991 = sbr.rel (0) target = $region45
  $region44: #{residual_block.1} parent=0 // pred_region
    _
  $region45: #{residual_block.1} parent=0 // pred_fallthru
    _

</llo_original>
